<compile_context>
chip_gen: v5e
topology: v5e:2x2
jax: 0.10.0
libtpu: 0.0.40
codegen_flags: <defaults>
</compile_context>

<pallas_src>
import functools

import jax
import jax.numpy as jnp
from jax.experimental import pallas as pl
from jax.experimental.pallas import tpu as pltpu

# MLP dims from the PyTorch module: 784 -> 520 -> 320 -> 240 -> 120 -> 10
DIMS = (784, 520, 320, 240, 120, 10)


def _round_up(n: int, m: int) -> int:
    return ((n + m - 1) // m) * m


# Lane-dense (multiple-of-128) padded dims: 896, 640, 384, 256, 128, 128
PAD_DIMS = tuple(_round_up(d, 128) for d in DIMS)


def mlp_kernel(x_ref,
               w1_ref, b1_ref,
               w2_ref, b2_ref,
               w3_ref, b3_ref,
               w4_ref, b4_ref,
               w5_ref, b5_ref,
               o_ref):
    """Fused padded 5-layer MLP.

    x_ref:  (TB, 896) bf16 activation tile.
    wN_ref: (in_pad, out_pad) bf16, resident in VMEM across the grid (Buffered(1)).
    bN_ref: (1, out_pad) f32.
    o_ref:  (TB, 128) bf16 (only cols [:10] are meaningful).
    Accumulation is f32 on the MXU; activations are re-cast to bf16 between
    layers so every matmul stays on the bf16 MXU path.  ReLU is done on the
    f32 accumulator then cast (safe on v5e, which has no bf16 VALU).
    """
    h = jnp.dot(x_ref[...], w1_ref[...],
                preferred_element_type=jnp.float32) + b1_ref[...]
    h = jnp.maximum(h, 0.0).astype(jnp.bfloat16)

    h = jnp.dot(h, w2_ref[...],
                preferred_element_type=jnp.float32) + b2_ref[...]
    h = jnp.maximum(h, 0.0).astype(jnp.bfloat16)

    h = jnp.dot(h, w3_ref[...],
                preferred_element_type=jnp.float32) + b3_ref[...]
    h = jnp.maximum(h, 0.0).astype(jnp.bfloat16)

    h = jnp.dot(h, w4_ref[...],
                preferred_element_type=jnp.float32) + b4_ref[...]
    h = jnp.maximum(h, 0.0).astype(jnp.bfloat16)

    h = jnp.dot(h, w5_ref[...],
                preferred_element_type=jnp.float32) + b5_ref[...]

    o_ref[...] = h.astype(o_ref.dtype)


def init_params(key):
    """torch.nn.Linear-style init: W, b ~ U(-1/sqrt(fan_in), 1/sqrt(fan_in)).
    Stored transposed as (in, out) f32 plus (1, out) f32 bias (unpadded)."""
    params = []
    for i in range(5):
        fan_in, fan_out = DIMS[i], DIMS[i + 1]
        key, kw, kb = jax.random.split(key, 3)
        bound = 1.0 / jnp.sqrt(jnp.float32(fan_in))
        w_t = jax.random.uniform(kw, (fan_in, fan_out), jnp.float32, -bound, bound)
        b = jax.random.uniform(kb, (1, fan_out), jnp.float32, -bound, bound)
        params.append((w_t, b))
    return params


def prepare_params(params):
    """Zero-pad every layer to lane-dense (multiple-of-128) shapes and cast
    weights to bf16 (done once on the host). Biases stay f32."""
    padded = []
    for i, (w_t, b) in enumerate(params):
        in_pad, out_pad = PAD_DIMS[i], PAD_DIMS[i + 1]
        w_p = jnp.pad(w_t, ((0, in_pad - w_t.shape[0]),
                            (0, out_pad - w_t.shape[1]))).astype(jnp.bfloat16)
        b_p = jnp.pad(b, ((0, 0), (0, out_pad - b.shape[1]))).astype(jnp.float32)
        padded.append((w_p, b_p))
    return padded


def _choose_batch_tile(batch: int) -> int:
    """Single source of truth for the batch tile.

    * multiple of 16 (bf16 sublane packing),
    * capped at 512 so v5e's 16 MiB scoped VMEM keeps headroom
      (weights ~2 MiB single-buffered + 512x896 bf16 x-tile double-buffered),
    * >= 2 grid steps whenever the batch allows it so v7x's two TensorCores
      both get work under dimension_semantics=("parallel",).
    """
    if batch >= 1024:
        return 512
    if batch > 16:
        return _round_up((batch + 1) // 2, 16)
    return _round_up(max(batch, 1), 16)


@jax.jit
def _forward(x, flat_params):
    """Full forward, jitted: reshape -> bf16 -> pad -> fused MLP -> slice."""
    # x.view(-1, x.size(0)) in the PyTorch module: a row-major reshape to
    # (-1, 784).  Cast straight to bf16 (the kernel only consumes bf16).
    x2d = jnp.reshape(x, (-1, DIMS[0])).astype(jnp.bfloat16)
    batch = x2d.shape[0]

    tb = _choose_batch_tile(batch)
    b_pad = _round_up(batch, tb)
    grid = (b_pad // tb,)

    x_pad = jnp.pad(x2d, ((0, b_pad - batch), (0, PAD_DIMS[0] - DIMS[0])))

    # BlockSpecs: activations stream over the batch grid; weights/biases use a
    # constant index_map and a single buffer (never re-DMA'd, half the VMEM).
    in_specs = [pl.BlockSpec((tb, PAD_DIMS[0]), lambda i: (i, 0))]
    for li in range(5):
        w_shape = (PAD_DIMS[li], PAD_DIMS[li + 1])
        b_shape = (1, PAD_DIMS[li + 1])
        in_specs.append(pl.BlockSpec(w_shape, lambda i: (0, 0),
                                     pipeline_mode=pl.Buffered(1)))
        in_specs.append(pl.BlockSpec(b_shape, lambda i: (0, 0),
                                     pipeline_mode=pl.Buffered(1)))
    out_spec = pl.BlockSpec((tb, PAD_DIMS[-1]), lambda i: (i, 0))

    weight_bytes = sum(PAD_DIMS[i] * PAD_DIMS[i + 1] * 2 for i in range(5))
    bias_bytes = sum(PAD_DIMS[i + 1] * 4 for i in range(5))
    act_bytes = b_pad * PAD_DIMS[0] * 2 + b_pad * PAD_DIMS[-1] * 2  # bf16 in/out
    flops = 2 * b_pad * sum(PAD_DIMS[i] * PAD_DIMS[i + 1] for i in range(5))
    cost = pl.CostEstimate(flops=flops, transcendentals=0,
                           bytes_accessed=weight_bytes + bias_bytes + act_bytes)

    out_pad = pl.pallas_call(
        mlp_kernel,
        out_shape=jax.ShapeDtypeStruct((b_pad, PAD_DIMS[-1]), jnp.bfloat16),
        grid=grid,
        in_specs=in_specs,
        out_specs=out_spec,
        compiler_params=pltpu.CompilerParams(
            dimension_semantics=("parallel",)),
        cost_estimate=cost,
    )(x_pad, *flat_params)

    # Strip batch padding and the padded logit columns; return f32 logits.
    return out_pad[:batch, :DIMS[-1]].astype(jnp.float32)


def model_forward(x, padded_params):
    """Reproduces Model.forward:
        x = x.view(-1, x.size(0))   # row-major reshape (NOT a transpose)
        y = l5(relu(l4(relu(l3(relu(l2(relu(l1(x)))))))))
    Only makes sense when x.shape[0] == 784 (it feeds Linear(784, 520))."""
    assert x.shape[0] == DIMS[0], (
        f"x.size(0) must be {DIMS[0]} for l1; got {x.shape[0]}")
    flat_params = tuple(p for wb in padded_params for p in wb)
    return _forward(x, flat_params)


def reference_forward(x, padded_params):
    """Pure-JAX reference with the same bf16 weight / f32-accumulate math and
    the same final bf16 rounding as the kernel."""
    h = jnp.reshape(x, (-1, DIMS[0])).astype(jnp.bfloat16)
    h = jnp.pad(h, ((0, 0), (0, PAD_DIMS[0] - DIMS[0])))
    for i, (w_p, b_p) in enumerate(padded_params):
        h = jnp.dot(h, w_p, preferred_element_type=jnp.float32) + b_p
        if i < 4:
            h = jnp.maximum(h, 0.0).astype(jnp.bfloat16)
    return h[:, :DIMS[-1]].astype(jnp.bfloat16).astype(jnp.float32)


if __name__ == "__main__":
    key = jax.random.PRNGKey(0)
    key, kx, kp = jax.random.split(key, 3)

    # Input: first dim must be 784 (x.view(-1, x.size(0)) feeds Linear(784, .)).
    # Small "batch" of 4 columns -> after the view: (4, 784).
    x = jax.random.normal(kx, (784, 4), dtype=jnp.float32)

    params = init_params(kp)
    padded_params = prepare_params(params)

    y = model_forward(x, padded_params)
    y = jax.block_until_ready(y)

    y_ref = reference_forward(x, padded_params)
    assert y.shape == (4, 10), y.shape
    # NOTE: bf16 weights + bf16 output rounding is an intentional precision
    # trade-off vs. the f32 PyTorch model; tolerance sized for bf16 ulps.
    assert jnp.allclose(y, y_ref, atol=2e-2, rtol=2e-2), (
        "mismatch vs reference", float(jnp.max(jnp.abs(y - y_ref))))

    print("KERNEL_OK")
</pallas_src>

<mosaic_0001>
module attributes {stable_mosaic.version = 11 : i64} {
  func.func @mlp_kernel(%arg0: i32, %arg1: memref<16x896xbf16, #tpu.memory_space<vmem>>, %arg2: memref<896x640xbf16, #tpu.memory_space<vmem>>, %arg3: memref<1x640xf32, #tpu.memory_space<vmem>>, %arg4: memref<640x384xbf16, #tpu.memory_space<vmem>>, %arg5: memref<1x384xf32, #tpu.memory_space<vmem>>, %arg6: memref<384x256xbf16, #tpu.memory_space<vmem>>, %arg7: memref<1x256xf32, #tpu.memory_space<vmem>>, %arg8: memref<256x128xbf16, #tpu.memory_space<vmem>>, %arg9: memref<1x128xf32, #tpu.memory_space<vmem>>, %arg10: memref<128x128xbf16, #tpu.memory_space<vmem>>, %arg11: memref<1x128xf32, #tpu.memory_space<vmem>>, %arg12: memref<16x128xbf16, #tpu.memory_space<vmem>>) attributes {dimension_semantics = [#tpu.dimension_semantics<parallel>], iteration_bounds = array<i64: 1>, scalar_prefetch = 0 : i64, scratch_operands = 0 : i64, tpu.core_type = #tpu.core_type<tc>, window_params = [{transform_indices = @transform_0, window_bounds = array<i64: 16, 896>}, {pipeline_mode = #tpu.pipeline_mode<synchronous>, transform_indices = @transform_1, window_bounds = array<i64: 896, 640>}, {pipeline_mode = #tpu.pipeline_mode<synchronous>, transform_indices = @transform_2, window_bounds = array<i64: 1, 640>}, {pipeline_mode = #tpu.pipeline_mode<synchronous>, transform_indices = @transform_3, window_bounds = array<i64: 640, 384>}, {pipeline_mode = #tpu.pipeline_mode<synchronous>, transform_indices = @transform_4, window_bounds = array<i64: 1, 384>}, {pipeline_mode = #tpu.pipeline_mode<synchronous>, transform_indices = @transform_5, window_bounds = array<i64: 384, 256>}, {pipeline_mode = #tpu.pipeline_mode<synchronous>, transform_indices = @transform_6, window_bounds = array<i64: 1, 256>}, {pipeline_mode = #tpu.pipeline_mode<synchronous>, transform_indices = @transform_7, window_bounds = array<i64: 256, 128>}, {pipeline_mode = #tpu.pipeline_mode<synchronous>, transform_indices = @transform_8, window_bounds = array<i64: 1, 128>}, {pipeline_mode = #tpu.pipeline_mode<synchronous>, transform_indices = @transform_9, window_bounds = array<i64: 128, 128>}, {pipeline_mode = #tpu.pipeline_mode<synchronous>, transform_indices = @transform_10, window_bounds = array<i64: 1, 128>}, {transform_indices = @transform_11, window_bounds = array<i64: 16, 128>}]} {
    %c0 = arith.constant 0 : index
    %c0_0 = arith.constant 0 : index
    %0 = vector.load %arg1[%c0, %c0_0] : memref<16x896xbf16, #tpu.memory_space<vmem>>, vector<16x896xbf16>
    %c0_1 = arith.constant 0 : index
    %c0_2 = arith.constant 0 : index
    %1 = vector.load %arg2[%c0_1, %c0_2] : memref<896x640xbf16, #tpu.memory_space<vmem>>, vector<896x640xbf16>
    %cst = arith.constant dense<0.000000e+00> : vector<16x640xf32>
    %2 = tpu.matmul %0, %1, %cst {dimension_numbers = #tpu.dot_dimension_numbers<[1], [0], [0], [1], [0, 0, 1, 1], [], []>} : vector<16x896xbf16>, vector<896x640xbf16>, vector<16x640xf32> -> vector<16x640xf32>
    %c0_3 = arith.constant 0 : index
    %c0_4 = arith.constant 0 : index
    %3 = vector.load %arg3[%c0_3, %c0_4] : memref<1x640xf32, #tpu.memory_space<vmem>>, vector<1x640xf32>
    %4 = vector.broadcast %3 : vector<1x640xf32> to vector<16x640xf32>
    %5 = arith.addf %2, %4 : vector<16x640xf32>
    %cst_5 = arith.constant 0.000000e+00 : f32
    %6 = vector.broadcast %cst_5 : f32 to vector<16x640xf32>
    %7 = arith.maximumf %5, %6 : vector<16x640xf32>
    %8 = arith.truncf %7 : vector<16x640xf32> to vector<16x640xbf16>
    %c0_6 = arith.constant 0 : index
    %c0_7 = arith.constant 0 : index
    %9 = vector.load %arg4[%c0_6, %c0_7] : memref<640x384xbf16, #tpu.memory_space<vmem>>, vector<640x384xbf16>
    %cst_8 = arith.constant dense<0.000000e+00> : vector<16x384xf32>
    %10 = tpu.matmul %8, %9, %cst_8 {dimension_numbers = #tpu.dot_dimension_numbers<[1], [0], [0], [1], [0, 0, 1, 1], [], []>} : vector<16x640xbf16>, vector<640x384xbf16>, vector<16x384xf32> -> vector<16x384xf32>
    %c0_9 = arith.constant 0 : index
    %c0_10 = arith.constant 0 : index
    %11 = vector.load %arg5[%c0_9, %c0_10] : memref<1x384xf32, #tpu.memory_space<vmem>>, vector<1x384xf32>
    %12 = vector.broadcast %11 : vector<1x384xf32> to vector<16x384xf32>
    %13 = arith.addf %10, %12 : vector<16x384xf32>
    %cst_11 = arith.constant 0.000000e+00 : f32
    %14 = vector.broadcast %cst_11 : f32 to vector<16x384xf32>
    %15 = arith.maximumf %13, %14 : vector<16x384xf32>
    %16 = arith.truncf %15 : vector<16x384xf32> to vector<16x384xbf16>
    %c0_12 = arith.constant 0 : index
    %c0_13 = arith.constant 0 : index
    %17 = vector.load %arg6[%c0_12, %c0_13] : memref<384x256xbf16, #tpu.memory_space<vmem>>, vector<384x256xbf16>
    %cst_14 = arith.constant dense<0.000000e+00> : vector<16x256xf32>
    %18 = tpu.matmul %16, %17, %cst_14 {dimension_numbers = #tpu.dot_dimension_numbers<[1], [0], [0], [1], [0, 0, 1, 1], [], []>} : vector<16x384xbf16>, vector<384x256xbf16>, vector<16x256xf32> -> vector<16x256xf32>
    %c0_15 = arith.constant 0 : index
    %c0_16 = arith.constant 0 : index
    %19 = vector.load %arg7[%c0_15, %c0_16] : memref<1x256xf32, #tpu.memory_space<vmem>>, vector<1x256xf32>
    %20 = vector.broadcast %19 : vector<1x256xf32> to vector<16x256xf32>
    %21 = arith.addf %18, %20 : vector<16x256xf32>
    %cst_17 = arith.constant 0.000000e+00 : f32
    %22 = vector.broadcast %cst_17 : f32 to vector<16x256xf32>
    %23 = arith.maximumf %21, %22 : vector<16x256xf32>
    %24 = arith.truncf %23 : vector<16x256xf32> to vector<16x256xbf16>
    %c0_18 = arith.constant 0 : index
    %c0_19 = arith.constant 0 : index
    %25 = vector.load %arg8[%c0_18, %c0_19] : memref<256x128xbf16, #tpu.memory_space<vmem>>, vector<256x128xbf16>
    %cst_20 = arith.constant dense<0.000000e+00> : vector<16x128xf32>
    %26 = tpu.matmul %24, %25, %cst_20 {dimension_numbers = #tpu.dot_dimension_numbers<[1], [0], [0], [1], [0, 0, 1, 1], [], []>} : vector<16x256xbf16>, vector<256x128xbf16>, vector<16x128xf32> -> vector<16x128xf32>
    %c0_21 = arith.constant 0 : index
    %c0_22 = arith.constant 0 : index
    %27 = vector.load %arg9[%c0_21, %c0_22] : memref<1x128xf32, #tpu.memory_space<vmem>>, vector<1x128xf32>
    %28 = vector.broadcast %27 : vector<1x128xf32> to vector<16x128xf32>
    %29 = arith.addf %26, %28 : vector<16x128xf32>
    %cst_23 = arith.constant 0.000000e+00 : f32
    %30 = vector.broadcast %cst_23 : f32 to vector<16x128xf32>
    %31 = arith.maximumf %29, %30 : vector<16x128xf32>
    %32 = arith.truncf %31 : vector<16x128xf32> to vector<16x128xbf16>
    %c0_24 = arith.constant 0 : index
    %c0_25 = arith.constant 0 : index
    %33 = vector.load %arg10[%c0_24, %c0_25] : memref<128x128xbf16, #tpu.memory_space<vmem>>, vector<128x128xbf16>
    %cst_26 = arith.constant dense<0.000000e+00> : vector<16x128xf32>
    %34 = tpu.matmul %32, %33, %cst_26 {dimension_numbers = #tpu.dot_dimension_numbers<[1], [0], [0], [1], [0, 0, 1, 1], [], []>} : vector<16x128xbf16>, vector<128x128xbf16>, vector<16x128xf32> -> vector<16x128xf32>
    %c0_27 = arith.constant 0 : index
    %c0_28 = arith.constant 0 : index
    %35 = vector.load %arg11[%c0_27, %c0_28] : memref<1x128xf32, #tpu.memory_space<vmem>>, vector<1x128xf32>
    %36 = vector.broadcast %35 : vector<1x128xf32> to vector<16x128xf32>
    %37 = arith.addf %34, %36 : vector<16x128xf32>
    %38 = arith.truncf %37 : vector<16x128xf32> to vector<16x128xbf16>
    %c0_29 = arith.constant 0 : index
    %c0_30 = arith.constant 0 : index
    %39 = vector.load %arg12[%c0_29, %c0_30] : memref<16x128xbf16, #tpu.memory_space<vmem>>, vector<16x128xbf16>
    tpu.vector_store %arg12[%c0_29, %c0_30], %38 {strides = array<i32>} : memref<16x128xbf16, #tpu.memory_space<vmem>>, vector<16x128xbf16>,
    return
  }
  func.func @transform_0(%arg0: i32) -> (i32, i32) {
    %c0_i32 = arith.constant 0 : i32
    %c0_i32_0 = arith.constant 0 : i32
    return %arg0, %c0_i32 : i32, i32
  }
  func.func @transform_1(%arg0: i32) -> (i32, i32) {
    %c0_i32 = arith.constant 0 : i32
    %c0_i32_0 = arith.constant 0 : i32
    %c0_i32_1 = arith.constant 0 : i32
    return %c0_i32, %c0_i32_0 : i32, i32
  }
  func.func @transform_2(%arg0: i32) -> (i32, i32) {
    %c0_i32 = arith.constant 0 : i32
    %c0_i32_0 = arith.constant 0 : i32
    %c0_i32_1 = arith.constant 0 : i32
    return %c0_i32, %c0_i32_0 : i32, i32
  }
  func.func @transform_3(%arg0: i32) -> (i32, i32) {
    %c0_i32 = arith.constant 0 : i32
    %c0_i32_0 = arith.constant 0 : i32
    %c0_i32_1 = arith.constant 0 : i32
    return %c0_i32, %c0_i32_0 : i32, i32
  }
  func.func @transform_4(%arg0: i32) -> (i32, i32) {
    %c0_i32 = arith.constant 0 : i32
    %c0_i32_0 = arith.constant 0 : i32
    %c0_i32_1 = arith.constant 0 : i32
    return %c0_i32, %c0_i32_0 : i32, i32
  }
  func.func @transform_5(%arg0: i32) -> (i32, i32) {
    %c0_i32 = arith.constant 0 : i32
    %c0_i32_0 = arith.constant 0 : i32
    %c0_i32_1 = arith.constant 0 : i32
    return %c0_i32, %c0_i32_0 : i32, i32
  }
  func.func @transform_6(%arg0: i32) -> (i32, i32) {
    %c0_i32 = arith.constant 0 : i32
    %c0_i32_0 = arith.constant 0 : i32
    %c0_i32_1 = arith.constant 0 : i32
    return %c0_i32, %c0_i32_0 : i32, i32
  }
  func.func @transform_7(%arg0: i32) -> (i32, i32) {
    %c0_i32 = arith.constant 0 : i32
    %c0_i32_0 = arith.constant 0 : i32
    %c0_i32_1 = arith.constant 0 : i32
    return %c0_i32, %c0_i32_0 : i32, i32
  }
  func.func @transform_8(%arg0: i32) -> (i32, i32) {
    %c0_i32 = arith.constant 0 : i32
    %c0_i32_0 = arith.constant 0 : i32
    %c0_i32_1 = arith.constant 0 : i32
    return %c0_i32, %c0_i32_0 : i32, i32
  }
  func.func @transform_9(%arg0: i32) -> (i32, i32) {
    %c0_i32 = arith.constant 0 : i32
    %c0_i32_0 = arith.constant 0 : i32
    %c0_i32_1 = arith.constant 0 : i32
    return %c0_i32, %c0_i32_0 : i32, i32
  }
  func.func @transform_10(%arg0: i32) -> (i32, i32) {
    %c0_i32 = arith.constant 0 : i32
    %c0_i32_0 = arith.constant 0 : i32
    %c0_i32_1 = arith.constant 0 : i32
    return %c0_i32, %c0_i32_0 : i32, i32
  }
  func.func @transform_11(%arg0: i32) -> (i32, i32) {
    %c0_i32 = arith.constant 0 : i32
    %c0_i32_0 = arith.constant 0 : i32
    return %arg0, %c0_i32 : i32, i32
  }
}

</mosaic_0001>

<llo_original>
// kernel: _forward.1
$region0: #{_forward.1}
  #allocation0 [shape = 'u32[]', space=smem, size = 0x4, offset = 0x4, fixed_abs, tag = 'smem constant byte address 0x4 - core index']
  #allocation1 [shape = 'u32[72,128]{1,0:T(1,128)}', space=vmem, size = 0x9000, scoped, tag = 'internal scratch']
  %s0 = inlined_call_operand.vmem [shape: bf16[16,896], index: 0, kind: input, shape index: {}]
  %s1 = inlined_call_operand.hbm [shape: bf16[896,640], index: 1, kind: input, shape index: {}]
  %s2 = inlined_call_operand.hbm [shape: f32[1,640], index: 2, kind: input, shape index: {}]
  %s3 = inlined_call_operand.hbm [shape: bf16[640,384], index: 3, kind: input, shape index: {}]
  %s4 = inlined_call_operand.hbm [shape: f32[1,384], index: 4, kind: input, shape index: {}]
  %s5 = inlined_call_operand.hbm [shape: bf16[384,256], index: 5, kind: input, shape index: {}]
  %s6 = inlined_call_operand.hbm [shape: f32[1,256], index: 6, kind: input, shape index: {}]
  %s7 = inlined_call_operand.hbm [shape: bf16[256,128], index: 7, kind: input, shape index: {}]
  %s8 = inlined_call_operand.hbm [shape: f32[1,128], index: 8, kind: input, shape index: {}]
  %s9 = inlined_call_operand.hbm [shape: bf16[128,128], index: 9, kind: input, shape index: {}]
  %s10 = inlined_call_operand.hbm [shape: f32[1,128], index: 10, kind: input, shape index: {}]
  %s11 = inlined_call_operand.vmem [shape: bf16[16,128], index: 11, kind: output, shape index: {}]
  %s12 = sld [smem:[#allocation0]]
  $region94: #{_forward.1} parent=0
    _
  %s14 = ssub.s32 1, %s12
  %s15 = scalar_select 0, %s14, %s12
  $region1: #{_forward.1} parent=0
    #allocation2 [shape = 'u8[1146880]{0}', space=vmem, size = 0x118000, scoped, tag = 'input window, operand 1, single buffered']
    #allocation3 [shape = 's32[1]{0}', space=sflag, size = 0x4, scoped, tag = 'scoped memory for _forward.1']
    #allocation4 [shape = 'u8[2560]{0}', space=vmem, size = 0xc00, scoped, tag = 'input window, operand 2, single buffered']
    #allocation5 [shape = 's32[1]{0}', space=sflag, size = 0x4, scoped, tag = 'scoped memory for _forward.1']
    #allocation6 [shape = 'u8[491520]{0}', space=vmem, size = 0x78000, scoped, tag = 'input window, operand 3, single buffered']
    #allocation7 [shape = 'u8[1536]{0}', space=vmem, size = 0x800, scoped, tag = 'input window, operand 4, single buffered']
    #allocation8 [shape = 's32[1]{0}', space=sflag, size = 0x4, scoped, tag = 'scoped memory for _forward.1']
    #allocation9 [shape = 'u8[196608]{0}', space=vmem, size = 0x30000, scoped, tag = 'input window, operand 5, single buffered']
    #allocation10 [shape = 'u8[1024]{0}', space=vmem, size = 0x400, scoped, tag = 'input window, operand 6, single buffered']
    #allocation11 [shape = 's32[1]{0}', space=sflag, size = 0x4, scoped, tag = 'scoped memory for _forward.1']
    #allocation12 [shape = 'u8[65536]{0}', space=vmem, size = 0x10000, scoped, tag = 'input window, operand 7, single buffered']
    #allocation13 [shape = 'u8[512]{0}', space=vmem, size = 0x400, scoped, tag = 'input window, operand 8, single buffered']
    #allocation14 [shape = 's32[1]{0}', space=sflag, size = 0x4, scoped, tag = 'scoped memory for _forward.1']
    #allocation15 [shape = 'u8[32768]{0}', space=vmem, size = 0x8000, scoped, tag = 'input window, operand 9, single buffered']
    #allocation16 [shape = 'u8[512]{0}', space=vmem, size = 0x400, scoped, tag = 'input window, operand 10, single buffered']
    #allocation17 [shape = 's32[1]{0}', space=sflag, size = 0x4, scoped, tag = 'scoped memory for _forward.1']
    %16 = vsyncpa [#allocation3], 0
    %17 = vsyncpa [#allocation5], 0
    %18 = vsyncpa [#allocation8], 0
    %19 = vsyncpa [#allocation11], 0
    %20 = vsyncpa [#allocation14], 0
    %21 = vsyncpa [#allocation17], 0
    // Predicated region
    $region2: #{_forward.1} parent=1 // pred_check
      _
    $region3: #{_forward.1} parent=1 // pred_check_branch
      %23 = sbr.rel (0) target = $region5
    $region4: #{_forward.1} parent=1 // pred_region
      _
    $region5: #{_forward.1} parent=1 // pred_fallthru
      _
    // Predicated region
    $region6: #{_forward.1} parent=1 // pred_check
      _
    $region7: #{_forward.1} parent=1 // pred_check_branch
      %25 = sbr.rel (0) target = $region9
    $region8: #{_forward.1} parent=1 // pred_region
      %27 = vsyncadd [#allocation3], 0
      %s28 = sshll.u32 %s1, 4
      %s29 = int_to_ptr.hbm [resolvable:$true] %s28
      %s30 = sshll.u32 [#allocation2], 4
      %s31 = int_to_ptr.vmem [resolvable:$true] %s30
      %36 = dma.hbm_to_vmem [thread:$0]  %s29, 35840, %s31, [#allocation3], 320, 320, 20
    $region9: #{_forward.1} parent=1 // pred_fallthru
      _
    // Predicated region
    $region10: #{_forward.1} parent=1 // pred_check
      _
    $region11: #{_forward.1} parent=1 // pred_check_branch
      %38 = sbr.rel (0) target = $region13
    $region12: #{_forward.1} parent=1 // pred_region
      %40 = vsyncadd [#allocation5], 0
      %s42 = sshll.u32 %s2, 4
      %s43 = int_to_ptr.hbm [resolvable:$true] %s42
      %s44 = sshll.u32 [#allocation4], 4
      %s45 = int_to_ptr.vmem [resolvable:$true] %s44
      %47 = dma.hbm_to_vmem [thread:$0]  %s43, 80, %s45, [#allocation5]
    $region13: #{_forward.1} parent=1 // pred_fallthru
      _
    // Predicated region
    $region14: #{_forward.1} parent=1 // pred_check
      _
    $region15: #{_forward.1} parent=1 // pred_check_branch
      %49 = sbr.rel (0) target = $region17
    $region16: #{_forward.1} parent=1 // pred_region
      %51 = vsyncadd [#allocation5], 0
      %s52 = sshll.u32 %s3, 4
      %s53 = int_to_ptr.hbm [resolvable:$true] %s52
      %s54 = sshll.u32 [#allocation6], 4
      %s55 = int_to_ptr.vmem [resolvable:$true] %s54
      %60 = dma.hbm_to_vmem [thread:$0]  %s53, 15360, %s55, [#allocation5], 192, 192, 12
    $region17: #{_forward.1} parent=1 // pred_fallthru
      _
    // Predicated region
    $region18: #{_forward.1} parent=1 // pred_check
      _
    $region19: #{_forward.1} parent=1 // pred_check_branch
      %62 = sbr.rel (0) target = $region21
    $region20: #{_forward.1} parent=1 // pred_region
      %64 = vsyncadd [#allocation8], 0
      %s66 = sshll.u32 %s4, 4
      %s67 = int_to_ptr.hbm [resolvable:$true] %s66
      %s68 = sshll.u32 [#allocation7], 4
      %s69 = int_to_ptr.vmem [resolvable:$true] %s68
      %71 = dma.hbm_to_vmem [thread:$0]  %s67, 48, %s69, [#allocation8]
    $region21: #{_forward.1} parent=1 // pred_fallthru
      _
    // Predicated region
    $region22: #{_forward.1} parent=1 // pred_check
      _
    $region23: #{_forward.1} parent=1 // pred_check_branch
      %73 = sbr.rel (0) target = $region25
    $region24: #{_forward.1} parent=1 // pred_region
      %75 = vsyncadd [#allocation8], 0
      %s76 = sshll.u32 %s5, 4
      %s77 = int_to_ptr.hbm [resolvable:$true] %s76
      %s78 = sshll.u32 [#allocation9], 4
      %s79 = int_to_ptr.vmem [resolvable:$true] %s78
      %84 = dma.hbm_to_vmem [thread:$0]  %s77, 6144, %s79, [#allocation8], 128, 128, 8
    $region25: #{_forward.1} parent=1 // pred_fallthru
      _
    // Predicated region
    $region26: #{_forward.1} parent=1 // pred_check
      _
    $region27: #{_forward.1} parent=1 // pred_check_branch
      %86 = sbr.rel (0) target = $region29
    $region28: #{_forward.1} parent=1 // pred_region
      %88 = vsyncadd [#allocation11], 0
      %s90 = sshll.u32 %s6, 4
      %s91 = int_to_ptr.hbm [resolvable:$true] %s90
      %s92 = sshll.u32 [#allocation10], 4
      %s93 = int_to_ptr.vmem [resolvable:$true] %s92
      %95 = dma.hbm_to_vmem [thread:$0]  %s91, 32, %s93, [#allocation11]
    $region29: #{_forward.1} parent=1 // pred_fallthru
      _
    // Predicated region
    $region30: #{_forward.1} parent=1 // pred_check
      _
    $region31: #{_forward.1} parent=1 // pred_check_branch
      %97 = sbr.rel (0) target = $region33
    $region32: #{_forward.1} parent=1 // pred_region
      %99 = vsyncadd [#allocation11], 0
      %s100 = sshll.u32 %s7, 4
      %s101 = int_to_ptr.hbm [resolvable:$true] %s100
      %s102 = sshll.u32 [#allocation12], 4
      %s103 = int_to_ptr.vmem [resolvable:$true] %s102
      %108 = dma.hbm_to_vmem [thread:$0]  %s101, 2048, %s103, [#allocation11], 64, 64, 4
    $region33: #{_forward.1} parent=1 // pred_fallthru
      _
    // Predicated region
    $region34: #{_forward.1} parent=1 // pred_check
      _
    $region35: #{_forward.1} parent=1 // pred_check_branch
      %110 = sbr.rel (0) target = $region37
    $region36: #{_forward.1} parent=1 // pred_region
      %112 = vsyncadd [#allocation14], 0
      %s114 = sshll.u32 %s8, 4
      %s115 = int_to_ptr.hbm [resolvable:$true] %s114
      %s116 = sshll.u32 [#allocation13], 4
      %s117 = int_to_ptr.vmem [resolvable:$true] %s116
      %119 = dma.hbm_to_vmem [thread:$0]  %s115, 16, %s117, [#allocation14]
    $region37: #{_forward.1} parent=1 // pred_fallthru
      _
    // Predicated region
    $region38: #{_forward.1} parent=1 // pred_check
      _
    $region39: #{_forward.1} parent=1 // pred_check_branch
      %121 = sbr.rel (0) target = $region41
    $region40: #{_forward.1} parent=1 // pred_region
      %123 = vsyncadd [#allocation14], 0
      %s124 = sshll.u32 %s9, 4
      %s125 = int_to_ptr.hbm [resolvable:$true] %s124
      %s126 = sshll.u32 [#allocation15], 4
      %s127 = int_to_ptr.vmem [resolvable:$true] %s126
      %132 = dma.hbm_to_vmem [thread:$0]  %s125, 1024, %s127, [#allocation14], 64, 64, 4
    $region41: #{_forward.1} parent=1 // pred_fallthru
      _
    // Predicated region
    $region42: #{_forward.1} parent=1 // pred_check
      _
    $region43: #{_forward.1} parent=1 // pred_check_branch
      %134 = sbr.rel (0) target = $region45
    $region44: #{_forward.1} parent=1 // pred_region
      %136 = vsyncadd [#allocation17], 0
      %s138 = sshll.u32 %s10, 4
      %s139 = int_to_ptr.hbm [resolvable:$true] %s138
      %s140 = sshll.u32 [#allocation16], 4
      %s141 = int_to_ptr.vmem [resolvable:$true] %s140
      %143 = dma.hbm_to_vmem [thread:$0]  %s139, 16, %s141, [#allocation17]
    $region45: #{_forward.1} parent=1 // pred_fallthru
      _
    // Predicated region
    $region46: #{_forward.1} parent=1 // pred_check
      _
    $region47: #{_forward.1} parent=1 // pred_check_branch
      %145 = sbr.rel (0) target = $region49
    $region48: #{_forward.1} parent=1 // pred_region
      %147 = dma.done [#allocation3], 35840
    $region49: #{_forward.1} parent=1 // pred_fallthru
      _
    // Predicated region
    $region50: #{_forward.1} parent=1 // pred_check
      _
    $region51: #{_forward.1} parent=1 // pred_check_branch
      %149 = sbr.rel (0) target = $region53
    $region52: #{_forward.1} parent=1 // pred_region
      %151 = dma.done [#allocation5], 80
    $region53: #{_forward.1} parent=1 // pred_fallthru
      _
    // Predicated region
    $region54: #{_forward.1} parent=1 // pred_check
      _
    $region55: #{_forward.1} parent=1 // pred_check_branch
      %153 = sbr.rel (0) target = $region57
    $region56: #{_forward.1} parent=1 // pred_region
      %155 = dma.done [#allocation5], 15360
    $region57: #{_forward.1} parent=1 // pred_fallthru
      _
    // Predicated region
    $region58: #{_forward.1} parent=1 // pred_check
      _
    $region59: #{_forward.1} parent=1 // pred_check_branch
      %157 = sbr.rel (0) target = $region61
    $region60: #{_forward.1} parent=1 // pred_region
      %159 = dma.done [#allocation8], 48
    $region61: #{_forward.1} parent=1 // pred_fallthru
      _
    // Predicated region
    $region62: #{_forward.1} parent=1 // pred_check
      _
    $region63: #{_forward.1} parent=1 // pred_check_branch
      %161 = sbr.rel (0) target = $region65
    $region64: #{_forward.1} parent=1 // pred_region
      %163 = dma.done [#allocation8], 6144
    $region65: #{_forward.1} parent=1 // pred_fallthru
      _
    // Predicated region
    $region66: #{_forward.1} parent=1 // pred_check
      _
    $region67: #{_forward.1} parent=1 // pred_check_branch
      %165 = sbr.rel (0) target = $region69
    $region68: #{_forward.1} parent=1 // pred_region
      %167 = dma.done [#allocation11], 32
    $region69: #{_forward.1} parent=1 // pred_fallthru
      _
    // Predicated region
    $region70: #{_forward.1} parent=1 // pred_check
      _
    $region71: #{_forward.1} parent=1 // pred_check_branch
      %169 = sbr.rel (0) target = $region73
    $region72: #{_forward.1} parent=1 // pred_region
      %171 = dma.done [#allocation11], 2048
    $region73: #{_forward.1} parent=1 // pred_fallthru
      _
    // Predicated region
    $region74: #{_forward.1} parent=1 // pred_check
      _
    $region75: #{_forward.1} parent=1 // pred_check_branch
      %173 = sbr.rel (0) target = $region77
    $region76: #{_forward.1} parent=1 // pred_region
      %175 = dma.done [#allocation14], 16
    $region77: #{_forward.1} parent=1 // pred_fallthru
      _
    // Predicated region
    $region78: #{_forward.1} parent=1 // pred_check
      _
    $region79: #{_forward.1} parent=1 // pred_check_branch
      %177 = sbr.rel (0) target = $region81
    $region80: #{_forward.1} parent=1 // pred_region
      %179 = dma.done [#allocation14], 1024
    $region81: #{_forward.1} parent=1 // pred_fallthru
      _
    // Predicated region
    $region82: #{_forward.1} parent=1 // pred_check
      _
    $region83: #{_forward.1} parent=1 // pred_check_branch
      %181 = sbr.rel (0) target = $region85
    $region84: #{_forward.1} parent=1 // pred_region
      %183 = dma.done [#allocation17], 16
    $region85: #{_forward.1} parent=1 // pred_fallthru
      _
    %v184 = vld [vmem:[%s0] sm:$0xff]
    %v185 = vld [vmem:[%s0 + $0x8] sm:$0xff]
    %v186 = vld [vmem:[%s0 + $0x10] sm:$0xff]
    %v187 = vld [vmem:[%s0 + $0x18] sm:$0xf]
    %v188 = vld [vmem:[%s0 + $0x1c] sm:$0xff]
    %v189 = vld [vmem:[%s0 + $0x24] sm:$0xff]
    %v190 = vld [vmem:[%s0 + $0x2c] sm:$0xff]
    %v191 = vld [vmem:[%s0 + $0x34] sm:$0xf]
    %v192 = vld [vmem:[#allocation2] sm:$0xff]
    %v193 = vld [vmem:[#allocation2 + $0x8] sm:$0xff]
    %v194 = vld [vmem:[#allocation2 + $0x10] sm:$0xf]
    %v195 = vld [vmem:[#allocation2 + $0x14] sm:$0xff]
    %v196 = vld [vmem:[#allocation2 + $0x1c] sm:$0xff]
    %v197 = vld [vmem:[#allocation2 + $0x24] sm:$0xf]
    %v198 = vld [vmem:[#allocation2 + $0x28] sm:$0xff]
    %v199 = vld [vmem:[#allocation2 + $0x30] sm:$0xff]
    %v200 = vld [vmem:[#allocation2 + $0x38] sm:$0xf]
    %v201 = vld [vmem:[#allocation2 + $0x3c] sm:$0xff]
    %v202 = vld [vmem:[#allocation2 + $0x44] sm:$0xff]
    %v203 = vld [vmem:[#allocation2 + $0x4c] sm:$0xf]
    %v204 = vld [vmem:[#allocation2 + $0x50] sm:$0xff]
    %v205 = vld [vmem:[#allocation2 + $0x58] sm:$0xff]
    %v206 = vld [vmem:[#allocation2 + $0x60] sm:$0xf]
    %v207 = vld [vmem:[#allocation2 + $0x64] sm:$0xff]
    %v208 = vld [vmem:[#allocation2 + $0x6c] sm:$0xff]
    %v209 = vld [vmem:[#allocation2 + $0x74] sm:$0xf]
    %v210 = vld [vmem:[#allocation2 + $0x78] sm:$0xff]
    %v211 = vld [vmem:[#allocation2 + $0x80] sm:$0xff]
    %v212 = vld [vmem:[#allocation2 + $0x88] sm:$0xf]
    %v213 = vld [vmem:[#allocation2 + $0x8c] sm:$0xff]
    %v214 = vld [vmem:[#allocation2 + $0x94] sm:$0xff]
    %v215 = vld [vmem:[#allocation2 + $0x9c] sm:$0xf]
    %v216 = vld [vmem:[#allocation2 + $0xa0] sm:$0xff]
    %v217 = vld [vmem:[#allocation2 + $0xa8] sm:$0xff]
    %v218 = vld [vmem:[#allocation2 + $0xb0] sm:$0xf]
    %v219 = vld [vmem:[#allocation2 + $0xb4] sm:$0xff]
    %v220 = vld [vmem:[#allocation2 + $0xbc] sm:$0xff]
    %v221 = vld [vmem:[#allocation2 + $0xc4] sm:$0xf]
    %v222 = vld [vmem:[#allocation2 + $0xc8] sm:$0xff]
    %v223 = vld [vmem:[#allocation2 + $0xd0] sm:$0xff]
    %v224 = vld [vmem:[#allocation2 + $0xd8] sm:$0xf]
    %v225 = vld [vmem:[#allocation2 + $0xdc] sm:$0xff]
    %v226 = vld [vmem:[#allocation2 + $0xe4] sm:$0xff]
    %v227 = vld [vmem:[#allocation2 + $0xec] sm:$0xf]
    %v228 = vld [vmem:[#allocation2 + $0xf0] sm:$0xff]
    %v229 = vld [vmem:[#allocation2 + $0xf8] sm:$0xff]
    %v230 = vld [vmem:[#allocation2 + $0x100] sm:$0xf]
    %v231 = vld [vmem:[#allocation2 + $0x104] sm:$0xff]
    %v232 = vld [vmem:[#allocation2 + $0x10c] sm:$0xff]
    %v233 = vld [vmem:[#allocation2 + $0x114] sm:$0xf]
    %v234 = vld [vmem:[#allocation2 + $0x118] sm:$0xff]
    %v235 = vld [vmem:[#allocation2 + $0x120] sm:$0xff]
    %v236 = vld [vmem:[#allocation2 + $0x128] sm:$0xf]
    %v237 = vld [vmem:[#allocation2 + $0x12c] sm:$0xff]
    %v238 = vld [vmem:[#allocation2 + $0x134] sm:$0xff]
    %v239 = vld [vmem:[#allocation2 + $0x13c] sm:$0xf]
    %v240 = vld [vmem:[#allocation2 + $0x140] sm:$0xff]
    %v241 = vld [vmem:[#allocation2 + $0x148] sm:$0xff]
    %v242 = vld [vmem:[#allocation2 + $0x150] sm:$0xf]
    %v243 = vld [vmem:[#allocation2 + $0x154] sm:$0xff]
    %v244 = vld [vmem:[#allocation2 + $0x15c] sm:$0xff]
    %v245 = vld [vmem:[#allocation2 + $0x164] sm:$0xf]
    %v246 = vld [vmem:[#allocation2 + $0x168] sm:$0xff]
    %v247 = vld [vmem:[#allocation2 + $0x170] sm:$0xff]
    %v248 = vld [vmem:[#allocation2 + $0x178] sm:$0xf]
    %v249 = vld [vmem:[#allocation2 + $0x17c] sm:$0xff]
    %v250 = vld [vmem:[#allocation2 + $0x184] sm:$0xff]
    %v251 = vld [vmem:[#allocation2 + $0x18c] sm:$0xf]
    %v252 = vld [vmem:[#allocation2 + $0x190] sm:$0xff]
    %v253 = vld [vmem:[#allocation2 + $0x198] sm:$0xff]
    %v254 = vld [vmem:[#allocation2 + $0x1a0] sm:$0xf]
    %v255 = vld [vmem:[#allocation2 + $0x1a4] sm:$0xff]
    %v256 = vld [vmem:[#allocation2 + $0x1ac] sm:$0xff]
    %v257 = vld [vmem:[#allocation2 + $0x1b4] sm:$0xf]
    %v258 = vld [vmem:[#allocation2 + $0x1b8] sm:$0xff]
    %v259 = vld [vmem:[#allocation2 + $0x1c0] sm:$0xff]
    %v260 = vld [vmem:[#allocation2 + $0x1c8] sm:$0xf]
    %v261 = vld [vmem:[#allocation2 + $0x1cc] sm:$0xff]
    %v262 = vld [vmem:[#allocation2 + $0x1d4] sm:$0xff]
    %v263 = vld [vmem:[#allocation2 + $0x1dc] sm:$0xf]
    %v264 = vld [vmem:[#allocation2 + $0x1e0] sm:$0xff]
    %v265 = vld [vmem:[#allocation2 + $0x1e8] sm:$0xff]
    %v266 = vld [vmem:[#allocation2 + $0x1f0] sm:$0xf]
    %v267 = vld [vmem:[#allocation2 + $0x1f4] sm:$0xff]
    %v268 = vld [vmem:[#allocation2 + $0x1fc] sm:$0xff]
    %v269 = vld [vmem:[#allocation2 + $0x204] sm:$0xf]
    %v270 = vld [vmem:[#allocation2 + $0x208] sm:$0xff]
    %v271 = vld [vmem:[#allocation2 + $0x210] sm:$0xff]
    %v272 = vld [vmem:[#allocation2 + $0x218] sm:$0xf]
    %v273 = vld [vmem:[#allocation2 + $0x21c] sm:$0xff]
    %v274 = vld [vmem:[#allocation2 + $0x224] sm:$0xff]
    %v275 = vld [vmem:[#allocation2 + $0x22c] sm:$0xf]
    %v276 = vld [vmem:[#allocation2 + $0x230] sm:$0xff]
    %v277 = vld [vmem:[#allocation2 + $0x238] sm:$0xff]
    %v278 = vld [vmem:[#allocation2 + $0x240] sm:$0xf]
    %v279 = vld [vmem:[#allocation2 + $0x244] sm:$0xff]
    %v280 = vld [vmem:[#allocation2 + $0x24c] sm:$0xff]
    %v281 = vld [vmem:[#allocation2 + $0x254] sm:$0xf]
    %v282 = vld [vmem:[#allocation2 + $0x258] sm:$0xff]
    %v283 = vld [vmem:[#allocation2 + $0x260] sm:$0xff]
    %v284 = vld [vmem:[#allocation2 + $0x268] sm:$0xf]
    %v285 = vld [vmem:[#allocation2 + $0x26c] sm:$0xff]
    %v286 = vld [vmem:[#allocation2 + $0x274] sm:$0xff]
    %v287 = vld [vmem:[#allocation2 + $0x27c] sm:$0xf]
    %v288 = vld [vmem:[#allocation2 + $0x280] sm:$0xff]
    %v289 = vld [vmem:[#allocation2 + $0x288] sm:$0xff]
    %v290 = vld [vmem:[#allocation2 + $0x290] sm:$0xf]
    %v291 = vld [vmem:[#allocation2 + $0x294] sm:$0xff]
    %v292 = vld [vmem:[#allocation2 + $0x29c] sm:$0xff]
    %v293 = vld [vmem:[#allocation2 + $0x2a4] sm:$0xf]
    %v294 = vld [vmem:[#allocation2 + $0x2a8] sm:$0xff]
    %v295 = vld [vmem:[#allocation2 + $0x2b0] sm:$0xff]
    %v296 = vld [vmem:[#allocation2 + $0x2b8] sm:$0xf]
    %v297 = vld [vmem:[#allocation2 + $0x2bc] sm:$0xff]
    %v298 = vld [vmem:[#allocation2 + $0x2c4] sm:$0xff]
    %v299 = vld [vmem:[#allocation2 + $0x2cc] sm:$0xf]
    %v300 = vld [vmem:[#allocation2 + $0x2d0] sm:$0xff]
    %v301 = vld [vmem:[#allocation2 + $0x2d8] sm:$0xff]
    %v302 = vld [vmem:[#allocation2 + $0x2e0] sm:$0xf]
    %v303 = vld [vmem:[#allocation2 + $0x2e4] sm:$0xff]
    %v304 = vld [vmem:[#allocation2 + $0x2ec] sm:$0xff]
    %v305 = vld [vmem:[#allocation2 + $0x2f4] sm:$0xf]
    %v306 = vld [vmem:[#allocation2 + $0x2f8] sm:$0xff]
    %v307 = vld [vmem:[#allocation2 + $0x300] sm:$0xff]
    %v308 = vld [vmem:[#allocation2 + $0x308] sm:$0xf]
    %v309 = vld [vmem:[#allocation2 + $0x30c] sm:$0xff]
    %v310 = vld [vmem:[#allocation2 + $0x314] sm:$0xff]
    %v311 = vld [vmem:[#allocation2 + $0x31c] sm:$0xf]
    %v312 = vld [vmem:[#allocation2 + $0x320] sm:$0xff]
    %v313 = vld [vmem:[#allocation2 + $0x328] sm:$0xff]
    %v314 = vld [vmem:[#allocation2 + $0x330] sm:$0xf]
    %v315 = vld [vmem:[#allocation2 + $0x334] sm:$0xff]
    %v316 = vld [vmem:[#allocation2 + $0x33c] sm:$0xff]
    %v317 = vld [vmem:[#allocation2 + $0x344] sm:$0xf]
    %v318 = vld [vmem:[#allocation2 + $0x348] sm:$0xff]
    %v319 = vld [vmem:[#allocation2 + $0x350] sm:$0xff]
    %v320 = vld [vmem:[#allocation2 + $0x358] sm:$0xf]
    %v321 = vld [vmem:[#allocation2 + $0x35c] sm:$0xff]
    %v322 = vld [vmem:[#allocation2 + $0x364] sm:$0xff]
    %v323 = vld [vmem:[#allocation2 + $0x36c] sm:$0xf]
    %v324 = vld [vmem:[#allocation2 + $0x370] sm:$0xff]
    %v325 = vld [vmem:[#allocation2 + $0x378] sm:$0xff]
    %v326 = vld [vmem:[#allocation2 + $0x380] sm:$0xf]
    %v327 = vld [vmem:[#allocation2 + $0x384] sm:$0xff]
    %v328 = vld [vmem:[#allocation2 + $0x38c] sm:$0xff]
    %v329 = vld [vmem:[#allocation2 + $0x394] sm:$0xf]
    %v330 = vld [vmem:[#allocation2 + $0x398] sm:$0xff]
    %v331 = vld [vmem:[#allocation2 + $0x3a0] sm:$0xff]
    %v332 = vld [vmem:[#allocation2 + $0x3a8] sm:$0xf]
    %v333 = vld [vmem:[#allocation2 + $0x3ac] sm:$0xff]
    %v334 = vld [vmem:[#allocation2 + $0x3b4] sm:$0xff]
    %v335 = vld [vmem:[#allocation2 + $0x3bc] sm:$0xf]
    %v336 = vld [vmem:[#allocation2 + $0x3c0] sm:$0xff]
    %v337 = vld [vmem:[#allocation2 + $0x3c8] sm:$0xff]
    %v338 = vld [vmem:[#allocation2 + $0x3d0] sm:$0xf]
    %v339 = vld [vmem:[#allocation2 + $0x3d4] sm:$0xff]
    %v340 = vld [vmem:[#allocation2 + $0x3dc] sm:$0xff]
    %v341 = vld [vmem:[#allocation2 + $0x3e4] sm:$0xf]
    %v342 = vld [vmem:[#allocation2 + $0x3e8] sm:$0xff]
    %v343 = vld [vmem:[#allocation2 + $0x3f0] sm:$0xff]
    %v344 = vld [vmem:[#allocation2 + $0x3f8] sm:$0xf]
    %v345 = vld [vmem:[#allocation2 + $0x3fc] sm:$0xff]
    %v346 = vld [vmem:[#allocation2 + $0x404] sm:$0xff]
    %v347 = vld [vmem:[#allocation2 + $0x40c] sm:$0xf]
    %v348 = vld [vmem:[#allocation2 + $0x410] sm:$0xff]
    %v349 = vld [vmem:[#allocation2 + $0x418] sm:$0xff]
    %v350 = vld [vmem:[#allocation2 + $0x420] sm:$0xf]
    %v351 = vld [vmem:[#allocation2 + $0x424] sm:$0xff]
    %v352 = vld [vmem:[#allocation2 + $0x42c] sm:$0xff]
    %v353 = vld [vmem:[#allocation2 + $0x434] sm:$0xf]
    %v354 = vld [vmem:[#allocation2 + $0x438] sm:$0xff]
    %v355 = vld [vmem:[#allocation2 + $0x440] sm:$0xff]
    %v356 = vld [vmem:[#allocation2 + $0x448] sm:$0xf]
    %v357 = vld [vmem:[#allocation2 + $0x44c] sm:$0xff]
    %v358 = vld [vmem:[#allocation2 + $0x454] sm:$0xff]
    %v359 = vld [vmem:[#allocation2 + $0x45c] sm:$0xf]
    %v360 = vld [vmem:[#allocation2 + $0x460] sm:$0xff]
    %v361 = vld [vmem:[#allocation2 + $0x468] sm:$0xff]
    %v362 = vld [vmem:[#allocation2 + $0x470] sm:$0xf]
    %v363 = vld [vmem:[#allocation2 + $0x474] sm:$0xff]
    %v364 = vld [vmem:[#allocation2 + $0x47c] sm:$0xff]
    %v365 = vld [vmem:[#allocation2 + $0x484] sm:$0xf]
    %v366 = vld [vmem:[#allocation2 + $0x488] sm:$0xff]
    %v367 = vld [vmem:[#allocation2 + $0x490] sm:$0xff]
    %v368 = vld [vmem:[#allocation2 + $0x498] sm:$0xf]
    %v369 = vld [vmem:[#allocation2 + $0x49c] sm:$0xff]
    %v370 = vld [vmem:[#allocation2 + $0x4a4] sm:$0xff]
    %v371 = vld [vmem:[#allocation2 + $0x4ac] sm:$0xf]
    %v372 = vld [vmem:[#allocation2 + $0x4b0] sm:$0xff]
    %v373 = vld [vmem:[#allocation2 + $0x4b8] sm:$0xff]
    %v374 = vld [vmem:[#allocation2 + $0x4c0] sm:$0xf]
    %v375 = vld [vmem:[#allocation2 + $0x4c4] sm:$0xff]
    %v376 = vld [vmem:[#allocation2 + $0x4cc] sm:$0xff]
    %v377 = vld [vmem:[#allocation2 + $0x4d4] sm:$0xf]
    %v378 = vld [vmem:[#allocation2 + $0x4d8] sm:$0xff]
    %v379 = vld [vmem:[#allocation2 + $0x4e0] sm:$0xff]
    %v380 = vld [vmem:[#allocation2 + $0x4e8] sm:$0xf]
    %v381 = vld [vmem:[#allocation2 + $0x4ec] sm:$0xff]
    %v382 = vld [vmem:[#allocation2 + $0x4f4] sm:$0xff]
    %v383 = vld [vmem:[#allocation2 + $0x4fc] sm:$0xf]
    %v384 = vld [vmem:[#allocation2 + $0x500] sm:$0xff]
    %v385 = vld [vmem:[#allocation2 + $0x508] sm:$0xff]
    %v386 = vld [vmem:[#allocation2 + $0x510] sm:$0xf]
    %v387 = vld [vmem:[#allocation2 + $0x514] sm:$0xff]
    %v388 = vld [vmem:[#allocation2 + $0x51c] sm:$0xff]
    %v389 = vld [vmem:[#allocation2 + $0x524] sm:$0xf]
    %v390 = vld [vmem:[#allocation2 + $0x528] sm:$0xff]
    %v391 = vld [vmem:[#allocation2 + $0x530] sm:$0xff]
    %v392 = vld [vmem:[#allocation2 + $0x538] sm:$0xf]
    %v393 = vld [vmem:[#allocation2 + $0x53c] sm:$0xff]
    %v394 = vld [vmem:[#allocation2 + $0x544] sm:$0xff]
    %v395 = vld [vmem:[#allocation2 + $0x54c] sm:$0xf]
    %v396 = vld [vmem:[#allocation2 + $0x550] sm:$0xff]
    %v397 = vld [vmem:[#allocation2 + $0x558] sm:$0xff]
    %v398 = vld [vmem:[#allocation2 + $0x560] sm:$0xf]
    %v399 = vld [vmem:[#allocation2 + $0x564] sm:$0xff]
    %v400 = vld [vmem:[#allocation2 + $0x56c] sm:$0xff]
    %v401 = vld [vmem:[#allocation2 + $0x574] sm:$0xf]
    %v402 = vld [vmem:[#allocation2 + $0x578] sm:$0xff]
    %v403 = vld [vmem:[#allocation2 + $0x580] sm:$0xff]
    %v404 = vld [vmem:[#allocation2 + $0x588] sm:$0xf]
    %v405 = vld [vmem:[#allocation2 + $0x58c] sm:$0xff]
    %v406 = vld [vmem:[#allocation2 + $0x594] sm:$0xff]
    %v407 = vld [vmem:[#allocation2 + $0x59c] sm:$0xf]
    %v408 = vld [vmem:[#allocation2 + $0x5a0] sm:$0xff]
    %v409 = vld [vmem:[#allocation2 + $0x5a8] sm:$0xff]
    %v410 = vld [vmem:[#allocation2 + $0x5b0] sm:$0xf]
    %v411 = vld [vmem:[#allocation2 + $0x5b4] sm:$0xff]
    %v412 = vld [vmem:[#allocation2 + $0x5bc] sm:$0xff]
    %v413 = vld [vmem:[#allocation2 + $0x5c4] sm:$0xf]
    %v414 = vld [vmem:[#allocation2 + $0x5c8] sm:$0xff]
    %v415 = vld [vmem:[#allocation2 + $0x5d0] sm:$0xff]
    %v416 = vld [vmem:[#allocation2 + $0x5d8] sm:$0xf]
    %v417 = vld [vmem:[#allocation2 + $0x5dc] sm:$0xff]
    %v418 = vld [vmem:[#allocation2 + $0x5e4] sm:$0xff]
    %v419 = vld [vmem:[#allocation2 + $0x5ec] sm:$0xf]
    %v420 = vld [vmem:[#allocation2 + $0x5f0] sm:$0xff]
    %v421 = vld [vmem:[#allocation2 + $0x5f8] sm:$0xff]
    %v422 = vld [vmem:[#allocation2 + $0x600] sm:$0xf]
    %v423 = vld [vmem:[#allocation2 + $0x604] sm:$0xff]
    %v424 = vld [vmem:[#allocation2 + $0x60c] sm:$0xff]
    %v425 = vld [vmem:[#allocation2 + $0x614] sm:$0xf]
    %v426 = vld [vmem:[#allocation2 + $0x618] sm:$0xff]
    %v427 = vld [vmem:[#allocation2 + $0x620] sm:$0xff]
    %v428 = vld [vmem:[#allocation2 + $0x628] sm:$0xf]
    %v429 = vld [vmem:[#allocation2 + $0x62c] sm:$0xff]
    %v430 = vld [vmem:[#allocation2 + $0x634] sm:$0xff]
    %v431 = vld [vmem:[#allocation2 + $0x63c] sm:$0xf]
    %v432 = vld [vmem:[#allocation2 + $0x640] sm:$0xff]
    %v433 = vld [vmem:[#allocation2 + $0x648] sm:$0xff]
    %v434 = vld [vmem:[#allocation2 + $0x650] sm:$0xf]
    %v435 = vld [vmem:[#allocation2 + $0x654] sm:$0xff]
    %v436 = vld [vmem:[#allocation2 + $0x65c] sm:$0xff]
    %v437 = vld [vmem:[#allocation2 + $0x664] sm:$0xf]
    %v438 = vld [vmem:[#allocation2 + $0x668] sm:$0xff]
    %v439 = vld [vmem:[#allocation2 + $0x670] sm:$0xff]
    %v440 = vld [vmem:[#allocation2 + $0x678] sm:$0xf]
    %v441 = vld [vmem:[#allocation2 + $0x67c] sm:$0xff]
    %v442 = vld [vmem:[#allocation2 + $0x684] sm:$0xff]
    %v443 = vld [vmem:[#allocation2 + $0x68c] sm:$0xf]
    %v444 = vld [vmem:[#allocation2 + $0x690] sm:$0xff]
    %v445 = vld [vmem:[#allocation2 + $0x698] sm:$0xff]
    %v446 = vld [vmem:[#allocation2 + $0x6a0] sm:$0xf]
    %v447 = vld [vmem:[#allocation2 + $0x6a4] sm:$0xff]
    %v448 = vld [vmem:[#allocation2 + $0x6ac] sm:$0xff]
    %v449 = vld [vmem:[#allocation2 + $0x6b4] sm:$0xf]
    %v450 = vld [vmem:[#allocation2 + $0x6b8] sm:$0xff]
    %v451 = vld [vmem:[#allocation2 + $0x6c0] sm:$0xff]
    %v452 = vld [vmem:[#allocation2 + $0x6c8] sm:$0xf]
    %v453 = vld [vmem:[#allocation2 + $0x6cc] sm:$0xff]
    %v454 = vld [vmem:[#allocation2 + $0x6d4] sm:$0xff]
    %v455 = vld [vmem:[#allocation2 + $0x6dc] sm:$0xf]
    %v456 = vld [vmem:[#allocation2 + $0x6e0] sm:$0xff]
    %v457 = vld [vmem:[#allocation2 + $0x6e8] sm:$0xff]
    %v458 = vld [vmem:[#allocation2 + $0x6f0] sm:$0xf]
    %v459 = vld [vmem:[#allocation2 + $0x6f4] sm:$0xff]
    %v460 = vld [vmem:[#allocation2 + $0x6fc] sm:$0xff]
    %v461 = vld [vmem:[#allocation2 + $0x704] sm:$0xf]
    %v462 = vld [vmem:[#allocation2 + $0x708] sm:$0xff]
    %v463 = vld [vmem:[#allocation2 + $0x710] sm:$0xff]
    %v464 = vld [vmem:[#allocation2 + $0x718] sm:$0xf]
    %v465 = vld [vmem:[#allocation2 + $0x71c] sm:$0xff]
    %v466 = vld [vmem:[#allocation2 + $0x724] sm:$0xff]
    %v467 = vld [vmem:[#allocation2 + $0x72c] sm:$0xf]
    %v468 = vld [vmem:[#allocation2 + $0x730] sm:$0xff]
    %v469 = vld [vmem:[#allocation2 + $0x738] sm:$0xff]
    %v470 = vld [vmem:[#allocation2 + $0x740] sm:$0xf]
    %v471 = vld [vmem:[#allocation2 + $0x744] sm:$0xff]
    %v472 = vld [vmem:[#allocation2 + $0x74c] sm:$0xff]
    %v473 = vld [vmem:[#allocation2 + $0x754] sm:$0xf]
    %v474 = vld [vmem:[#allocation2 + $0x758] sm:$0xff]
    %v475 = vld [vmem:[#allocation2 + $0x760] sm:$0xff]
    %v476 = vld [vmem:[#allocation2 + $0x768] sm:$0xf]
    %v477 = vld [vmem:[#allocation2 + $0x76c] sm:$0xff]
    %v478 = vld [vmem:[#allocation2 + $0x774] sm:$0xff]
    %v479 = vld [vmem:[#allocation2 + $0x77c] sm:$0xf]
    %v480 = vld [vmem:[#allocation2 + $0x780] sm:$0xff]
    %v481 = vld [vmem:[#allocation2 + $0x788] sm:$0xff]
    %v482 = vld [vmem:[#allocation2 + $0x790] sm:$0xf]
    %v483 = vld [vmem:[#allocation2 + $0x794] sm:$0xff]
    %v484 = vld [vmem:[#allocation2 + $0x79c] sm:$0xff]
    %v485 = vld [vmem:[#allocation2 + $0x7a4] sm:$0xf]
    %v486 = vld [vmem:[#allocation2 + $0x7a8] sm:$0xff]
    %v487 = vld [vmem:[#allocation2 + $0x7b0] sm:$0xff]
    %v488 = vld [vmem:[#allocation2 + $0x7b8] sm:$0xf]
    %v489 = vld [vmem:[#allocation2 + $0x7bc] sm:$0xff]
    %v490 = vld [vmem:[#allocation2 + $0x7c4] sm:$0xff]
    %v491 = vld [vmem:[#allocation2 + $0x7cc] sm:$0xf]
    %v492 = vld [vmem:[#allocation2 + $0x7d0] sm:$0xff]
    %v493 = vld [vmem:[#allocation2 + $0x7d8] sm:$0xff]
    %v494 = vld [vmem:[#allocation2 + $0x7e0] sm:$0xf]
    %v495 = vld [vmem:[#allocation2 + $0x7e4] sm:$0xff]
    %v496 = vld [vmem:[#allocation2 + $0x7ec] sm:$0xff]
    %v497 = vld [vmem:[#allocation2 + $0x7f4] sm:$0xf]
    %v498 = vld [vmem:[#allocation2 + $0x7f8] sm:$0xff]
    %v499 = vld [vmem:[#allocation2 + $0x800] sm:$0xff]
    %v500 = vld [vmem:[#allocation2 + $0x808] sm:$0xf]
    %v501 = vld [vmem:[#allocation2 + $0x80c] sm:$0xff]
    %v502 = vld [vmem:[#allocation2 + $0x814] sm:$0xff]
    %v503 = vld [vmem:[#allocation2 + $0x81c] sm:$0xf]
    %v504 = vld [vmem:[#allocation2 + $0x820] sm:$0xff]
    %v505 = vld [vmem:[#allocation2 + $0x828] sm:$0xff]
    %v506 = vld [vmem:[#allocation2 + $0x830] sm:$0xf]
    %v507 = vld [vmem:[#allocation2 + $0x834] sm:$0xff]
    %v508 = vld [vmem:[#allocation2 + $0x83c] sm:$0xff]
    %v509 = vld [vmem:[#allocation2 + $0x844] sm:$0xf]
    %v510 = vld [vmem:[#allocation2 + $0x848] sm:$0xff]
    %v511 = vld [vmem:[#allocation2 + $0x850] sm:$0xff]
    %v512 = vld [vmem:[#allocation2 + $0x858] sm:$0xf]
    %v513 = vld [vmem:[#allocation2 + $0x85c] sm:$0xff]
    %v514 = vld [vmem:[#allocation2 + $0x864] sm:$0xff]
    %v515 = vld [vmem:[#allocation2 + $0x86c] sm:$0xf]
    %v516 = vld [vmem:[#allocation2 + $0x870] sm:$0xff]
    %v517 = vld [vmem:[#allocation2 + $0x878] sm:$0xff]
    %v518 = vld [vmem:[#allocation2 + $0x880] sm:$0xf]
    %v519 = vld [vmem:[#allocation2 + $0x884] sm:$0xff]
    %v520 = vld [vmem:[#allocation2 + $0x88c] sm:$0xff]
    %v521 = vld [vmem:[#allocation2 + $0x894] sm:$0xf]
    %v522 = vld [vmem:[#allocation2 + $0x898] sm:$0xff]
    %v523 = vld [vmem:[#allocation2 + $0x8a0] sm:$0xff]
    %v524 = vld [vmem:[#allocation2 + $0x8a8] sm:$0xf]
    %v525 = vld [vmem:[#allocation2 + $0x8ac] sm:$0xff]
    %v526 = vld [vmem:[#allocation2 + $0x8b4] sm:$0xff]
    %v527 = vld [vmem:[#allocation2 + $0x8bc] sm:$0xf]
    %v528 = vld [vmem:[#allocation4] sm:$0x1f]
    %v530 = vperm.slane %v528, 0
    %v531 = vperm.slane %v528, 1
    %v532 = vperm.slane %v528, 2
    %v533 = vperm.slane %v528, 3
    %v534 = vperm.slane %v528, 4
    %v548 = vunpack.c.l.b16 %v184
    %v549 = vunpack.c.h.b16 %v184
    %v550 = vunpack.c.l.b16 %v185
    %v551 = vunpack.c.h.b16 %v185
    %v552 = vunpack.c.l.b16 %v186
    %v553 = vunpack.c.h.b16 %v186
    %v554 = vunpack.c.l.b16 %v187
    %v555 = vunpack.c.l.b16 %v188
    %v556 = vunpack.c.h.b16 %v188
    %v557 = vunpack.c.l.b16 %v189
    %v558 = vunpack.c.h.b16 %v189
    %v559 = vunpack.c.l.b16 %v190
    %v560 = vunpack.c.h.b16 %v190
    %v561 = vunpack.c.l.b16 %v191
    %v562 = vpack.c.b16 %v555, %v548
    %v563 = vpack.c.b16 %v556, %v549
    %v564 = vpack.c.b16 %v557, %v550
    %v565 = vpack.c.b16 %v558, %v551
    %v566 = vpack.c.b16 %v559, %v552
    %v567 = vpack.c.b16 %v560, %v553
    %v568 = vpack.c.b16 %v561, %v554
    %v912 = vunpack.c.l.b16 %v192
    %v913 = vunpack.c.h.b16 %v192
    %v914 = vunpack.c.l.b16 %v193
    %v915 = vunpack.c.h.b16 %v193
    %v916 = vunpack.c.l.b16 %v194
    %v917 = vunpack.c.l.b16 %v195
    %v918 = vunpack.c.h.b16 %v195
    %v919 = vunpack.c.l.b16 %v196
    %v920 = vunpack.c.h.b16 %v196
    %v921 = vunpack.c.l.b16 %v197
    %v922 = vunpack.c.l.b16 %v198
    %v923 = vunpack.c.h.b16 %v198
    %v924 = vunpack.c.l.b16 %v199
    %v925 = vunpack.c.h.b16 %v199
    %v926 = vunpack.c.l.b16 %v200
    %v927 = vunpack.c.l.b16 %v201
    %v928 = vunpack.c.h.b16 %v201
    %v929 = vunpack.c.l.b16 %v202
    %v930 = vunpack.c.h.b16 %v202
    %v931 = vunpack.c.l.b16 %v203
    %v932 = vunpack.c.l.b16 %v204
    %v933 = vunpack.c.h.b16 %v204
    %v934 = vunpack.c.l.b16 %v205
    %v935 = vunpack.c.h.b16 %v205
    %v936 = vunpack.c.l.b16 %v206
    %v937 = vunpack.c.l.b16 %v207
    %v938 = vunpack.c.h.b16 %v207
    %v939 = vunpack.c.l.b16 %v208
    %v940 = vunpack.c.h.b16 %v208
    %v941 = vunpack.c.l.b16 %v209
    %v942 = vunpack.c.l.b16 %v210
    %v943 = vunpack.c.h.b16 %v210
    %v944 = vunpack.c.l.b16 %v211
    %v945 = vunpack.c.h.b16 %v211
    %v946 = vunpack.c.l.b16 %v212
    %v947 = vunpack.c.l.b16 %v213
    %v948 = vunpack.c.h.b16 %v213
    %v949 = vunpack.c.l.b16 %v214
    %v950 = vunpack.c.h.b16 %v214
    %v951 = vunpack.c.l.b16 %v215
    %v952 = vunpack.c.l.b16 %v216
    %v953 = vunpack.c.h.b16 %v216
    %v954 = vunpack.c.l.b16 %v217
    %v955 = vunpack.c.h.b16 %v217
    %v956 = vunpack.c.l.b16 %v218
    %v957 = vunpack.c.l.b16 %v219
    %v958 = vunpack.c.h.b16 %v219
    %v959 = vunpack.c.l.b16 %v220
    %v960 = vunpack.c.h.b16 %v220
    %v961 = vunpack.c.l.b16 %v221
    %v962 = vunpack.c.l.b16 %v222
    %v963 = vunpack.c.h.b16 %v222
    %v964 = vunpack.c.l.b16 %v223
    %v965 = vunpack.c.h.b16 %v223
    %v966 = vunpack.c.l.b16 %v224
    %v967 = vunpack.c.l.b16 %v225
    %v968 = vunpack.c.h.b16 %v225
    %v969 = vunpack.c.l.b16 %v226
    %v970 = vunpack.c.h.b16 %v226
    %v971 = vunpack.c.l.b16 %v227
    %v972 = vunpack.c.l.b16 %v228
    %v973 = vunpack.c.h.b16 %v228
    %v974 = vunpack.c.l.b16 %v229
    %v975 = vunpack.c.h.b16 %v229
    %v976 = vunpack.c.l.b16 %v230
    %v977 = vunpack.c.l.b16 %v231
    %v978 = vunpack.c.h.b16 %v231
    %v979 = vunpack.c.l.b16 %v232
    %v980 = vunpack.c.h.b16 %v232
    %v981 = vunpack.c.l.b16 %v233
    %v982 = vunpack.c.l.b16 %v234
    %v983 = vunpack.c.h.b16 %v234
    %v984 = vunpack.c.l.b16 %v235
    %v985 = vunpack.c.h.b16 %v235
    %v986 = vunpack.c.l.b16 %v236
    %v987 = vunpack.c.l.b16 %v237
    %v988 = vunpack.c.h.b16 %v237
    %v989 = vunpack.c.l.b16 %v238
    %v990 = vunpack.c.h.b16 %v238
    %v991 = vunpack.c.l.b16 %v239
    %v992 = vunpack.c.l.b16 %v240
    %v993 = vunpack.c.h.b16 %v240
    %v994 = vunpack.c.l.b16 %v241
    %v995 = vunpack.c.h.b16 %v241
    %v996 = vunpack.c.l.b16 %v242
    %v997 = vunpack.c.l.b16 %v243
    %v998 = vunpack.c.h.b16 %v243
    %v999 = vunpack.c.l.b16 %v244
    %v1000 = vunpack.c.h.b16 %v244
    %v1001 = vunpack.c.l.b16 %v245
    %v1002 = vunpack.c.l.b16 %v246
    %v1003 = vunpack.c.h.b16 %v246
    %v1004 = vunpack.c.l.b16 %v247
    %v1005 = vunpack.c.h.b16 %v247
    %v1006 = vunpack.c.l.b16 %v248
    %v1007 = vunpack.c.l.b16 %v249
    %v1008 = vunpack.c.h.b16 %v249
    %v1009 = vunpack.c.l.b16 %v250
    %v1010 = vunpack.c.h.b16 %v250
    %v1011 = vunpack.c.l.b16 %v251
    %v1012 = vunpack.c.l.b16 %v252
    %v1013 = vunpack.c.h.b16 %v252
    %v1014 = vunpack.c.l.b16 %v253
    %v1015 = vunpack.c.h.b16 %v253
    %v1016 = vunpack.c.l.b16 %v254
    %v1017 = vunpack.c.l.b16 %v255
    %v1018 = vunpack.c.h.b16 %v255
    %v1019 = vunpack.c.l.b16 %v256
    %v1020 = vunpack.c.h.b16 %v256
    %v1021 = vunpack.c.l.b16 %v257
    %v1022 = vunpack.c.l.b16 %v258
    %v1023 = vunpack.c.h.b16 %v258
    %v1024 = vunpack.c.l.b16 %v259
    %v1025 = vunpack.c.h.b16 %v259
    %v1026 = vunpack.c.l.b16 %v260
    %v1027 = vunpack.c.l.b16 %v261
    %v1028 = vunpack.c.h.b16 %v261
    %v1029 = vunpack.c.l.b16 %v262
    %v1030 = vunpack.c.h.b16 %v262
    %v1031 = vunpack.c.l.b16 %v263
    %v1032 = vunpack.c.l.b16 %v264
    %v1033 = vunpack.c.h.b16 %v264
    %v1034 = vunpack.c.l.b16 %v265
    %v1035 = vunpack.c.h.b16 %v265
    %v1036 = vunpack.c.l.b16 %v266
    %v1037 = vunpack.c.l.b16 %v267
    %v1038 = vunpack.c.h.b16 %v267
    %v1039 = vunpack.c.l.b16 %v268
    %v1040 = vunpack.c.h.b16 %v268
    %v1041 = vunpack.c.l.b16 %v269
    %v1042 = vunpack.c.l.b16 %v270
    %v1043 = vunpack.c.h.b16 %v270
    %v1044 = vunpack.c.l.b16 %v271
    %v1045 = vunpack.c.h.b16 %v271
    %v1046 = vunpack.c.l.b16 %v272
    %v1047 = vunpack.c.l.b16 %v273
    %v1048 = vunpack.c.h.b16 %v273
    %v1049 = vunpack.c.l.b16 %v274
    %v1050 = vunpack.c.h.b16 %v274
    %v1051 = vunpack.c.l.b16 %v275
    %v1052 = vunpack.c.l.b16 %v276
    %v1053 = vunpack.c.h.b16 %v276
    %v1054 = vunpack.c.l.b16 %v277
    %v1055 = vunpack.c.h.b16 %v277
    %v1056 = vunpack.c.l.b16 %v278
    %v1057 = vunpack.c.l.b16 %v279
    %v1058 = vunpack.c.h.b16 %v279
    %v1059 = vunpack.c.l.b16 %v280
    %v1060 = vunpack.c.h.b16 %v280
    %v1061 = vunpack.c.l.b16 %v281
    %v1062 = vunpack.c.l.b16 %v282
    %v1063 = vunpack.c.h.b16 %v282
    %v1064 = vunpack.c.l.b16 %v283
    %v1065 = vunpack.c.h.b16 %v283
    %v1066 = vunpack.c.l.b16 %v284
    %v1067 = vunpack.c.l.b16 %v285
    %v1068 = vunpack.c.h.b16 %v285
    %v1069 = vunpack.c.l.b16 %v286
    %v1070 = vunpack.c.h.b16 %v286
    %v1071 = vunpack.c.l.b16 %v287
    %v1072 = vunpack.c.l.b16 %v288
    %v1073 = vunpack.c.h.b16 %v288
    %v1074 = vunpack.c.l.b16 %v289
    %v1075 = vunpack.c.h.b16 %v289
    %v1076 = vunpack.c.l.b16 %v290
    %v1077 = vunpack.c.l.b16 %v291
    %v1078 = vunpack.c.h.b16 %v291
    %v1079 = vunpack.c.l.b16 %v292
    %v1080 = vunpack.c.h.b16 %v292
    %v1081 = vunpack.c.l.b16 %v293
    %v1082 = vunpack.c.l.b16 %v294
    %v1083 = vunpack.c.h.b16 %v294
    %v1084 = vunpack.c.l.b16 %v295
    %v1085 = vunpack.c.h.b16 %v295
    %v1086 = vunpack.c.l.b16 %v296
    %v1087 = vunpack.c.l.b16 %v297
    %v1088 = vunpack.c.h.b16 %v297
    %v1089 = vunpack.c.l.b16 %v298
    %v1090 = vunpack.c.h.b16 %v298
    %v1091 = vunpack.c.l.b16 %v299
    %v1092 = vunpack.c.l.b16 %v300
    %v1093 = vunpack.c.h.b16 %v300
    %v1094 = vunpack.c.l.b16 %v301
    %v1095 = vunpack.c.h.b16 %v301
    %v1096 = vunpack.c.l.b16 %v302
    %v1097 = vunpack.c.l.b16 %v303
    %v1098 = vunpack.c.h.b16 %v303
    %v1099 = vunpack.c.l.b16 %v304
    %v1100 = vunpack.c.h.b16 %v304
    %v1101 = vunpack.c.l.b16 %v305
    %v1102 = vunpack.c.l.b16 %v306
    %v1103 = vunpack.c.h.b16 %v306
    %v1104 = vunpack.c.l.b16 %v307
    %v1105 = vunpack.c.h.b16 %v307
    %v1106 = vunpack.c.l.b16 %v308
    %v1107 = vunpack.c.l.b16 %v309
    %v1108 = vunpack.c.h.b16 %v309
    %v1109 = vunpack.c.l.b16 %v310
    %v1110 = vunpack.c.h.b16 %v310
    %v1111 = vunpack.c.l.b16 %v311
    %v1112 = vunpack.c.l.b16 %v312
    %v1113 = vunpack.c.h.b16 %v312
    %v1114 = vunpack.c.l.b16 %v313
    %v1115 = vunpack.c.h.b16 %v313
    %v1116 = vunpack.c.l.b16 %v314
    %v1117 = vunpack.c.l.b16 %v315
    %v1118 = vunpack.c.h.b16 %v315
    %v1119 = vunpack.c.l.b16 %v316
    %v1120 = vunpack.c.h.b16 %v316
    %v1121 = vunpack.c.l.b16 %v317
    %v1122 = vunpack.c.l.b16 %v318
    %v1123 = vunpack.c.h.b16 %v318
    %v1124 = vunpack.c.l.b16 %v319
    %v1125 = vunpack.c.h.b16 %v319
    %v1126 = vunpack.c.l.b16 %v320
    %v1127 = vunpack.c.l.b16 %v321
    %v1128 = vunpack.c.h.b16 %v321
    %v1129 = vunpack.c.l.b16 %v322
    %v1130 = vunpack.c.h.b16 %v322
    %v1131 = vunpack.c.l.b16 %v323
    %v1132 = vunpack.c.l.b16 %v324
    %v1133 = vunpack.c.h.b16 %v324
    %v1134 = vunpack.c.l.b16 %v325
    %v1135 = vunpack.c.h.b16 %v325
    %v1136 = vunpack.c.l.b16 %v326
    %v1137 = vunpack.c.l.b16 %v327
    %v1138 = vunpack.c.h.b16 %v327
    %v1139 = vunpack.c.l.b16 %v328
    %v1140 = vunpack.c.h.b16 %v328
    %v1141 = vunpack.c.l.b16 %v329
    %v1142 = vunpack.c.l.b16 %v330
    %v1143 = vunpack.c.h.b16 %v330
    %v1144 = vunpack.c.l.b16 %v331
    %v1145 = vunpack.c.h.b16 %v331
    %v1146 = vunpack.c.l.b16 %v332
    %v1147 = vunpack.c.l.b16 %v333
    %v1148 = vunpack.c.h.b16 %v333
    %v1149 = vunpack.c.l.b16 %v334
    %v1150 = vunpack.c.h.b16 %v334
    %v1151 = vunpack.c.l.b16 %v335
    %v1152 = vunpack.c.l.b16 %v336
    %v1153 = vunpack.c.h.b16 %v336
    %v1154 = vunpack.c.l.b16 %v337
    %v1155 = vunpack.c.h.b16 %v337
    %v1156 = vunpack.c.l.b16 %v338
    %v1157 = vunpack.c.l.b16 %v339
    %v1158 = vunpack.c.h.b16 %v339
    %v1159 = vunpack.c.l.b16 %v340
    %v1160 = vunpack.c.h.b16 %v340
    %v1161 = vunpack.c.l.b16 %v341
    %v1162 = vunpack.c.l.b16 %v342
    %v1163 = vunpack.c.h.b16 %v342
    %v1164 = vunpack.c.l.b16 %v343
    %v1165 = vunpack.c.h.b16 %v343
    %v1166 = vunpack.c.l.b16 %v344
    %v1167 = vunpack.c.l.b16 %v345
    %v1168 = vunpack.c.h.b16 %v345
    %v1169 = vunpack.c.l.b16 %v346
    %v1170 = vunpack.c.h.b16 %v346
    %v1171 = vunpack.c.l.b16 %v347
    %v1172 = vunpack.c.l.b16 %v348
    %v1173 = vunpack.c.h.b16 %v348
    %v1174 = vunpack.c.l.b16 %v349
    %v1175 = vunpack.c.h.b16 %v349
    %v1176 = vunpack.c.l.b16 %v350
    %v1177 = vunpack.c.l.b16 %v351
    %v1178 = vunpack.c.h.b16 %v351
    %v1179 = vunpack.c.l.b16 %v352
    %v1180 = vunpack.c.h.b16 %v352
    %v1181 = vunpack.c.l.b16 %v353
    %v1182 = vunpack.c.l.b16 %v354
    %v1183 = vunpack.c.h.b16 %v354
    %v1184 = vunpack.c.l.b16 %v355
    %v1185 = vunpack.c.h.b16 %v355
    %v1186 = vunpack.c.l.b16 %v356
    %v1187 = vunpack.c.l.b16 %v357
    %v1188 = vunpack.c.h.b16 %v357
    %v1189 = vunpack.c.l.b16 %v358
    %v1190 = vunpack.c.h.b16 %v358
    %v1191 = vunpack.c.l.b16 %v359
    %v1192 = vunpack.c.l.b16 %v360
    %v1193 = vunpack.c.h.b16 %v360
    %v1194 = vunpack.c.l.b16 %v361
    %v1195 = vunpack.c.h.b16 %v361
    %v1196 = vunpack.c.l.b16 %v362
    %v1197 = vunpack.c.l.b16 %v363
    %v1198 = vunpack.c.h.b16 %v363
    %v1199 = vunpack.c.l.b16 %v364
    %v1200 = vunpack.c.h.b16 %v364
    %v1201 = vunpack.c.l.b16 %v365
    %v1202 = vunpack.c.l.b16 %v366
    %v1203 = vunpack.c.h.b16 %v366
    %v1204 = vunpack.c.l.b16 %v367
    %v1205 = vunpack.c.h.b16 %v367
    %v1206 = vunpack.c.l.b16 %v368
    %v1207 = vunpack.c.l.b16 %v369
    %v1208 = vunpack.c.h.b16 %v369
    %v1209 = vunpack.c.l.b16 %v370
    %v1210 = vunpack.c.h.b16 %v370
    %v1211 = vunpack.c.l.b16 %v371
    %v1212 = vunpack.c.l.b16 %v372
    %v1213 = vunpack.c.h.b16 %v372
    %v1214 = vunpack.c.l.b16 %v373
    %v1215 = vunpack.c.h.b16 %v373
    %v1216 = vunpack.c.l.b16 %v374
    %v1217 = vunpack.c.l.b16 %v375
    %v1218 = vunpack.c.h.b16 %v375
    %v1219 = vunpack.c.l.b16 %v376
    %v1220 = vunpack.c.h.b16 %v376
    %v1221 = vunpack.c.l.b16 %v377
    %v1222 = vunpack.c.l.b16 %v378
    %v1223 = vunpack.c.h.b16 %v378
    %v1224 = vunpack.c.l.b16 %v379
    %v1225 = vunpack.c.h.b16 %v379
    %v1226 = vunpack.c.l.b16 %v380
    %v1227 = vunpack.c.l.b16 %v381
    %v1228 = vunpack.c.h.b16 %v381
    %v1229 = vunpack.c.l.b16 %v382
    %v1230 = vunpack.c.h.b16 %v382
    %v1231 = vunpack.c.l.b16 %v383
    %v1232 = vunpack.c.l.b16 %v384
    %v1233 = vunpack.c.h.b16 %v384
    %v1234 = vunpack.c.l.b16 %v385
    %v1235 = vunpack.c.h.b16 %v385
    %v1236 = vunpack.c.l.b16 %v386
    %v1237 = vunpack.c.l.b16 %v387
    %v1238 = vunpack.c.h.b16 %v387
    %v1239 = vunpack.c.l.b16 %v388
    %v1240 = vunpack.c.h.b16 %v388
    %v1241 = vunpack.c.l.b16 %v389
    %v1242 = vunpack.c.l.b16 %v390
    %v1243 = vunpack.c.h.b16 %v390
    %v1244 = vunpack.c.l.b16 %v391
    %v1245 = vunpack.c.h.b16 %v391
    %v1246 = vunpack.c.l.b16 %v392
    %v1247 = vunpack.c.l.b16 %v393
    %v1248 = vunpack.c.h.b16 %v393
    %v1249 = vunpack.c.l.b16 %v394
    %v1250 = vunpack.c.h.b16 %v394
    %v1251 = vunpack.c.l.b16 %v395
    %v1252 = vunpack.c.l.b16 %v396
    %v1253 = vunpack.c.h.b16 %v396
    %v1254 = vunpack.c.l.b16 %v397
    %v1255 = vunpack.c.h.b16 %v397
    %v1256 = vunpack.c.l.b16 %v398
    %v1257 = vunpack.c.l.b16 %v399
    %v1258 = vunpack.c.h.b16 %v399
    %v1259 = vunpack.c.l.b16 %v400
    %v1260 = vunpack.c.h.b16 %v400
    %v1261 = vunpack.c.l.b16 %v401
    %v1262 = vunpack.c.l.b16 %v402
    %v1263 = vunpack.c.h.b16 %v402
    %v1264 = vunpack.c.l.b16 %v403
    %v1265 = vunpack.c.h.b16 %v403
    %v1266 = vunpack.c.l.b16 %v404
    %v1267 = vunpack.c.l.b16 %v405
    %v1268 = vunpack.c.h.b16 %v405
    %v1269 = vunpack.c.l.b16 %v406
    %v1270 = vunpack.c.h.b16 %v406
    %v1271 = vunpack.c.l.b16 %v407
    %v1272 = vunpack.c.l.b16 %v408
    %v1273 = vunpack.c.h.b16 %v408
    %v1274 = vunpack.c.l.b16 %v409
    %v1275 = vunpack.c.h.b16 %v409
    %v1276 = vunpack.c.l.b16 %v410
    %v1277 = vunpack.c.l.b16 %v411
    %v1278 = vunpack.c.h.b16 %v411
    %v1279 = vunpack.c.l.b16 %v412
    %v1280 = vunpack.c.h.b16 %v412
    %v1281 = vunpack.c.l.b16 %v413
    %v1282 = vunpack.c.l.b16 %v414
    %v1283 = vunpack.c.h.b16 %v414
    %v1284 = vunpack.c.l.b16 %v415
    %v1285 = vunpack.c.h.b16 %v415
    %v1286 = vunpack.c.l.b16 %v416
    %v1287 = vunpack.c.l.b16 %v417
    %v1288 = vunpack.c.h.b16 %v417
    %v1289 = vunpack.c.l.b16 %v418
    %v1290 = vunpack.c.h.b16 %v418
    %v1291 = vunpack.c.l.b16 %v419
    %v1292 = vunpack.c.l.b16 %v420
    %v1293 = vunpack.c.h.b16 %v420
    %v1294 = vunpack.c.l.b16 %v421
    %v1295 = vunpack.c.h.b16 %v421
    %v1296 = vunpack.c.l.b16 %v422
    %v1297 = vunpack.c.l.b16 %v423
    %v1298 = vunpack.c.h.b16 %v423
    %v1299 = vunpack.c.l.b16 %v424
    %v1300 = vunpack.c.h.b16 %v424
    %v1301 = vunpack.c.l.b16 %v425
    %v1302 = vunpack.c.l.b16 %v426
    %v1303 = vunpack.c.h.b16 %v426
    %v1304 = vunpack.c.l.b16 %v427
    %v1305 = vunpack.c.h.b16 %v427
    %v1306 = vunpack.c.l.b16 %v428
    %v1307 = vunpack.c.l.b16 %v429
    %v1308 = vunpack.c.h.b16 %v429
    %v1309 = vunpack.c.l.b16 %v430
    %v1310 = vunpack.c.h.b16 %v430
    %v1311 = vunpack.c.l.b16 %v431
    %v1312 = vunpack.c.l.b16 %v432
    %v1313 = vunpack.c.h.b16 %v432
    %v1314 = vunpack.c.l.b16 %v433
    %v1315 = vunpack.c.h.b16 %v433
    %v1316 = vunpack.c.l.b16 %v434
    %v1317 = vunpack.c.l.b16 %v435
    %v1318 = vunpack.c.h.b16 %v435
    %v1319 = vunpack.c.l.b16 %v436
    %v1320 = vunpack.c.h.b16 %v436
    %v1321 = vunpack.c.l.b16 %v437
    %v1322 = vunpack.c.l.b16 %v438
    %v1323 = vunpack.c.h.b16 %v438
    %v1324 = vunpack.c.l.b16 %v439
    %v1325 = vunpack.c.h.b16 %v439
    %v1326 = vunpack.c.l.b16 %v440
    %v1327 = vunpack.c.l.b16 %v441
    %v1328 = vunpack.c.h.b16 %v441
    %v1329 = vunpack.c.l.b16 %v442
    %v1330 = vunpack.c.h.b16 %v442
    %v1331 = vunpack.c.l.b16 %v443
    %v1332 = vunpack.c.l.b16 %v444
    %v1333 = vunpack.c.h.b16 %v444
    %v1334 = vunpack.c.l.b16 %v445
    %v1335 = vunpack.c.h.b16 %v445
    %v1336 = vunpack.c.l.b16 %v446
    %v1337 = vunpack.c.l.b16 %v447
    %v1338 = vunpack.c.h.b16 %v447
    %v1339 = vunpack.c.l.b16 %v448
    %v1340 = vunpack.c.h.b16 %v448
    %v1341 = vunpack.c.l.b16 %v449
    %v1342 = vunpack.c.l.b16 %v450
    %v1343 = vunpack.c.h.b16 %v450
    %v1344 = vunpack.c.l.b16 %v451
    %v1345 = vunpack.c.h.b16 %v451
    %v1346 = vunpack.c.l.b16 %v452
    %v1347 = vunpack.c.l.b16 %v453
    %v1348 = vunpack.c.h.b16 %v453
    %v1349 = vunpack.c.l.b16 %v454
    %v1350 = vunpack.c.h.b16 %v454
    %v1351 = vunpack.c.l.b16 %v455
    %v1352 = vunpack.c.l.b16 %v456
    %v1353 = vunpack.c.h.b16 %v456
    %v1354 = vunpack.c.l.b16 %v457
    %v1355 = vunpack.c.h.b16 %v457
    %v1356 = vunpack.c.l.b16 %v458
    %v1357 = vunpack.c.l.b16 %v459
    %v1358 = vunpack.c.h.b16 %v459
    %v1359 = vunpack.c.l.b16 %v460
    %v1360 = vunpack.c.h.b16 %v460
    %v1361 = vunpack.c.l.b16 %v461
    %v1362 = vunpack.c.l.b16 %v462
    %v1363 = vunpack.c.h.b16 %v462
    %v1364 = vunpack.c.l.b16 %v463
    %v1365 = vunpack.c.h.b16 %v463
    %v1366 = vunpack.c.l.b16 %v464
    %v1367 = vunpack.c.l.b16 %v465
    %v1368 = vunpack.c.h.b16 %v465
    %v1369 = vunpack.c.l.b16 %v466
    %v1370 = vunpack.c.h.b16 %v466
    %v1371 = vunpack.c.l.b16 %v467
    %v1372 = vunpack.c.l.b16 %v468
    %v1373 = vunpack.c.h.b16 %v468
    %v1374 = vunpack.c.l.b16 %v469
    %v1375 = vunpack.c.h.b16 %v469
    %v1376 = vunpack.c.l.b16 %v470
    %v1377 = vunpack.c.l.b16 %v471
    %v1378 = vunpack.c.h.b16 %v471
    %v1379 = vunpack.c.l.b16 %v472
    %v1380 = vunpack.c.h.b16 %v472
    %v1381 = vunpack.c.l.b16 %v473
    %v1382 = vunpack.c.l.b16 %v474
    %v1383 = vunpack.c.h.b16 %v474
    %v1384 = vunpack.c.l.b16 %v475
    %v1385 = vunpack.c.h.b16 %v475
    %v1386 = vunpack.c.l.b16 %v476
    %v1387 = vunpack.c.l.b16 %v477
    %v1388 = vunpack.c.h.b16 %v477
    %v1389 = vunpack.c.l.b16 %v478
    %v1390 = vunpack.c.h.b16 %v478
    %v1391 = vunpack.c.l.b16 %v479
    %v1392 = vunpack.c.l.b16 %v480
    %v1393 = vunpack.c.h.b16 %v480
    %v1394 = vunpack.c.l.b16 %v481
    %v1395 = vunpack.c.h.b16 %v481
    %v1396 = vunpack.c.l.b16 %v482
    %v1397 = vunpack.c.l.b16 %v483
    %v1398 = vunpack.c.h.b16 %v483
    %v1399 = vunpack.c.l.b16 %v484
    %v1400 = vunpack.c.h.b16 %v484
    %v1401 = vunpack.c.l.b16 %v485
    %v1402 = vunpack.c.l.b16 %v486
    %v1403 = vunpack.c.h.b16 %v486
    %v1404 = vunpack.c.l.b16 %v487
    %v1405 = vunpack.c.h.b16 %v487
    %v1406 = vunpack.c.l.b16 %v488
    %v1407 = vunpack.c.l.b16 %v489
    %v1408 = vunpack.c.h.b16 %v489
    %v1409 = vunpack.c.l.b16 %v490
    %v1410 = vunpack.c.h.b16 %v490
    %v1411 = vunpack.c.l.b16 %v491
    %v1412 = vunpack.c.l.b16 %v492
    %v1413 = vunpack.c.h.b16 %v492
    %v1414 = vunpack.c.l.b16 %v493
    %v1415 = vunpack.c.h.b16 %v493
    %v1416 = vunpack.c.l.b16 %v494
    %v1417 = vunpack.c.l.b16 %v495
    %v1418 = vunpack.c.h.b16 %v495
    %v1419 = vunpack.c.l.b16 %v496
    %v1420 = vunpack.c.h.b16 %v496
    %v1421 = vunpack.c.l.b16 %v497
    %v1422 = vunpack.c.l.b16 %v498
    %v1423 = vunpack.c.h.b16 %v498
    %v1424 = vunpack.c.l.b16 %v499
    %v1425 = vunpack.c.h.b16 %v499
    %v1426 = vunpack.c.l.b16 %v500
    %v1427 = vunpack.c.l.b16 %v501
    %v1428 = vunpack.c.h.b16 %v501
    %v1429 = vunpack.c.l.b16 %v502
    %v1430 = vunpack.c.h.b16 %v502
    %v1431 = vunpack.c.l.b16 %v503
    %v1432 = vunpack.c.l.b16 %v504
    %v1433 = vunpack.c.h.b16 %v504
    %v1434 = vunpack.c.l.b16 %v505
    %v1435 = vunpack.c.h.b16 %v505
    %v1436 = vunpack.c.l.b16 %v506
    %v1437 = vunpack.c.l.b16 %v507
    %v1438 = vunpack.c.h.b16 %v507
    %v1439 = vunpack.c.l.b16 %v508
    %v1440 = vunpack.c.h.b16 %v508
    %v1441 = vunpack.c.l.b16 %v509
    %v1442 = vunpack.c.l.b16 %v510
    %v1443 = vunpack.c.h.b16 %v510
    %v1444 = vunpack.c.l.b16 %v511
    %v1445 = vunpack.c.h.b16 %v511
    %v1446 = vunpack.c.l.b16 %v512
    %v1447 = vunpack.c.l.b16 %v513
    %v1448 = vunpack.c.h.b16 %v513
    %v1449 = vunpack.c.l.b16 %v514
    %v1450 = vunpack.c.h.b16 %v514
    %v1451 = vunpack.c.l.b16 %v515
    %v1452 = vunpack.c.l.b16 %v516
    %v1453 = vunpack.c.h.b16 %v516
    %v1454 = vunpack.c.l.b16 %v517
    %v1455 = vunpack.c.h.b16 %v517
    %v1456 = vunpack.c.l.b16 %v518
    %v1457 = vunpack.c.l.b16 %v519
    %v1458 = vunpack.c.h.b16 %v519
    %v1459 = vunpack.c.l.b16 %v520
    %v1460 = vunpack.c.h.b16 %v520
    %v1461 = vunpack.c.l.b16 %v521
    %v1462 = vunpack.c.l.b16 %v522
    %v1463 = vunpack.c.h.b16 %v522
    %v1464 = vunpack.c.l.b16 %v523
    %v1465 = vunpack.c.h.b16 %v523
    %v1466 = vunpack.c.l.b16 %v524
    %v1467 = vunpack.c.l.b16 %v525
    %v1468 = vunpack.c.h.b16 %v525
    %v1469 = vunpack.c.l.b16 %v526
    %v1470 = vunpack.c.h.b16 %v526
    %v1471 = vunpack.c.l.b16 %v527
    %v1472 = vpack.c.b16 %v917, %v912
    %v1473 = vpack.c.b16 %v918, %v913
    %v1474 = vpack.c.b16 %v919, %v914
    %v1475 = vpack.c.b16 %v920, %v915
    %v1476 = vpack.c.b16 %v921, %v916
    %v1477 = vpack.c.b16 %v927, %v922
    %v1478 = vpack.c.b16 %v928, %v923
    %v1479 = vpack.c.b16 %v929, %v924
    %v1480 = vpack.c.b16 %v930, %v925
    %v1481 = vpack.c.b16 %v931, %v926
    %v1482 = vpack.c.b16 %v937, %v932
    %v1483 = vpack.c.b16 %v938, %v933
    %v1484 = vpack.c.b16 %v939, %v934
    %v1485 = vpack.c.b16 %v940, %v935
    %v1486 = vpack.c.b16 %v941, %v936
    %v1487 = vpack.c.b16 %v947, %v942
    %v1488 = vpack.c.b16 %v948, %v943
    %v1489 = vpack.c.b16 %v949, %v944
    %v1490 = vpack.c.b16 %v950, %v945
    %v1491 = vpack.c.b16 %v951, %v946
    %v1492 = vpack.c.b16 %v957, %v952
    %v1493 = vpack.c.b16 %v958, %v953
    %v1494 = vpack.c.b16 %v959, %v954
    %v1495 = vpack.c.b16 %v960, %v955
    %v1496 = vpack.c.b16 %v961, %v956
    %v1497 = vpack.c.b16 %v967, %v962
    %v1498 = vpack.c.b16 %v968, %v963
    %v1499 = vpack.c.b16 %v969, %v964
    %v1500 = vpack.c.b16 %v970, %v965
    %v1501 = vpack.c.b16 %v971, %v966
    %v1502 = vpack.c.b16 %v977, %v972
    %v1503 = vpack.c.b16 %v978, %v973
    %v1504 = vpack.c.b16 %v979, %v974
    %v1505 = vpack.c.b16 %v980, %v975
    %v1506 = vpack.c.b16 %v981, %v976
    %v1507 = vpack.c.b16 %v987, %v982
    %v1508 = vpack.c.b16 %v988, %v983
    %v1509 = vpack.c.b16 %v989, %v984
    %v1510 = vpack.c.b16 %v990, %v985
    %v1511 = vpack.c.b16 %v991, %v986
    %v1512 = vpack.c.b16 %v997, %v992
    %v1513 = vpack.c.b16 %v998, %v993
    %v1514 = vpack.c.b16 %v999, %v994
    %v1515 = vpack.c.b16 %v1000, %v995
    %v1516 = vpack.c.b16 %v1001, %v996
    %v1517 = vpack.c.b16 %v1007, %v1002
    %v1518 = vpack.c.b16 %v1008, %v1003
    %v1519 = vpack.c.b16 %v1009, %v1004
    %v1520 = vpack.c.b16 %v1010, %v1005
    %v1521 = vpack.c.b16 %v1011, %v1006
    %v1522 = vpack.c.b16 %v1017, %v1012
    %v1523 = vpack.c.b16 %v1018, %v1013
    %v1524 = vpack.c.b16 %v1019, %v1014
    %v1525 = vpack.c.b16 %v1020, %v1015
    %v1526 = vpack.c.b16 %v1021, %v1016
    %v1527 = vpack.c.b16 %v1027, %v1022
    %v1528 = vpack.c.b16 %v1028, %v1023
    %v1529 = vpack.c.b16 %v1029, %v1024
    %v1530 = vpack.c.b16 %v1030, %v1025
    %v1531 = vpack.c.b16 %v1031, %v1026
    %v1532 = vpack.c.b16 %v1037, %v1032
    %v1533 = vpack.c.b16 %v1038, %v1033
    %v1534 = vpack.c.b16 %v1039, %v1034
    %v1535 = vpack.c.b16 %v1040, %v1035
    %v1536 = vpack.c.b16 %v1041, %v1036
    %v1537 = vpack.c.b16 %v1047, %v1042
    %v1538 = vpack.c.b16 %v1048, %v1043
    %v1539 = vpack.c.b16 %v1049, %v1044
    %v1540 = vpack.c.b16 %v1050, %v1045
    %v1541 = vpack.c.b16 %v1051, %v1046
    %v1542 = vpack.c.b16 %v1057, %v1052
    %v1543 = vpack.c.b16 %v1058, %v1053
    %v1544 = vpack.c.b16 %v1059, %v1054
    %v1545 = vpack.c.b16 %v1060, %v1055
    %v1546 = vpack.c.b16 %v1061, %v1056
    %v1547 = vpack.c.b16 %v1067, %v1062
    %v1548 = vpack.c.b16 %v1068, %v1063
    %v1549 = vpack.c.b16 %v1069, %v1064
    %v1550 = vpack.c.b16 %v1070, %v1065
    %v1551 = vpack.c.b16 %v1071, %v1066
    %v1552 = vpack.c.b16 %v1077, %v1072
    %v1553 = vpack.c.b16 %v1078, %v1073
    %v1554 = vpack.c.b16 %v1079, %v1074
    %v1555 = vpack.c.b16 %v1080, %v1075
    %v1556 = vpack.c.b16 %v1081, %v1076
    %v1557 = vpack.c.b16 %v1087, %v1082
    %v1558 = vpack.c.b16 %v1088, %v1083
    %v1559 = vpack.c.b16 %v1089, %v1084
    %v1560 = vpack.c.b16 %v1090, %v1085
    %v1561 = vpack.c.b16 %v1091, %v1086
    %v1562 = vpack.c.b16 %v1097, %v1092
    %v1563 = vpack.c.b16 %v1098, %v1093
    %v1564 = vpack.c.b16 %v1099, %v1094
    %v1565 = vpack.c.b16 %v1100, %v1095
    %v1566 = vpack.c.b16 %v1101, %v1096
    %v1567 = vpack.c.b16 %v1107, %v1102
    %v1568 = vpack.c.b16 %v1108, %v1103
    %v1569 = vpack.c.b16 %v1109, %v1104
    %v1570 = vpack.c.b16 %v1110, %v1105
    %v1571 = vpack.c.b16 %v1111, %v1106
    %v1572 = vpack.c.b16 %v1117, %v1112
    %v1573 = vpack.c.b16 %v1118, %v1113
    %v1574 = vpack.c.b16 %v1119, %v1114
    %v1575 = vpack.c.b16 %v1120, %v1115
    %v1576 = vpack.c.b16 %v1121, %v1116
    %v1577 = vpack.c.b16 %v1127, %v1122
    %v1578 = vpack.c.b16 %v1128, %v1123
    %v1579 = vpack.c.b16 %v1129, %v1124
    %v1580 = vpack.c.b16 %v1130, %v1125
    %v1581 = vpack.c.b16 %v1131, %v1126
    %v1582 = vpack.c.b16 %v1137, %v1132
    %v1583 = vpack.c.b16 %v1138, %v1133
    %v1584 = vpack.c.b16 %v1139, %v1134
    %v1585 = vpack.c.b16 %v1140, %v1135
    %v1586 = vpack.c.b16 %v1141, %v1136
    %v1587 = vpack.c.b16 %v1147, %v1142
    %v1588 = vpack.c.b16 %v1148, %v1143
    %v1589 = vpack.c.b16 %v1149, %v1144
    %v1590 = vpack.c.b16 %v1150, %v1145
    %v1591 = vpack.c.b16 %v1151, %v1146
    %v1592 = vpack.c.b16 %v1157, %v1152
    %v1593 = vpack.c.b16 %v1158, %v1153
    %v1594 = vpack.c.b16 %v1159, %v1154
    %v1595 = vpack.c.b16 %v1160, %v1155
    %v1596 = vpack.c.b16 %v1161, %v1156
    %v1597 = vpack.c.b16 %v1167, %v1162
    %v1598 = vpack.c.b16 %v1168, %v1163
    %v1599 = vpack.c.b16 %v1169, %v1164
    %v1600 = vpack.c.b16 %v1170, %v1165
    %v1601 = vpack.c.b16 %v1171, %v1166
    %v1602 = vpack.c.b16 %v1177, %v1172
    %v1603 = vpack.c.b16 %v1178, %v1173
    %v1604 = vpack.c.b16 %v1179, %v1174
    %v1605 = vpack.c.b16 %v1180, %v1175
    %v1606 = vpack.c.b16 %v1181, %v1176
    %v1607 = vpack.c.b16 %v1187, %v1182
    %v1608 = vpack.c.b16 %v1188, %v1183
    %v1609 = vpack.c.b16 %v1189, %v1184
    %v1610 = vpack.c.b16 %v1190, %v1185
    %v1611 = vpack.c.b16 %v1191, %v1186
    %v1612 = vpack.c.b16 %v1197, %v1192
    %v1613 = vpack.c.b16 %v1198, %v1193
    %v1614 = vpack.c.b16 %v1199, %v1194
    %v1615 = vpack.c.b16 %v1200, %v1195
    %v1616 = vpack.c.b16 %v1201, %v1196
    %v1617 = vpack.c.b16 %v1207, %v1202
    %v1618 = vpack.c.b16 %v1208, %v1203
    %v1619 = vpack.c.b16 %v1209, %v1204
    %v1620 = vpack.c.b16 %v1210, %v1205
    %v1621 = vpack.c.b16 %v1211, %v1206
    %v1622 = vpack.c.b16 %v1217, %v1212
    %v1623 = vpack.c.b16 %v1218, %v1213
    %v1624 = vpack.c.b16 %v1219, %v1214
    %v1625 = vpack.c.b16 %v1220, %v1215
    %v1626 = vpack.c.b16 %v1221, %v1216
    %v1627 = vpack.c.b16 %v1227, %v1222
    %v1628 = vpack.c.b16 %v1228, %v1223
    %v1629 = vpack.c.b16 %v1229, %v1224
    %v1630 = vpack.c.b16 %v1230, %v1225
    %v1631 = vpack.c.b16 %v1231, %v1226
    %v1632 = vpack.c.b16 %v1237, %v1232
    %v1633 = vpack.c.b16 %v1238, %v1233
    %v1634 = vpack.c.b16 %v1239, %v1234
    %v1635 = vpack.c.b16 %v1240, %v1235
    %v1636 = vpack.c.b16 %v1241, %v1236
    %v1637 = vpack.c.b16 %v1247, %v1242
    %v1638 = vpack.c.b16 %v1248, %v1243
    %v1639 = vpack.c.b16 %v1249, %v1244
    %v1640 = vpack.c.b16 %v1250, %v1245
    %v1641 = vpack.c.b16 %v1251, %v1246
    %v1642 = vpack.c.b16 %v1257, %v1252
    %v1643 = vpack.c.b16 %v1258, %v1253
    %v1644 = vpack.c.b16 %v1259, %v1254
    %v1645 = vpack.c.b16 %v1260, %v1255
    %v1646 = vpack.c.b16 %v1261, %v1256
    %v1647 = vpack.c.b16 %v1267, %v1262
    %v1648 = vpack.c.b16 %v1268, %v1263
    %v1649 = vpack.c.b16 %v1269, %v1264
    %v1650 = vpack.c.b16 %v1270, %v1265
    %v1651 = vpack.c.b16 %v1271, %v1266
    %v1652 = vpack.c.b16 %v1277, %v1272
    %v1653 = vpack.c.b16 %v1278, %v1273
    %v1654 = vpack.c.b16 %v1279, %v1274
    %v1655 = vpack.c.b16 %v1280, %v1275
    %v1656 = vpack.c.b16 %v1281, %v1276
    %v1657 = vpack.c.b16 %v1287, %v1282
    %v1658 = vpack.c.b16 %v1288, %v1283
    %v1659 = vpack.c.b16 %v1289, %v1284
    %v1660 = vpack.c.b16 %v1290, %v1285
    %v1661 = vpack.c.b16 %v1291, %v1286
    %v1662 = vpack.c.b16 %v1297, %v1292
    %v1663 = vpack.c.b16 %v1298, %v1293
    %v1664 = vpack.c.b16 %v1299, %v1294
    %v1665 = vpack.c.b16 %v1300, %v1295
    %v1666 = vpack.c.b16 %v1301, %v1296
    %v1667 = vpack.c.b16 %v1307, %v1302
    %v1668 = vpack.c.b16 %v1308, %v1303
    %v1669 = vpack.c.b16 %v1309, %v1304
    %v1670 = vpack.c.b16 %v1310, %v1305
    %v1671 = vpack.c.b16 %v1311, %v1306
    %v1672 = vpack.c.b16 %v1317, %v1312
    %v1673 = vpack.c.b16 %v1318, %v1313
    %v1674 = vpack.c.b16 %v1319, %v1314
    %v1675 = vpack.c.b16 %v1320, %v1315
    %v1676 = vpack.c.b16 %v1321, %v1316
    %v1677 = vpack.c.b16 %v1327, %v1322
    %v1678 = vpack.c.b16 %v1328, %v1323
    %v1679 = vpack.c.b16 %v1329, %v1324
    %v1680 = vpack.c.b16 %v1330, %v1325
    %v1681 = vpack.c.b16 %v1331, %v1326
    %v1682 = vpack.c.b16 %v1337, %v1332
    %v1683 = vpack.c.b16 %v1338, %v1333
    %v1684 = vpack.c.b16 %v1339, %v1334
    %v1685 = vpack.c.b16 %v1340, %v1335
    %v1686 = vpack.c.b16 %v1341, %v1336
    %v1687 = vpack.c.b16 %v1347, %v1342
    %v1688 = vpack.c.b16 %v1348, %v1343
    %v1689 = vpack.c.b16 %v1349, %v1344
    %v1690 = vpack.c.b16 %v1350, %v1345
    %v1691 = vpack.c.b16 %v1351, %v1346
    %v1692 = vpack.c.b16 %v1357, %v1352
    %v1693 = vpack.c.b16 %v1358, %v1353
    %v1694 = vpack.c.b16 %v1359, %v1354
    %v1695 = vpack.c.b16 %v1360, %v1355
    %v1696 = vpack.c.b16 %v1361, %v1356
    %v1697 = vpack.c.b16 %v1367, %v1362
    %v1698 = vpack.c.b16 %v1368, %v1363
    %v1699 = vpack.c.b16 %v1369, %v1364
    %v1700 = vpack.c.b16 %v1370, %v1365
    %v1701 = vpack.c.b16 %v1371, %v1366
    %v1702 = vpack.c.b16 %v1377, %v1372
    %v1703 = vpack.c.b16 %v1378, %v1373
    %v1704 = vpack.c.b16 %v1379, %v1374
    %v1705 = vpack.c.b16 %v1380, %v1375
    %v1706 = vpack.c.b16 %v1381, %v1376
    %v1707 = vpack.c.b16 %v1387, %v1382
    %v1708 = vpack.c.b16 %v1388, %v1383
    %v1709 = vpack.c.b16 %v1389, %v1384
    %v1710 = vpack.c.b16 %v1390, %v1385
    %v1711 = vpack.c.b16 %v1391, %v1386
    %v1712 = vpack.c.b16 %v1397, %v1392
    %v1713 = vpack.c.b16 %v1398, %v1393
    %v1714 = vpack.c.b16 %v1399, %v1394
    %v1715 = vpack.c.b16 %v1400, %v1395
    %v1716 = vpack.c.b16 %v1401, %v1396
    %v1717 = vpack.c.b16 %v1407, %v1402
    %v1718 = vpack.c.b16 %v1408, %v1403
    %v1719 = vpack.c.b16 %v1409, %v1404
    %v1720 = vpack.c.b16 %v1410, %v1405
    %v1721 = vpack.c.b16 %v1411, %v1406
    %v1722 = vpack.c.b16 %v1417, %v1412
    %v1723 = vpack.c.b16 %v1418, %v1413
    %v1724 = vpack.c.b16 %v1419, %v1414
    %v1725 = vpack.c.b16 %v1420, %v1415
    %v1726 = vpack.c.b16 %v1421, %v1416
    %v1727 = vpack.c.b16 %v1427, %v1422
    %v1728 = vpack.c.b16 %v1428, %v1423
    %v1729 = vpack.c.b16 %v1429, %v1424
    %v1730 = vpack.c.b16 %v1430, %v1425
    %v1731 = vpack.c.b16 %v1431, %v1426
    %v1732 = vpack.c.b16 %v1437, %v1432
    %v1733 = vpack.c.b16 %v1438, %v1433
    %v1734 = vpack.c.b16 %v1439, %v1434
    %v1735 = vpack.c.b16 %v1440, %v1435
    %v1736 = vpack.c.b16 %v1441, %v1436
    %v1737 = vpack.c.b16 %v1447, %v1442
    %v1738 = vpack.c.b16 %v1448, %v1443
    %v1739 = vpack.c.b16 %v1449, %v1444
    %v1740 = vpack.c.b16 %v1450, %v1445
    %v1741 = vpack.c.b16 %v1451, %v1446
    %v1742 = vpack.c.b16 %v1457, %v1452
    %v1743 = vpack.c.b16 %v1458, %v1453
    %v1744 = vpack.c.b16 %v1459, %v1454
    %v1745 = vpack.c.b16 %v1460, %v1455
    %v1746 = vpack.c.b16 %v1461, %v1456
    %v1747 = vpack.c.b16 %v1467, %v1462
    %v1748 = vpack.c.b16 %v1468, %v1463
    %v1749 = vpack.c.b16 %v1469, %v1464
    %v1750 = vpack.c.b16 %v1470, %v1465
    %v1751 = vpack.c.b16 %v1471, %v1466
    %2032 = vmatpush.bf16.msra.mxu0 %v1507
    %2033 = vmatpush.bf16.msra.mxu0 %v1502
    %2034 = vmatpush.bf16.msra.mxu0 %v1497
    %2035 = vmatpush.bf16.msra.mxu0 %v1492
    %2036 = vmatpush.bf16.msra.mxu0 %v1487
    %2037 = vmatpush.bf16.msra.mxu0 %v1482
    %2038 = vmatpush.bf16.msra.mxu0 %v1477
    %2039 = vmatpush.bf16.msra.mxu0 %v1472
    %2040 = vmatmul.bf16.gmra.mxu0 %v562
    %v2041 = vpop.f32.mrf.mxu0
    %v2042 = vadd.f32 %v530, %v2041
    %v2043 = vpop.f32.mrf.mxu0
    %v2044 = vadd.f32 %v530, %v2043
    %2045 = vdwg.mxu0
    %2046 = vmatpush.bf16.msra.mxu0 %v1547
    %2047 = vmatpush.bf16.msra.mxu0 %v1542
    %2048 = vmatpush.bf16.msra.mxu0 %v1537
    %2049 = vmatpush.bf16.msra.mxu0 %v1532
    %2050 = vmatpush.bf16.msra.mxu0 %v1527
    %2051 = vmatpush.bf16.msra.mxu0 %v1522
    %2052 = vmatpush.bf16.msra.mxu0 %v1517
    %2053 = vmatpush.bf16.msra.mxu0 %v1512
    %2054 = vmatmul.bf16.gmra.mxu0 %v563
    %v2055 = vpop.f32.mrf.mxu0
    %v2056 = vadd.f32 %v2042, %v2055
    %v2057 = vpop.f32.mrf.mxu0
    %v2058 = vadd.f32 %v2044, %v2057
    %2059 = vdwg.mxu0
    %2060 = vmatpush.bf16.msra.mxu0 %v1587
    %2061 = vmatpush.bf16.msra.mxu0 %v1582
    %2062 = vmatpush.bf16.msra.mxu0 %v1577
    %2063 = vmatpush.bf16.msra.mxu0 %v1572
    %2064 = vmatpush.bf16.msra.mxu0 %v1567
    %2065 = vmatpush.bf16.msra.mxu0 %v1562
    %2066 = vmatpush.bf16.msra.mxu0 %v1557
    %2067 = vmatpush.bf16.msra.mxu0 %v1552
    %2068 = vmatmul.bf16.gmra.mxu0 %v564
    %v2069 = vpop.f32.mrf.mxu0
    %v2070 = vadd.f32 %v2056, %v2069
    %v2071 = vpop.f32.mrf.mxu0
    %v2072 = vadd.f32 %v2058, %v2071
    %2073 = vdwg.mxu0
    %2074 = vmatpush.bf16.msra.mxu0 %v1627
    %2075 = vmatpush.bf16.msra.mxu0 %v1622
    %2076 = vmatpush.bf16.msra.mxu0 %v1617
    %2077 = vmatpush.bf16.msra.mxu0 %v1612
    %2078 = vmatpush.bf16.msra.mxu0 %v1607
    %2079 = vmatpush.bf16.msra.mxu0 %v1602
    %2080 = vmatpush.bf16.msra.mxu0 %v1597
    %2081 = vmatpush.bf16.msra.mxu0 %v1592
    %2082 = vmatmul.bf16.gmra.mxu0 %v565
    %v2083 = vpop.f32.mrf.mxu0
    %v2084 = vadd.f32 %v2070, %v2083
    %v2085 = vpop.f32.mrf.mxu0
    %v2086 = vadd.f32 %v2072, %v2085
    %2087 = vdwg.mxu0
    %2088 = vmatpush.bf16.msra.mxu0 %v1667
    %2089 = vmatpush.bf16.msra.mxu0 %v1662
    %2090 = vmatpush.bf16.msra.mxu0 %v1657
    %2091 = vmatpush.bf16.msra.mxu0 %v1652
    %2092 = vmatpush.bf16.msra.mxu0 %v1647
    %2093 = vmatpush.bf16.msra.mxu0 %v1642
    %2094 = vmatpush.bf16.msra.mxu0 %v1637
    %2095 = vmatpush.bf16.msra.mxu0 %v1632
    %2096 = vmatmul.bf16.gmra.mxu0 %v566
    %v2097 = vpop.f32.mrf.mxu0
    %v2098 = vadd.f32 %v2084, %v2097
    %v2099 = vpop.f32.mrf.mxu0
    %v2100 = vadd.f32 %v2086, %v2099
    %2101 = vdwg.mxu0
    %2102 = vmatpush.bf16.msra.mxu0 %v1707
    %2103 = vmatpush.bf16.msra.mxu0 %v1702
    %2104 = vmatpush.bf16.msra.mxu0 %v1697
    %2105 = vmatpush.bf16.msra.mxu0 %v1692
    %2106 = vmatpush.bf16.msra.mxu0 %v1687
    %2107 = vmatpush.bf16.msra.mxu0 %v1682
    %2108 = vmatpush.bf16.msra.mxu0 %v1677
    %2109 = vmatpush.bf16.msra.mxu0 %v1672
    %2110 = vmatmul.bf16.gmra.mxu0 %v567
    %v2111 = vpop.f32.mrf.mxu0
    %v2112 = vadd.f32 %v2098, %v2111
    %v2113 = vpop.f32.mrf.mxu0
    %v2114 = vadd.f32 %v2100, %v2113
    %2115 = vdwg.mxu0
    %2116 = vmatpush.bf16.msra.mxu0 %v1747
    %2117 = vmatpush.bf16.msra.mxu0 %v1742
    %2118 = vmatpush.bf16.msra.mxu0 %v1737
    %2119 = vmatpush.bf16.msra.mxu0 %v1732
    %2120 = vmatpush.bf16.msra.mxu0 %v1727
    %2121 = vmatpush.bf16.msra.mxu0 %v1722
    %2122 = vmatpush.bf16.msra.mxu0 %v1717
    %2123 = vmatpush.bf16.msra.mxu0 %v1712
    %2124 = vmatmul.bf16.gmra.mxu0 %v568
    %v2125 = vpop.f32.mrf.mxu0
    %v2126 = vadd.f32 %v2112, %v2125
    %v2127 = vpop.f32.mrf.mxu0
    %v2128 = vadd.f32 %v2114, %v2127
    %2129 = vdwg.mxu0
    %2130 = vmatpush.bf16.msra.mxu0 %v1508
    %2131 = vmatpush.bf16.msra.mxu0 %v1503
    %2132 = vmatpush.bf16.msra.mxu0 %v1498
    %2133 = vmatpush.bf16.msra.mxu0 %v1493
    %2134 = vmatpush.bf16.msra.mxu0 %v1488
    %2135 = vmatpush.bf16.msra.mxu0 %v1483
    %2136 = vmatpush.bf16.msra.mxu0 %v1478
    %2137 = vmatpush.bf16.msra.mxu0 %v1473
    %2138 = vmatmul.bf16.gmra.mxu0 %v562
    %v2139 = vpop.f32.mrf.mxu0
    %v2140 = vadd.f32 %v531, %v2139
    %v2141 = vpop.f32.mrf.mxu0
    %v2142 = vadd.f32 %v531, %v2141
    %2143 = vdwg.mxu0
    %2144 = vmatpush.bf16.msra.mxu0 %v1548
    %2145 = vmatpush.bf16.msra.mxu0 %v1543
    %2146 = vmatpush.bf16.msra.mxu0 %v1538
    %2147 = vmatpush.bf16.msra.mxu0 %v1533
    %2148 = vmatpush.bf16.msra.mxu0 %v1528
    %2149 = vmatpush.bf16.msra.mxu0 %v1523
    %2150 = vmatpush.bf16.msra.mxu0 %v1518
    %2151 = vmatpush.bf16.msra.mxu0 %v1513
    %2152 = vmatmul.bf16.gmra.mxu0 %v563
    %v2153 = vpop.f32.mrf.mxu0
    %v2154 = vadd.f32 %v2140, %v2153
    %v2155 = vpop.f32.mrf.mxu0
    %v2156 = vadd.f32 %v2142, %v2155
    %2157 = vdwg.mxu0
    %2158 = vmatpush.bf16.msra.mxu0 %v1588
    %2159 = vmatpush.bf16.msra.mxu0 %v1583
    %2160 = vmatpush.bf16.msra.mxu0 %v1578
    %2161 = vmatpush.bf16.msra.mxu0 %v1573
    %2162 = vmatpush.bf16.msra.mxu0 %v1568
    %2163 = vmatpush.bf16.msra.mxu0 %v1563
    %2164 = vmatpush.bf16.msra.mxu0 %v1558
    %2165 = vmatpush.bf16.msra.mxu0 %v1553
    %2166 = vmatmul.bf16.gmra.mxu0 %v564
    %v2167 = vpop.f32.mrf.mxu0
    %v2168 = vadd.f32 %v2154, %v2167
    %v2169 = vpop.f32.mrf.mxu0
    %v2170 = vadd.f32 %v2156, %v2169
    %2171 = vdwg.mxu0
    %2172 = vmatpush.bf16.msra.mxu0 %v1628
    %2173 = vmatpush.bf16.msra.mxu0 %v1623
    %2174 = vmatpush.bf16.msra.mxu0 %v1618
    %2175 = vmatpush.bf16.msra.mxu0 %v1613
    %2176 = vmatpush.bf16.msra.mxu0 %v1608
    %2177 = vmatpush.bf16.msra.mxu0 %v1603
    %2178 = vmatpush.bf16.msra.mxu0 %v1598
    %2179 = vmatpush.bf16.msra.mxu0 %v1593
    %2180 = vmatmul.bf16.gmra.mxu0 %v565
    %v2181 = vpop.f32.mrf.mxu0
    %v2182 = vadd.f32 %v2168, %v2181
    %v2183 = vpop.f32.mrf.mxu0
    %v2184 = vadd.f32 %v2170, %v2183
    %2185 = vdwg.mxu0
    %2186 = vmatpush.bf16.msra.mxu0 %v1668
    %2187 = vmatpush.bf16.msra.mxu0 %v1663
    %2188 = vmatpush.bf16.msra.mxu0 %v1658
    %2189 = vmatpush.bf16.msra.mxu0 %v1653
    %2190 = vmatpush.bf16.msra.mxu0 %v1648
    %2191 = vmatpush.bf16.msra.mxu0 %v1643
    %2192 = vmatpush.bf16.msra.mxu0 %v1638
    %2193 = vmatpush.bf16.msra.mxu0 %v1633
    %2194 = vmatmul.bf16.gmra.mxu0 %v566
    %v2195 = vpop.f32.mrf.mxu0
    %v2196 = vadd.f32 %v2182, %v2195
    %v2197 = vpop.f32.mrf.mxu0
    %v2198 = vadd.f32 %v2184, %v2197
    %2199 = vdwg.mxu0
    %2200 = vmatpush.bf16.msra.mxu0 %v1708
    %2201 = vmatpush.bf16.msra.mxu0 %v1703
    %2202 = vmatpush.bf16.msra.mxu0 %v1698
    %2203 = vmatpush.bf16.msra.mxu0 %v1693
    %2204 = vmatpush.bf16.msra.mxu0 %v1688
    %2205 = vmatpush.bf16.msra.mxu0 %v1683
    %2206 = vmatpush.bf16.msra.mxu0 %v1678
    %2207 = vmatpush.bf16.msra.mxu0 %v1673
    %2208 = vmatmul.bf16.gmra.mxu0 %v567
    %v2209 = vpop.f32.mrf.mxu0
    %v2210 = vadd.f32 %v2196, %v2209
    %v2211 = vpop.f32.mrf.mxu0
    %v2212 = vadd.f32 %v2198, %v2211
    %2213 = vdwg.mxu0
    %2214 = vmatpush.bf16.msra.mxu0 %v1748
    %2215 = vmatpush.bf16.msra.mxu0 %v1743
    %2216 = vmatpush.bf16.msra.mxu0 %v1738
    %2217 = vmatpush.bf16.msra.mxu0 %v1733
    %2218 = vmatpush.bf16.msra.mxu0 %v1728
    %2219 = vmatpush.bf16.msra.mxu0 %v1723
    %2220 = vmatpush.bf16.msra.mxu0 %v1718
    %2221 = vmatpush.bf16.msra.mxu0 %v1713
    %2222 = vmatmul.bf16.gmra.mxu0 %v568
    %v2223 = vpop.f32.mrf.mxu0
    %v2224 = vadd.f32 %v2210, %v2223
    %v2225 = vpop.f32.mrf.mxu0
    %v2226 = vadd.f32 %v2212, %v2225
    %2227 = vdwg.mxu0
    %2228 = vmatpush.bf16.msra.mxu0 %v1509
    %2229 = vmatpush.bf16.msra.mxu0 %v1504
    %2230 = vmatpush.bf16.msra.mxu0 %v1499
    %2231 = vmatpush.bf16.msra.mxu0 %v1494
    %2232 = vmatpush.bf16.msra.mxu0 %v1489
    %2233 = vmatpush.bf16.msra.mxu0 %v1484
    %2234 = vmatpush.bf16.msra.mxu0 %v1479
    %2235 = vmatpush.bf16.msra.mxu0 %v1474
    %2236 = vmatmul.bf16.gmra.mxu0 %v562
    %v2237 = vpop.f32.mrf.mxu0
    %v2238 = vadd.f32 %v532, %v2237
    %v2239 = vpop.f32.mrf.mxu0
    %v2240 = vadd.f32 %v532, %v2239
    %2241 = vdwg.mxu0
    %2242 = vmatpush.bf16.msra.mxu0 %v1549
    %2243 = vmatpush.bf16.msra.mxu0 %v1544
    %2244 = vmatpush.bf16.msra.mxu0 %v1539
    %2245 = vmatpush.bf16.msra.mxu0 %v1534
    %2246 = vmatpush.bf16.msra.mxu0 %v1529
    %2247 = vmatpush.bf16.msra.mxu0 %v1524
    %2248 = vmatpush.bf16.msra.mxu0 %v1519
    %2249 = vmatpush.bf16.msra.mxu0 %v1514
    %2250 = vmatmul.bf16.gmra.mxu0 %v563
    %v2251 = vpop.f32.mrf.mxu0
    %v2252 = vadd.f32 %v2238, %v2251
    %v2253 = vpop.f32.mrf.mxu0
    %v2254 = vadd.f32 %v2240, %v2253
    %2255 = vdwg.mxu0
    %2256 = vmatpush.bf16.msra.mxu0 %v1589
    %2257 = vmatpush.bf16.msra.mxu0 %v1584
    %2258 = vmatpush.bf16.msra.mxu0 %v1579
    %2259 = vmatpush.bf16.msra.mxu0 %v1574
    %2260 = vmatpush.bf16.msra.mxu0 %v1569
    %2261 = vmatpush.bf16.msra.mxu0 %v1564
    %2262 = vmatpush.bf16.msra.mxu0 %v1559
    %2263 = vmatpush.bf16.msra.mxu0 %v1554
    %2264 = vmatmul.bf16.gmra.mxu0 %v564
    %v2265 = vpop.f32.mrf.mxu0
    %v2266 = vadd.f32 %v2252, %v2265
    %v2267 = vpop.f32.mrf.mxu0
    %v2268 = vadd.f32 %v2254, %v2267
    %2269 = vdwg.mxu0
    %2270 = vmatpush.bf16.msra.mxu0 %v1629
    %2271 = vmatpush.bf16.msra.mxu0 %v1624
    %2272 = vmatpush.bf16.msra.mxu0 %v1619
    %2273 = vmatpush.bf16.msra.mxu0 %v1614
    %2274 = vmatpush.bf16.msra.mxu0 %v1609
    %2275 = vmatpush.bf16.msra.mxu0 %v1604
    %2276 = vmatpush.bf16.msra.mxu0 %v1599
    %2277 = vmatpush.bf16.msra.mxu0 %v1594
    %2278 = vmatmul.bf16.gmra.mxu0 %v565
    %v2279 = vpop.f32.mrf.mxu0
    %v2280 = vadd.f32 %v2266, %v2279
    %v2281 = vpop.f32.mrf.mxu0
    %v2282 = vadd.f32 %v2268, %v2281
    %2283 = vdwg.mxu0
    %2284 = vmatpush.bf16.msra.mxu0 %v1669
    %2285 = vmatpush.bf16.msra.mxu0 %v1664
    %2286 = vmatpush.bf16.msra.mxu0 %v1659
    %2287 = vmatpush.bf16.msra.mxu0 %v1654
    %2288 = vmatpush.bf16.msra.mxu0 %v1649
    %2289 = vmatpush.bf16.msra.mxu0 %v1644
    %2290 = vmatpush.bf16.msra.mxu0 %v1639
    %2291 = vmatpush.bf16.msra.mxu0 %v1634
    %2292 = vmatmul.bf16.gmra.mxu0 %v566
    %v2293 = vpop.f32.mrf.mxu0
    %v2294 = vadd.f32 %v2280, %v2293
    %v2295 = vpop.f32.mrf.mxu0
    %v2296 = vadd.f32 %v2282, %v2295
    %2297 = vdwg.mxu0
    %2298 = vmatpush.bf16.msra.mxu0 %v1709
    %2299 = vmatpush.bf16.msra.mxu0 %v1704
    %2300 = vmatpush.bf16.msra.mxu0 %v1699
    %2301 = vmatpush.bf16.msra.mxu0 %v1694
    %2302 = vmatpush.bf16.msra.mxu0 %v1689
    %2303 = vmatpush.bf16.msra.mxu0 %v1684
    %2304 = vmatpush.bf16.msra.mxu0 %v1679
    %2305 = vmatpush.bf16.msra.mxu0 %v1674
    %2306 = vmatmul.bf16.gmra.mxu0 %v567
    %v2307 = vpop.f32.mrf.mxu0
    %v2308 = vadd.f32 %v2294, %v2307
    %v2309 = vpop.f32.mrf.mxu0
    %v2310 = vadd.f32 %v2296, %v2309
    %2311 = vdwg.mxu0
    %2312 = vmatpush.bf16.msra.mxu0 %v1749
    %2313 = vmatpush.bf16.msra.mxu0 %v1744
    %2314 = vmatpush.bf16.msra.mxu0 %v1739
    %2315 = vmatpush.bf16.msra.mxu0 %v1734
    %2316 = vmatpush.bf16.msra.mxu0 %v1729
    %2317 = vmatpush.bf16.msra.mxu0 %v1724
    %2318 = vmatpush.bf16.msra.mxu0 %v1719
    %2319 = vmatpush.bf16.msra.mxu0 %v1714
    %2320 = vmatmul.bf16.gmra.mxu0 %v568
    %v2321 = vpop.f32.mrf.mxu0
    %v2322 = vadd.f32 %v2308, %v2321
    %v2323 = vpop.f32.mrf.mxu0
    %v2324 = vadd.f32 %v2310, %v2323
    %2325 = vdwg.mxu0
    %2326 = vmatpush.bf16.msra.mxu0 %v1510
    %2327 = vmatpush.bf16.msra.mxu0 %v1505
    %2328 = vmatpush.bf16.msra.mxu0 %v1500
    %2329 = vmatpush.bf16.msra.mxu0 %v1495
    %2330 = vmatpush.bf16.msra.mxu0 %v1490
    %2331 = vmatpush.bf16.msra.mxu0 %v1485
    %2332 = vmatpush.bf16.msra.mxu0 %v1480
    %2333 = vmatpush.bf16.msra.mxu0 %v1475
    %2334 = vmatmul.bf16.gmra.mxu0 %v562
    %v2335 = vpop.f32.mrf.mxu0
    %v2336 = vadd.f32 %v533, %v2335
    %v2337 = vpop.f32.mrf.mxu0
    %v2338 = vadd.f32 %v533, %v2337
    %2339 = vdwg.mxu0
    %2340 = vmatpush.bf16.msra.mxu0 %v1550
    %2341 = vmatpush.bf16.msra.mxu0 %v1545
    %2342 = vmatpush.bf16.msra.mxu0 %v1540
    %2343 = vmatpush.bf16.msra.mxu0 %v1535
    %2344 = vmatpush.bf16.msra.mxu0 %v1530
    %2345 = vmatpush.bf16.msra.mxu0 %v1525
    %2346 = vmatpush.bf16.msra.mxu0 %v1520
    %2347 = vmatpush.bf16.msra.mxu0 %v1515
    %2348 = vmatmul.bf16.gmra.mxu0 %v563
    %v2349 = vpop.f32.mrf.mxu0
    %v2350 = vadd.f32 %v2336, %v2349
    %v2351 = vpop.f32.mrf.mxu0
    %v2352 = vadd.f32 %v2338, %v2351
    %2353 = vdwg.mxu0
    %2354 = vmatpush.bf16.msra.mxu0 %v1590
    %2355 = vmatpush.bf16.msra.mxu0 %v1585
    %2356 = vmatpush.bf16.msra.mxu0 %v1580
    %2357 = vmatpush.bf16.msra.mxu0 %v1575
    %2358 = vmatpush.bf16.msra.mxu0 %v1570
    %2359 = vmatpush.bf16.msra.mxu0 %v1565
    %2360 = vmatpush.bf16.msra.mxu0 %v1560
    %2361 = vmatpush.bf16.msra.mxu0 %v1555
    %2362 = vmatmul.bf16.gmra.mxu0 %v564
    %v2363 = vpop.f32.mrf.mxu0
    %v2364 = vadd.f32 %v2350, %v2363
    %v2365 = vpop.f32.mrf.mxu0
    %v2366 = vadd.f32 %v2352, %v2365
    %2367 = vdwg.mxu0
    %2368 = vmatpush.bf16.msra.mxu0 %v1630
    %2369 = vmatpush.bf16.msra.mxu0 %v1625
    %2370 = vmatpush.bf16.msra.mxu0 %v1620
    %2371 = vmatpush.bf16.msra.mxu0 %v1615
    %2372 = vmatpush.bf16.msra.mxu0 %v1610
    %2373 = vmatpush.bf16.msra.mxu0 %v1605
    %2374 = vmatpush.bf16.msra.mxu0 %v1600
    %2375 = vmatpush.bf16.msra.mxu0 %v1595
    %2376 = vmatmul.bf16.gmra.mxu0 %v565
    %v2377 = vpop.f32.mrf.mxu0
    %v2378 = vadd.f32 %v2364, %v2377
    %v2379 = vpop.f32.mrf.mxu0
    %v2380 = vadd.f32 %v2366, %v2379
    %2381 = vdwg.mxu0
    %2382 = vmatpush.bf16.msra.mxu0 %v1670
    %2383 = vmatpush.bf16.msra.mxu0 %v1665
    %2384 = vmatpush.bf16.msra.mxu0 %v1660
    %2385 = vmatpush.bf16.msra.mxu0 %v1655
    %2386 = vmatpush.bf16.msra.mxu0 %v1650
    %2387 = vmatpush.bf16.msra.mxu0 %v1645
    %2388 = vmatpush.bf16.msra.mxu0 %v1640
    %2389 = vmatpush.bf16.msra.mxu0 %v1635
    %2390 = vmatmul.bf16.gmra.mxu0 %v566
    %v2391 = vpop.f32.mrf.mxu0
    %v2392 = vadd.f32 %v2378, %v2391
    %v2393 = vpop.f32.mrf.mxu0
    %v2394 = vadd.f32 %v2380, %v2393
    %2395 = vdwg.mxu0
    %2396 = vmatpush.bf16.msra.mxu0 %v1710
    %2397 = vmatpush.bf16.msra.mxu0 %v1705
    %2398 = vmatpush.bf16.msra.mxu0 %v1700
    %2399 = vmatpush.bf16.msra.mxu0 %v1695
    %2400 = vmatpush.bf16.msra.mxu0 %v1690
    %2401 = vmatpush.bf16.msra.mxu0 %v1685
    %2402 = vmatpush.bf16.msra.mxu0 %v1680
    %2403 = vmatpush.bf16.msra.mxu0 %v1675
    %2404 = vmatmul.bf16.gmra.mxu0 %v567
    %v2405 = vpop.f32.mrf.mxu0
    %v2406 = vadd.f32 %v2392, %v2405
    %v2407 = vpop.f32.mrf.mxu0
    %v2408 = vadd.f32 %v2394, %v2407
    %2409 = vdwg.mxu0
    %2410 = vmatpush.bf16.msra.mxu0 %v1750
    %2411 = vmatpush.bf16.msra.mxu0 %v1745
    %2412 = vmatpush.bf16.msra.mxu0 %v1740
    %2413 = vmatpush.bf16.msra.mxu0 %v1735
    %2414 = vmatpush.bf16.msra.mxu0 %v1730
    %2415 = vmatpush.bf16.msra.mxu0 %v1725
    %2416 = vmatpush.bf16.msra.mxu0 %v1720
    %2417 = vmatpush.bf16.msra.mxu0 %v1715
    %2418 = vmatmul.bf16.gmra.mxu0 %v568
    %v2419 = vpop.f32.mrf.mxu0
    %v2420 = vadd.f32 %v2406, %v2419
    %v2421 = vpop.f32.mrf.mxu0
    %v2422 = vadd.f32 %v2408, %v2421
    %2423 = vdwg.mxu0
    %2424 = vmatpush.bf16.msra.mxu0 %v1511
    %2425 = vmatpush.bf16.msra.mxu0 %v1506
    %2426 = vmatpush.bf16.msra.mxu0 %v1501
    %2427 = vmatpush.bf16.msra.mxu0 %v1496
    %2428 = vmatpush.bf16.msra.mxu0 %v1491
    %2429 = vmatpush.bf16.msra.mxu0 %v1486
    %2430 = vmatpush.bf16.msra.mxu0 %v1481
    %2431 = vmatpush.bf16.msra.mxu0 %v1476
    %2432 = vmatmul.bf16.gmra.mxu0 %v562
    %v2433 = vpop.f32.mrf.mxu0
    %v2434 = vadd.f32 %v534, %v2433
    %v2435 = vpop.f32.mrf.mxu0
    %v2436 = vadd.f32 %v534, %v2435
    %2437 = vdwg.mxu0
    %2438 = vmatpush.bf16.msra.mxu0 %v1551
    %2439 = vmatpush.bf16.msra.mxu0 %v1546
    %2440 = vmatpush.bf16.msra.mxu0 %v1541
    %2441 = vmatpush.bf16.msra.mxu0 %v1536
    %2442 = vmatpush.bf16.msra.mxu0 %v1531
    %2443 = vmatpush.bf16.msra.mxu0 %v1526
    %2444 = vmatpush.bf16.msra.mxu0 %v1521
    %2445 = vmatpush.bf16.msra.mxu0 %v1516
    %2446 = vmatmul.bf16.gmra.mxu0 %v563
    %v2447 = vpop.f32.mrf.mxu0
    %v2448 = vadd.f32 %v2434, %v2447
    %v2449 = vpop.f32.mrf.mxu0
    %v2450 = vadd.f32 %v2436, %v2449
    %2451 = vdwg.mxu0
    %2452 = vmatpush.bf16.msra.mxu0 %v1591
    %2453 = vmatpush.bf16.msra.mxu0 %v1586
    %2454 = vmatpush.bf16.msra.mxu0 %v1581
    %2455 = vmatpush.bf16.msra.mxu0 %v1576
    %2456 = vmatpush.bf16.msra.mxu0 %v1571
    %2457 = vmatpush.bf16.msra.mxu0 %v1566
    %2458 = vmatpush.bf16.msra.mxu0 %v1561
    %2459 = vmatpush.bf16.msra.mxu0 %v1556
    %2460 = vmatmul.bf16.gmra.mxu0 %v564
    %v2461 = vpop.f32.mrf.mxu0
    %v2462 = vadd.f32 %v2448, %v2461
    %v2463 = vpop.f32.mrf.mxu0
    %v2464 = vadd.f32 %v2450, %v2463
    %2465 = vdwg.mxu0
    %2466 = vmatpush.bf16.msra.mxu0 %v1631
    %2467 = vmatpush.bf16.msra.mxu0 %v1626
    %2468 = vmatpush.bf16.msra.mxu0 %v1621
    %2469 = vmatpush.bf16.msra.mxu0 %v1616
    %2470 = vmatpush.bf16.msra.mxu0 %v1611
    %2471 = vmatpush.bf16.msra.mxu0 %v1606
    %2472 = vmatpush.bf16.msra.mxu0 %v1601
    %2473 = vmatpush.bf16.msra.mxu0 %v1596
    %2474 = vmatmul.bf16.gmra.mxu0 %v565
    %v2475 = vpop.f32.mrf.mxu0
    %v2476 = vadd.f32 %v2462, %v2475
    %v2477 = vpop.f32.mrf.mxu0
    %v2478 = vadd.f32 %v2464, %v2477
    %2479 = vdwg.mxu0
    %2480 = vmatpush.bf16.msra.mxu0 %v1671
    %2481 = vmatpush.bf16.msra.mxu0 %v1666
    %2482 = vmatpush.bf16.msra.mxu0 %v1661
    %2483 = vmatpush.bf16.msra.mxu0 %v1656
    %2484 = vmatpush.bf16.msra.mxu0 %v1651
    %2485 = vmatpush.bf16.msra.mxu0 %v1646
    %2486 = vmatpush.bf16.msra.mxu0 %v1641
    %2487 = vmatpush.bf16.msra.mxu0 %v1636
    %2488 = vmatmul.bf16.gmra.mxu0 %v566
    %v2489 = vpop.f32.mrf.mxu0
    %v2490 = vadd.f32 %v2476, %v2489
    %v2491 = vpop.f32.mrf.mxu0
    %v2492 = vadd.f32 %v2478, %v2491
    %2493 = vdwg.mxu0
    %2494 = vmatpush.bf16.msra.mxu0 %v1711
    %2495 = vmatpush.bf16.msra.mxu0 %v1706
    %2496 = vmatpush.bf16.msra.mxu0 %v1701
    %2497 = vmatpush.bf16.msra.mxu0 %v1696
    %2498 = vmatpush.bf16.msra.mxu0 %v1691
    %2499 = vmatpush.bf16.msra.mxu0 %v1686
    %2500 = vmatpush.bf16.msra.mxu0 %v1681
    %2501 = vmatpush.bf16.msra.mxu0 %v1676
    %2502 = vmatmul.bf16.gmra.mxu0 %v567
    %v2503 = vpop.f32.mrf.mxu0
    %v2504 = vadd.f32 %v2490, %v2503
    %v2505 = vpop.f32.mrf.mxu0
    %v2506 = vadd.f32 %v2492, %v2505
    %2507 = vdwg.mxu0
    %2508 = vmatpush.bf16.msra.mxu0 %v1751
    %2509 = vmatpush.bf16.msra.mxu0 %v1746
    %2510 = vmatpush.bf16.msra.mxu0 %v1741
    %2511 = vmatpush.bf16.msra.mxu0 %v1736
    %2512 = vmatpush.bf16.msra.mxu0 %v1731
    %2513 = vmatpush.bf16.msra.mxu0 %v1726
    %2514 = vmatpush.bf16.msra.mxu0 %v1721
    %2515 = vmatpush.bf16.msra.mxu0 %v1716
    %2516 = vmatmul.bf16.gmra.mxu0 %v568
    %v2517 = vpop.f32.mrf.mxu0
    %v2518 = vadd.f32 %v2504, %v2517
    %v2519 = vpop.f32.mrf.mxu0
    %v2520 = vadd.f32 %v2506, %v2519
    %2521 = vdwg.mxu0
    %v2522 = vmax.f32 %v2126, 0.0
    %v2523 = vmax.f32 %v2224, 0.0
    %v2524 = vmax.f32 %v2322, 0.0
    %v2525 = vmax.f32 %v2420, 0.0
    %v2526 = vmax.f32 %v2518, 0.0
    %v2527 = vmax.f32 %v2128, 0.0
    %v2528 = vmax.f32 %v2226, 0.0
    %v2529 = vmax.f32 %v2324, 0.0
    %v2530 = vmax.f32 %v2422, 0.0
    %v2531 = vmax.f32 %v2520, 0.0
    %v2532 = vpack.c.bf16 %v2527, %v2522
    %v2533 = vpack.c.bf16 %v2528, %v2523
    %v2534 = vpack.c.bf16 %v2529, %v2524
    %v2535 = vpack.c.bf16 %v2530, %v2525
    %v2536 = vpack.c.bf16 %v2531, %v2526
    %v2537 = vld [vmem:[#allocation6] sm:$0xff]
    %v2538 = vld [vmem:[#allocation6 + $0x8] sm:$0xf]
    %v2539 = vld [vmem:[#allocation6 + $0xc] sm:$0xff]
    %v2540 = vld [vmem:[#allocation6 + $0x14] sm:$0xf]
    %v2541 = vld [vmem:[#allocation6 + $0x18] sm:$0xff]
    %v2542 = vld [vmem:[#allocation6 + $0x20] sm:$0xf]
    %v2543 = vld [vmem:[#allocation6 + $0x24] sm:$0xff]
    %v2544 = vld [vmem:[#allocation6 + $0x2c] sm:$0xf]
    %v2545 = vld [vmem:[#allocation6 + $0x30] sm:$0xff]
    %v2546 = vld [vmem:[#allocation6 + $0x38] sm:$0xf]
    %v2547 = vld [vmem:[#allocation6 + $0x3c] sm:$0xff]
    %v2548 = vld [vmem:[#allocation6 + $0x44] sm:$0xf]
    %v2549 = vld [vmem:[#allocation6 + $0x48] sm:$0xff]
    %v2550 = vld [vmem:[#allocation6 + $0x50] sm:$0xf]
    %v2551 = vld [vmem:[#allocation6 + $0x54] sm:$0xff]
    %v2552 = vld [vmem:[#allocation6 + $0x5c] sm:$0xf]
    %v2553 = vld [vmem:[#allocation6 + $0x60] sm:$0xff]
    %v2554 = vld [vmem:[#allocation6 + $0x68] sm:$0xf]
    %v2555 = vld [vmem:[#allocation6 + $0x6c] sm:$0xff]
    %v2556 = vld [vmem:[#allocation6 + $0x74] sm:$0xf]
    %v2557 = vld [vmem:[#allocation6 + $0x78] sm:$0xff]
    %v2558 = vld [vmem:[#allocation6 + $0x80] sm:$0xf]
    %v2559 = vld [vmem:[#allocation6 + $0x84] sm:$0xff]
    %v2560 = vld [vmem:[#allocation6 + $0x8c] sm:$0xf]
    %v2561 = vld [vmem:[#allocation6 + $0x90] sm:$0xff]
    %v2562 = vld [vmem:[#allocation6 + $0x98] sm:$0xf]
    %v2563 = vld [vmem:[#allocation6 + $0x9c] sm:$0xff]
    %v2564 = vld [vmem:[#allocation6 + $0xa4] sm:$0xf]
    %v2565 = vld [vmem:[#allocation6 + $0xa8] sm:$0xff]
    %v2566 = vld [vmem:[#allocation6 + $0xb0] sm:$0xf]
    %v2567 = vld [vmem:[#allocation6 + $0xb4] sm:$0xff]
    %v2568 = vld [vmem:[#allocation6 + $0xbc] sm:$0xf]
    %v2569 = vld [vmem:[#allocation6 + $0xc0] sm:$0xff]
    %v2570 = vld [vmem:[#allocation6 + $0xc8] sm:$0xf]
    %v2571 = vld [vmem:[#allocation6 + $0xcc] sm:$0xff]
    %v2572 = vld [vmem:[#allocation6 + $0xd4] sm:$0xf]
    %v2573 = vld [vmem:[#allocation6 + $0xd8] sm:$0xff]
    %v2574 = vld [vmem:[#allocation6 + $0xe0] sm:$0xf]
    %v2575 = vld [vmem:[#allocation6 + $0xe4] sm:$0xff]
    %v2576 = vld [vmem:[#allocation6 + $0xec] sm:$0xf]
    %v2577 = vld [vmem:[#allocation6 + $0xf0] sm:$0xff]
    %v2578 = vld [vmem:[#allocation6 + $0xf8] sm:$0xf]
    %v2579 = vld [vmem:[#allocation6 + $0xfc] sm:$0xff]
    %v2580 = vld [vmem:[#allocation6 + $0x104] sm:$0xf]
    %v2581 = vld [vmem:[#allocation6 + $0x108] sm:$0xff]
    %v2582 = vld [vmem:[#allocation6 + $0x110] sm:$0xf]
    %v2583 = vld [vmem:[#allocation6 + $0x114] sm:$0xff]
    %v2584 = vld [vmem:[#allocation6 + $0x11c] sm:$0xf]
    %v2585 = vld [vmem:[#allocation6 + $0x120] sm:$0xff]
    %v2586 = vld [vmem:[#allocation6 + $0x128] sm:$0xf]
    %v2587 = vld [vmem:[#allocation6 + $0x12c] sm:$0xff]
    %v2588 = vld [vmem:[#allocation6 + $0x134] sm:$0xf]
    %v2589 = vld [vmem:[#allocation6 + $0x138] sm:$0xff]
    %v2590 = vld [vmem:[#allocation6 + $0x140] sm:$0xf]
    %v2591 = vld [vmem:[#allocation6 + $0x144] sm:$0xff]
    %v2592 = vld [vmem:[#allocation6 + $0x14c] sm:$0xf]
    %v2593 = vld [vmem:[#allocation6 + $0x150] sm:$0xff]
    %v2594 = vld [vmem:[#allocation6 + $0x158] sm:$0xf]
    %v2595 = vld [vmem:[#allocation6 + $0x15c] sm:$0xff]
    %v2596 = vld [vmem:[#allocation6 + $0x164] sm:$0xf]
    %v2597 = vld [vmem:[#allocation6 + $0x168] sm:$0xff]
    %v2598 = vld [vmem:[#allocation6 + $0x170] sm:$0xf]
    %v2599 = vld [vmem:[#allocation6 + $0x174] sm:$0xff]
    %v2600 = vld [vmem:[#allocation6 + $0x17c] sm:$0xf]
    %v2601 = vld [vmem:[#allocation6 + $0x180] sm:$0xff]
    %v2602 = vld [vmem:[#allocation6 + $0x188] sm:$0xf]
    %v2603 = vld [vmem:[#allocation6 + $0x18c] sm:$0xff]
    %v2604 = vld [vmem:[#allocation6 + $0x194] sm:$0xf]
    %v2605 = vld [vmem:[#allocation6 + $0x198] sm:$0xff]
    %v2606 = vld [vmem:[#allocation6 + $0x1a0] sm:$0xf]
    %v2607 = vld [vmem:[#allocation6 + $0x1a4] sm:$0xff]
    %v2608 = vld [vmem:[#allocation6 + $0x1ac] sm:$0xf]
    %v2609 = vld [vmem:[#allocation6 + $0x1b0] sm:$0xff]
    %v2610 = vld [vmem:[#allocation6 + $0x1b8] sm:$0xf]
    %v2611 = vld [vmem:[#allocation6 + $0x1bc] sm:$0xff]
    %v2612 = vld [vmem:[#allocation6 + $0x1c4] sm:$0xf]
    %v2613 = vld [vmem:[#allocation6 + $0x1c8] sm:$0xff]
    %v2614 = vld [vmem:[#allocation6 + $0x1d0] sm:$0xf]
    %v2615 = vld [vmem:[#allocation6 + $0x1d4] sm:$0xff]
    %v2616 = vld [vmem:[#allocation6 + $0x1dc] sm:$0xf]
    %v2617 = vld [vmem:[#allocation6 + $0x1e0] sm:$0xff]
    %v2618 = vld [vmem:[#allocation6 + $0x1e8] sm:$0xf]
    %v2619 = vld [vmem:[#allocation6 + $0x1ec] sm:$0xff]
    %v2620 = vld [vmem:[#allocation6 + $0x1f4] sm:$0xf]
    %v2621 = vld [vmem:[#allocation6 + $0x1f8] sm:$0xff]
    %v2622 = vld [vmem:[#allocation6 + $0x200] sm:$0xf]
    %v2623 = vld [vmem:[#allocation6 + $0x204] sm:$0xff]
    %v2624 = vld [vmem:[#allocation6 + $0x20c] sm:$0xf]
    %v2625 = vld [vmem:[#allocation6 + $0x210] sm:$0xff]
    %v2626 = vld [vmem:[#allocation6 + $0x218] sm:$0xf]
    %v2627 = vld [vmem:[#allocation6 + $0x21c] sm:$0xff]
    %v2628 = vld [vmem:[#allocation6 + $0x224] sm:$0xf]
    %v2629 = vld [vmem:[#allocation6 + $0x228] sm:$0xff]
    %v2630 = vld [vmem:[#allocation6 + $0x230] sm:$0xf]
    %v2631 = vld [vmem:[#allocation6 + $0x234] sm:$0xff]
    %v2632 = vld [vmem:[#allocation6 + $0x23c] sm:$0xf]
    %v2633 = vld [vmem:[#allocation6 + $0x240] sm:$0xff]
    %v2634 = vld [vmem:[#allocation6 + $0x248] sm:$0xf]
    %v2635 = vld [vmem:[#allocation6 + $0x24c] sm:$0xff]
    %v2636 = vld [vmem:[#allocation6 + $0x254] sm:$0xf]
    %v2637 = vld [vmem:[#allocation6 + $0x258] sm:$0xff]
    %v2638 = vld [vmem:[#allocation6 + $0x260] sm:$0xf]
    %v2639 = vld [vmem:[#allocation6 + $0x264] sm:$0xff]
    %v2640 = vld [vmem:[#allocation6 + $0x26c] sm:$0xf]
    %v2641 = vld [vmem:[#allocation6 + $0x270] sm:$0xff]
    %v2642 = vld [vmem:[#allocation6 + $0x278] sm:$0xf]
    %v2643 = vld [vmem:[#allocation6 + $0x27c] sm:$0xff]
    %v2644 = vld [vmem:[#allocation6 + $0x284] sm:$0xf]
    %v2645 = vld [vmem:[#allocation6 + $0x288] sm:$0xff]
    %v2646 = vld [vmem:[#allocation6 + $0x290] sm:$0xf]
    %v2647 = vld [vmem:[#allocation6 + $0x294] sm:$0xff]
    %v2648 = vld [vmem:[#allocation6 + $0x29c] sm:$0xf]
    %v2649 = vld [vmem:[#allocation6 + $0x2a0] sm:$0xff]
    %v2650 = vld [vmem:[#allocation6 + $0x2a8] sm:$0xf]
    %v2651 = vld [vmem:[#allocation6 + $0x2ac] sm:$0xff]
    %v2652 = vld [vmem:[#allocation6 + $0x2b4] sm:$0xf]
    %v2653 = vld [vmem:[#allocation6 + $0x2b8] sm:$0xff]
    %v2654 = vld [vmem:[#allocation6 + $0x2c0] sm:$0xf]
    %v2655 = vld [vmem:[#allocation6 + $0x2c4] sm:$0xff]
    %v2656 = vld [vmem:[#allocation6 + $0x2cc] sm:$0xf]
    %v2657 = vld [vmem:[#allocation6 + $0x2d0] sm:$0xff]
    %v2658 = vld [vmem:[#allocation6 + $0x2d8] sm:$0xf]
    %v2659 = vld [vmem:[#allocation6 + $0x2dc] sm:$0xff]
    %v2660 = vld [vmem:[#allocation6 + $0x2e4] sm:$0xf]
    %v2661 = vld [vmem:[#allocation6 + $0x2e8] sm:$0xff]
    %v2662 = vld [vmem:[#allocation6 + $0x2f0] sm:$0xf]
    %v2663 = vld [vmem:[#allocation6 + $0x2f4] sm:$0xff]
    %v2664 = vld [vmem:[#allocation6 + $0x2fc] sm:$0xf]
    %v2665 = vld [vmem:[#allocation6 + $0x300] sm:$0xff]
    %v2666 = vld [vmem:[#allocation6 + $0x308] sm:$0xf]
    %v2667 = vld [vmem:[#allocation6 + $0x30c] sm:$0xff]
    %v2668 = vld [vmem:[#allocation6 + $0x314] sm:$0xf]
    %v2669 = vld [vmem:[#allocation6 + $0x318] sm:$0xff]
    %v2670 = vld [vmem:[#allocation6 + $0x320] sm:$0xf]
    %v2671 = vld [vmem:[#allocation6 + $0x324] sm:$0xff]
    %v2672 = vld [vmem:[#allocation6 + $0x32c] sm:$0xf]
    %v2673 = vld [vmem:[#allocation6 + $0x330] sm:$0xff]
    %v2674 = vld [vmem:[#allocation6 + $0x338] sm:$0xf]
    %v2675 = vld [vmem:[#allocation6 + $0x33c] sm:$0xff]
    %v2676 = vld [vmem:[#allocation6 + $0x344] sm:$0xf]
    %v2677 = vld [vmem:[#allocation6 + $0x348] sm:$0xff]
    %v2678 = vld [vmem:[#allocation6 + $0x350] sm:$0xf]
    %v2679 = vld [vmem:[#allocation6 + $0x354] sm:$0xff]
    %v2680 = vld [vmem:[#allocation6 + $0x35c] sm:$0xf]
    %v2681 = vld [vmem:[#allocation6 + $0x360] sm:$0xff]
    %v2682 = vld [vmem:[#allocation6 + $0x368] sm:$0xf]
    %v2683 = vld [vmem:[#allocation6 + $0x36c] sm:$0xff]
    %v2684 = vld [vmem:[#allocation6 + $0x374] sm:$0xf]
    %v2685 = vld [vmem:[#allocation6 + $0x378] sm:$0xff]
    %v2686 = vld [vmem:[#allocation6 + $0x380] sm:$0xf]
    %v2687 = vld [vmem:[#allocation6 + $0x384] sm:$0xff]
    %v2688 = vld [vmem:[#allocation6 + $0x38c] sm:$0xf]
    %v2689 = vld [vmem:[#allocation6 + $0x390] sm:$0xff]
    %v2690 = vld [vmem:[#allocation6 + $0x398] sm:$0xf]
    %v2691 = vld [vmem:[#allocation6 + $0x39c] sm:$0xff]
    %v2692 = vld [vmem:[#allocation6 + $0x3a4] sm:$0xf]
    %v2693 = vld [vmem:[#allocation6 + $0x3a8] sm:$0xff]
    %v2694 = vld [vmem:[#allocation6 + $0x3b0] sm:$0xf]
    %v2695 = vld [vmem:[#allocation6 + $0x3b4] sm:$0xff]
    %v2696 = vld [vmem:[#allocation6 + $0x3bc] sm:$0xf]
    %v2697 = vld [vmem:[#allocation7] sm:$0x7]
    %v2699 = vperm.slane %v2697, 0
    %v2700 = vperm.slane %v2697, 1
    %v2701 = vperm.slane %v2697, 2
    %v2865 = vunpack.c.l.b16 %v2537
    %v2866 = vunpack.c.h.b16 %v2537
    %v2867 = vunpack.c.l.b16 %v2538
    %v2868 = vunpack.c.l.b16 %v2539
    %v2869 = vunpack.c.h.b16 %v2539
    %v2870 = vunpack.c.l.b16 %v2540
    %v2871 = vunpack.c.l.b16 %v2541
    %v2872 = vunpack.c.h.b16 %v2541
    %v2873 = vunpack.c.l.b16 %v2542
    %v2874 = vunpack.c.l.b16 %v2543
    %v2875 = vunpack.c.h.b16 %v2543
    %v2876 = vunpack.c.l.b16 %v2544
    %v2877 = vunpack.c.l.b16 %v2545
    %v2878 = vunpack.c.h.b16 %v2545
    %v2879 = vunpack.c.l.b16 %v2546
    %v2880 = vunpack.c.l.b16 %v2547
    %v2881 = vunpack.c.h.b16 %v2547
    %v2882 = vunpack.c.l.b16 %v2548
    %v2883 = vunpack.c.l.b16 %v2549
    %v2884 = vunpack.c.h.b16 %v2549
    %v2885 = vunpack.c.l.b16 %v2550
    %v2886 = vunpack.c.l.b16 %v2551
    %v2887 = vunpack.c.h.b16 %v2551
    %v2888 = vunpack.c.l.b16 %v2552
    %v2889 = vunpack.c.l.b16 %v2553
    %v2890 = vunpack.c.h.b16 %v2553
    %v2891 = vunpack.c.l.b16 %v2554
    %v2892 = vunpack.c.l.b16 %v2555
    %v2893 = vunpack.c.h.b16 %v2555
    %v2894 = vunpack.c.l.b16 %v2556
    %v2895 = vunpack.c.l.b16 %v2557
    %v2896 = vunpack.c.h.b16 %v2557
    %v2897 = vunpack.c.l.b16 %v2558
    %v2898 = vunpack.c.l.b16 %v2559
    %v2899 = vunpack.c.h.b16 %v2559
    %v2900 = vunpack.c.l.b16 %v2560
    %v2901 = vunpack.c.l.b16 %v2561
    %v2902 = vunpack.c.h.b16 %v2561
    %v2903 = vunpack.c.l.b16 %v2562
    %v2904 = vunpack.c.l.b16 %v2563
    %v2905 = vunpack.c.h.b16 %v2563
    %v2906 = vunpack.c.l.b16 %v2564
    %v2907 = vunpack.c.l.b16 %v2565
    %v2908 = vunpack.c.h.b16 %v2565
    %v2909 = vunpack.c.l.b16 %v2566
    %v2910 = vunpack.c.l.b16 %v2567
    %v2911 = vunpack.c.h.b16 %v2567
    %v2912 = vunpack.c.l.b16 %v2568
    %v2913 = vunpack.c.l.b16 %v2569
    %v2914 = vunpack.c.h.b16 %v2569
    %v2915 = vunpack.c.l.b16 %v2570
    %v2916 = vunpack.c.l.b16 %v2571
    %v2917 = vunpack.c.h.b16 %v2571
    %v2918 = vunpack.c.l.b16 %v2572
    %v2919 = vunpack.c.l.b16 %v2573
    %v2920 = vunpack.c.h.b16 %v2573
    %v2921 = vunpack.c.l.b16 %v2574
    %v2922 = vunpack.c.l.b16 %v2575
    %v2923 = vunpack.c.h.b16 %v2575
    %v2924 = vunpack.c.l.b16 %v2576
    %v2925 = vunpack.c.l.b16 %v2577
    %v2926 = vunpack.c.h.b16 %v2577
    %v2927 = vunpack.c.l.b16 %v2578
    %v2928 = vunpack.c.l.b16 %v2579
    %v2929 = vunpack.c.h.b16 %v2579
    %v2930 = vunpack.c.l.b16 %v2580
    %v2931 = vunpack.c.l.b16 %v2581
    %v2932 = vunpack.c.h.b16 %v2581
    %v2933 = vunpack.c.l.b16 %v2582
    %v2934 = vunpack.c.l.b16 %v2583
    %v2935 = vunpack.c.h.b16 %v2583
    %v2936 = vunpack.c.l.b16 %v2584
    %v2937 = vunpack.c.l.b16 %v2585
    %v2938 = vunpack.c.h.b16 %v2585
    %v2939 = vunpack.c.l.b16 %v2586
    %v2940 = vunpack.c.l.b16 %v2587
    %v2941 = vunpack.c.h.b16 %v2587
    %v2942 = vunpack.c.l.b16 %v2588
    %v2943 = vunpack.c.l.b16 %v2589
    %v2944 = vunpack.c.h.b16 %v2589
    %v2945 = vunpack.c.l.b16 %v2590
    %v2946 = vunpack.c.l.b16 %v2591
    %v2947 = vunpack.c.h.b16 %v2591
    %v2948 = vunpack.c.l.b16 %v2592
    %v2949 = vunpack.c.l.b16 %v2593
    %v2950 = vunpack.c.h.b16 %v2593
    %v2951 = vunpack.c.l.b16 %v2594
    %v2952 = vunpack.c.l.b16 %v2595
    %v2953 = vunpack.c.h.b16 %v2595
    %v2954 = vunpack.c.l.b16 %v2596
    %v2955 = vunpack.c.l.b16 %v2597
    %v2956 = vunpack.c.h.b16 %v2597
    %v2957 = vunpack.c.l.b16 %v2598
    %v2958 = vunpack.c.l.b16 %v2599
    %v2959 = vunpack.c.h.b16 %v2599
    %v2960 = vunpack.c.l.b16 %v2600
    %v2961 = vunpack.c.l.b16 %v2601
    %v2962 = vunpack.c.h.b16 %v2601
    %v2963 = vunpack.c.l.b16 %v2602
    %v2964 = vunpack.c.l.b16 %v2603
    %v2965 = vunpack.c.h.b16 %v2603
    %v2966 = vunpack.c.l.b16 %v2604
    %v2967 = vunpack.c.l.b16 %v2605
    %v2968 = vunpack.c.h.b16 %v2605
    %v2969 = vunpack.c.l.b16 %v2606
    %v2970 = vunpack.c.l.b16 %v2607
    %v2971 = vunpack.c.h.b16 %v2607
    %v2972 = vunpack.c.l.b16 %v2608
    %v2973 = vunpack.c.l.b16 %v2609
    %v2974 = vunpack.c.h.b16 %v2609
    %v2975 = vunpack.c.l.b16 %v2610
    %v2976 = vunpack.c.l.b16 %v2611
    %v2977 = vunpack.c.h.b16 %v2611
    %v2978 = vunpack.c.l.b16 %v2612
    %v2979 = vunpack.c.l.b16 %v2613
    %v2980 = vunpack.c.h.b16 %v2613
    %v2981 = vunpack.c.l.b16 %v2614
    %v2982 = vunpack.c.l.b16 %v2615
    %v2983 = vunpack.c.h.b16 %v2615
    %v2984 = vunpack.c.l.b16 %v2616
    %v2985 = vunpack.c.l.b16 %v2617
    %v2986 = vunpack.c.h.b16 %v2617
    %v2987 = vunpack.c.l.b16 %v2618
    %v2988 = vunpack.c.l.b16 %v2619
    %v2989 = vunpack.c.h.b16 %v2619
    %v2990 = vunpack.c.l.b16 %v2620
    %v2991 = vunpack.c.l.b16 %v2621
    %v2992 = vunpack.c.h.b16 %v2621
    %v2993 = vunpack.c.l.b16 %v2622
    %v2994 = vunpack.c.l.b16 %v2623
    %v2995 = vunpack.c.h.b16 %v2623
    %v2996 = vunpack.c.l.b16 %v2624
    %v2997 = vunpack.c.l.b16 %v2625
    %v2998 = vunpack.c.h.b16 %v2625
    %v2999 = vunpack.c.l.b16 %v2626
    %v3000 = vunpack.c.l.b16 %v2627
    %v3001 = vunpack.c.h.b16 %v2627
    %v3002 = vunpack.c.l.b16 %v2628
    %v3003 = vunpack.c.l.b16 %v2629
    %v3004 = vunpack.c.h.b16 %v2629
    %v3005 = vunpack.c.l.b16 %v2630
    %v3006 = vunpack.c.l.b16 %v2631
    %v3007 = vunpack.c.h.b16 %v2631
    %v3008 = vunpack.c.l.b16 %v2632
    %v3009 = vunpack.c.l.b16 %v2633
    %v3010 = vunpack.c.h.b16 %v2633
    %v3011 = vunpack.c.l.b16 %v2634
    %v3012 = vunpack.c.l.b16 %v2635
    %v3013 = vunpack.c.h.b16 %v2635
    %v3014 = vunpack.c.l.b16 %v2636
    %v3015 = vunpack.c.l.b16 %v2637
    %v3016 = vunpack.c.h.b16 %v2637
    %v3017 = vunpack.c.l.b16 %v2638
    %v3018 = vunpack.c.l.b16 %v2639
    %v3019 = vunpack.c.h.b16 %v2639
    %v3020 = vunpack.c.l.b16 %v2640
    %v3021 = vunpack.c.l.b16 %v2641
    %v3022 = vunpack.c.h.b16 %v2641
    %v3023 = vunpack.c.l.b16 %v2642
    %v3024 = vunpack.c.l.b16 %v2643
    %v3025 = vunpack.c.h.b16 %v2643
    %v3026 = vunpack.c.l.b16 %v2644
    %v3027 = vunpack.c.l.b16 %v2645
    %v3028 = vunpack.c.h.b16 %v2645
    %v3029 = vunpack.c.l.b16 %v2646
    %v3030 = vunpack.c.l.b16 %v2647
    %v3031 = vunpack.c.h.b16 %v2647
    %v3032 = vunpack.c.l.b16 %v2648
    %v3033 = vunpack.c.l.b16 %v2649
    %v3034 = vunpack.c.h.b16 %v2649
    %v3035 = vunpack.c.l.b16 %v2650
    %v3036 = vunpack.c.l.b16 %v2651
    %v3037 = vunpack.c.h.b16 %v2651
    %v3038 = vunpack.c.l.b16 %v2652
    %v3039 = vunpack.c.l.b16 %v2653
    %v3040 = vunpack.c.h.b16 %v2653
    %v3041 = vunpack.c.l.b16 %v2654
    %v3042 = vunpack.c.l.b16 %v2655
    %v3043 = vunpack.c.h.b16 %v2655
    %v3044 = vunpack.c.l.b16 %v2656
    %v3045 = vunpack.c.l.b16 %v2657
    %v3046 = vunpack.c.h.b16 %v2657
    %v3047 = vunpack.c.l.b16 %v2658
    %v3048 = vunpack.c.l.b16 %v2659
    %v3049 = vunpack.c.h.b16 %v2659
    %v3050 = vunpack.c.l.b16 %v2660
    %v3051 = vunpack.c.l.b16 %v2661
    %v3052 = vunpack.c.h.b16 %v2661
    %v3053 = vunpack.c.l.b16 %v2662
    %v3054 = vunpack.c.l.b16 %v2663
    %v3055 = vunpack.c.h.b16 %v2663
    %v3056 = vunpack.c.l.b16 %v2664
    %v3057 = vunpack.c.l.b16 %v2665
    %v3058 = vunpack.c.h.b16 %v2665
    %v3059 = vunpack.c.l.b16 %v2666
    %v3060 = vunpack.c.l.b16 %v2667
    %v3061 = vunpack.c.h.b16 %v2667
    %v3062 = vunpack.c.l.b16 %v2668
    %v3063 = vunpack.c.l.b16 %v2669
    %v3064 = vunpack.c.h.b16 %v2669
    %v3065 = vunpack.c.l.b16 %v2670
    %v3066 = vunpack.c.l.b16 %v2671
    %v3067 = vunpack.c.h.b16 %v2671
    %v3068 = vunpack.c.l.b16 %v2672
    %v3069 = vunpack.c.l.b16 %v2673
    %v3070 = vunpack.c.h.b16 %v2673
    %v3071 = vunpack.c.l.b16 %v2674
    %v3072 = vunpack.c.l.b16 %v2675
    %v3073 = vunpack.c.h.b16 %v2675
    %v3074 = vunpack.c.l.b16 %v2676
    %v3075 = vunpack.c.l.b16 %v2677
    %v3076 = vunpack.c.h.b16 %v2677
    %v3077 = vunpack.c.l.b16 %v2678
    %v3078 = vunpack.c.l.b16 %v2679
    %v3079 = vunpack.c.h.b16 %v2679
    %v3080 = vunpack.c.l.b16 %v2680
    %v3081 = vunpack.c.l.b16 %v2681
    %v3082 = vunpack.c.h.b16 %v2681
    %v3083 = vunpack.c.l.b16 %v2682
    %v3084 = vunpack.c.l.b16 %v2683
    %v3085 = vunpack.c.h.b16 %v2683
    %v3086 = vunpack.c.l.b16 %v2684
    %v3087 = vunpack.c.l.b16 %v2685
    %v3088 = vunpack.c.h.b16 %v2685
    %v3089 = vunpack.c.l.b16 %v2686
    %v3090 = vunpack.c.l.b16 %v2687
    %v3091 = vunpack.c.h.b16 %v2687
    %v3092 = vunpack.c.l.b16 %v2688
    %v3093 = vunpack.c.l.b16 %v2689
    %v3094 = vunpack.c.h.b16 %v2689
    %v3095 = vunpack.c.l.b16 %v2690
    %v3096 = vunpack.c.l.b16 %v2691
    %v3097 = vunpack.c.h.b16 %v2691
    %v3098 = vunpack.c.l.b16 %v2692
    %v3099 = vunpack.c.l.b16 %v2693
    %v3100 = vunpack.c.h.b16 %v2693
    %v3101 = vunpack.c.l.b16 %v2694
    %v3102 = vunpack.c.l.b16 %v2695
    %v3103 = vunpack.c.h.b16 %v2695
    %v3104 = vunpack.c.l.b16 %v2696
    %v3105 = vpack.c.b16 %v2868, %v2865
    %v3106 = vpack.c.b16 %v2869, %v2866
    %v3107 = vpack.c.b16 %v2870, %v2867
    %v3108 = vpack.c.b16 %v2874, %v2871
    %v3109 = vpack.c.b16 %v2875, %v2872
    %v3110 = vpack.c.b16 %v2876, %v2873
    %v3111 = vpack.c.b16 %v2880, %v2877
    %v3112 = vpack.c.b16 %v2881, %v2878
    %v3113 = vpack.c.b16 %v2882, %v2879
    %v3114 = vpack.c.b16 %v2886, %v2883
    %v3115 = vpack.c.b16 %v2887, %v2884
    %v3116 = vpack.c.b16 %v2888, %v2885
    %v3117 = vpack.c.b16 %v2892, %v2889
    %v3118 = vpack.c.b16 %v2893, %v2890
    %v3119 = vpack.c.b16 %v2894, %v2891
    %v3120 = vpack.c.b16 %v2898, %v2895
    %v3121 = vpack.c.b16 %v2899, %v2896
    %v3122 = vpack.c.b16 %v2900, %v2897
    %v3123 = vpack.c.b16 %v2904, %v2901
    %v3124 = vpack.c.b16 %v2905, %v2902
    %v3125 = vpack.c.b16 %v2906, %v2903
    %v3126 = vpack.c.b16 %v2910, %v2907
    %v3127 = vpack.c.b16 %v2911, %v2908
    %v3128 = vpack.c.b16 %v2912, %v2909
    %v3129 = vpack.c.b16 %v2916, %v2913
    %v3130 = vpack.c.b16 %v2917, %v2914
    %v3131 = vpack.c.b16 %v2918, %v2915
    %v3132 = vpack.c.b16 %v2922, %v2919
    %v3133 = vpack.c.b16 %v2923, %v2920
    %v3134 = vpack.c.b16 %v2924, %v2921
    %v3135 = vpack.c.b16 %v2928, %v2925
    %v3136 = vpack.c.b16 %v2929, %v2926
    %v3137 = vpack.c.b16 %v2930, %v2927
    %v3138 = vpack.c.b16 %v2934, %v2931
    %v3139 = vpack.c.b16 %v2935, %v2932
    %v3140 = vpack.c.b16 %v2936, %v2933
    %v3141 = vpack.c.b16 %v2940, %v2937
    %v3142 = vpack.c.b16 %v2941, %v2938
    %v3143 = vpack.c.b16 %v2942, %v2939
    %v3144 = vpack.c.b16 %v2946, %v2943
    %v3145 = vpack.c.b16 %v2947, %v2944
    %v3146 = vpack.c.b16 %v2948, %v2945
    %v3147 = vpack.c.b16 %v2952, %v2949
    %v3148 = vpack.c.b16 %v2953, %v2950
    %v3149 = vpack.c.b16 %v2954, %v2951
    %v3150 = vpack.c.b16 %v2958, %v2955
    %v3151 = vpack.c.b16 %v2959, %v2956
    %v3152 = vpack.c.b16 %v2960, %v2957
    %v3153 = vpack.c.b16 %v2964, %v2961
    %v3154 = vpack.c.b16 %v2965, %v2962
    %v3155 = vpack.c.b16 %v2966, %v2963
    %v3156 = vpack.c.b16 %v2970, %v2967
    %v3157 = vpack.c.b16 %v2971, %v2968
    %v3158 = vpack.c.b16 %v2972, %v2969
    %v3159 = vpack.c.b16 %v2976, %v2973
    %v3160 = vpack.c.b16 %v2977, %v2974
    %v3161 = vpack.c.b16 %v2978, %v2975
    %v3162 = vpack.c.b16 %v2982, %v2979
    %v3163 = vpack.c.b16 %v2983, %v2980
    %v3164 = vpack.c.b16 %v2984, %v2981
    %v3165 = vpack.c.b16 %v2988, %v2985
    %v3166 = vpack.c.b16 %v2989, %v2986
    %v3167 = vpack.c.b16 %v2990, %v2987
    %v3168 = vpack.c.b16 %v2994, %v2991
    %v3169 = vpack.c.b16 %v2995, %v2992
    %v3170 = vpack.c.b16 %v2996, %v2993
    %v3171 = vpack.c.b16 %v3000, %v2997
    %v3172 = vpack.c.b16 %v3001, %v2998
    %v3173 = vpack.c.b16 %v3002, %v2999
    %v3174 = vpack.c.b16 %v3006, %v3003
    %v3175 = vpack.c.b16 %v3007, %v3004
    %v3176 = vpack.c.b16 %v3008, %v3005
    %v3177 = vpack.c.b16 %v3012, %v3009
    %v3178 = vpack.c.b16 %v3013, %v3010
    %v3179 = vpack.c.b16 %v3014, %v3011
    %v3180 = vpack.c.b16 %v3018, %v3015
    %v3181 = vpack.c.b16 %v3019, %v3016
    %v3182 = vpack.c.b16 %v3020, %v3017
    %v3183 = vpack.c.b16 %v3024, %v3021
    %v3184 = vpack.c.b16 %v3025, %v3022
    %v3185 = vpack.c.b16 %v3026, %v3023
    %v3186 = vpack.c.b16 %v3030, %v3027
    %v3187 = vpack.c.b16 %v3031, %v3028
    %v3188 = vpack.c.b16 %v3032, %v3029
    %v3189 = vpack.c.b16 %v3036, %v3033
    %v3190 = vpack.c.b16 %v3037, %v3034
    %v3191 = vpack.c.b16 %v3038, %v3035
    %v3192 = vpack.c.b16 %v3042, %v3039
    %v3193 = vpack.c.b16 %v3043, %v3040
    %v3194 = vpack.c.b16 %v3044, %v3041
    %v3195 = vpack.c.b16 %v3048, %v3045
    %v3196 = vpack.c.b16 %v3049, %v3046
    %v3197 = vpack.c.b16 %v3050, %v3047
    %v3198 = vpack.c.b16 %v3054, %v3051
    %v3199 = vpack.c.b16 %v3055, %v3052
    %v3200 = vpack.c.b16 %v3056, %v3053
    %v3201 = vpack.c.b16 %v3060, %v3057
    %v3202 = vpack.c.b16 %v3061, %v3058
    %v3203 = vpack.c.b16 %v3062, %v3059
    %v3204 = vpack.c.b16 %v3066, %v3063
    %v3205 = vpack.c.b16 %v3067, %v3064
    %v3206 = vpack.c.b16 %v3068, %v3065
    %v3207 = vpack.c.b16 %v3072, %v3069
    %v3208 = vpack.c.b16 %v3073, %v3070
    %v3209 = vpack.c.b16 %v3074, %v3071
    %v3210 = vpack.c.b16 %v3078, %v3075
    %v3211 = vpack.c.b16 %v3079, %v3076
    %v3212 = vpack.c.b16 %v3080, %v3077
    %v3213 = vpack.c.b16 %v3084, %v3081
    %v3214 = vpack.c.b16 %v3085, %v3082
    %v3215 = vpack.c.b16 %v3086, %v3083
    %v3216 = vpack.c.b16 %v3090, %v3087
    %v3217 = vpack.c.b16 %v3091, %v3088
    %v3218 = vpack.c.b16 %v3092, %v3089
    %v3219 = vpack.c.b16 %v3096, %v3093
    %v3220 = vpack.c.b16 %v3097, %v3094
    %v3221 = vpack.c.b16 %v3098, %v3095
    %v3222 = vpack.c.b16 %v3102, %v3099
    %v3223 = vpack.c.b16 %v3103, %v3100
    %v3224 = vpack.c.b16 %v3104, %v3101
    %3345 = vmatpush.bf16.msra.mxu0 %v3126
    %3346 = vmatpush.bf16.msra.mxu0 %v3123
    %3347 = vmatpush.bf16.msra.mxu0 %v3120
    %3348 = vmatpush.bf16.msra.mxu0 %v3117
    %3349 = vmatpush.bf16.msra.mxu0 %v3114
    %3350 = vmatpush.bf16.msra.mxu0 %v3111
    %3351 = vmatpush.bf16.msra.mxu0 %v3108
    %3352 = vmatpush.bf16.msra.mxu0 %v3105
    %3353 = vmatmul.bf16.gmra.mxu0 %v2532
    %v3354 = vpop.f32.mrf.mxu0
    %v3355 = vadd.f32 %v2699, %v3354
    %v3356 = vpop.f32.mrf.mxu0
    %v3357 = vadd.f32 %v2699, %v3356
    %3358 = vdwg.mxu0
    %3359 = vmatpush.bf16.msra.mxu0 %v3150
    %3360 = vmatpush.bf16.msra.mxu0 %v3147
    %3361 = vmatpush.bf16.msra.mxu0 %v3144
    %3362 = vmatpush.bf16.msra.mxu0 %v3141
    %3363 = vmatpush.bf16.msra.mxu0 %v3138
    %3364 = vmatpush.bf16.msra.mxu0 %v3135
    %3365 = vmatpush.bf16.msra.mxu0 %v3132
    %3366 = vmatpush.bf16.msra.mxu0 %v3129
    %3367 = vmatmul.bf16.gmra.mxu0 %v2533
    %v3368 = vpop.f32.mrf.mxu0
    %v3369 = vadd.f32 %v3355, %v3368
    %v3370 = vpop.f32.mrf.mxu0
    %v3371 = vadd.f32 %v3357, %v3370
    %3372 = vdwg.mxu0
    %3373 = vmatpush.bf16.msra.mxu0 %v3174
    %3374 = vmatpush.bf16.msra.mxu0 %v3171
    %3375 = vmatpush.bf16.msra.mxu0 %v3168
    %3376 = vmatpush.bf16.msra.mxu0 %v3165
    %3377 = vmatpush.bf16.msra.mxu0 %v3162
    %3378 = vmatpush.bf16.msra.mxu0 %v3159
    %3379 = vmatpush.bf16.msra.mxu0 %v3156
    %3380 = vmatpush.bf16.msra.mxu0 %v3153
    %3381 = vmatmul.bf16.gmra.mxu0 %v2534
    %v3382 = vpop.f32.mrf.mxu0
    %v3383 = vadd.f32 %v3369, %v3382
    %v3384 = vpop.f32.mrf.mxu0
    %v3385 = vadd.f32 %v3371, %v3384
    %3386 = vdwg.mxu0
    %3387 = vmatpush.bf16.msra.mxu0 %v3198
    %3388 = vmatpush.bf16.msra.mxu0 %v3195
    %3389 = vmatpush.bf16.msra.mxu0 %v3192
    %3390 = vmatpush.bf16.msra.mxu0 %v3189
    %3391 = vmatpush.bf16.msra.mxu0 %v3186
    %3392 = vmatpush.bf16.msra.mxu0 %v3183
    %3393 = vmatpush.bf16.msra.mxu0 %v3180
    %3394 = vmatpush.bf16.msra.mxu0 %v3177
    %3395 = vmatmul.bf16.gmra.mxu0 %v2535
    %v3396 = vpop.f32.mrf.mxu0
    %v3397 = vadd.f32 %v3383, %v3396
    %v3398 = vpop.f32.mrf.mxu0
    %v3399 = vadd.f32 %v3385, %v3398
    %3400 = vdwg.mxu0
    %3401 = vmatpush.bf16.msra.mxu0 %v3222
    %3402 = vmatpush.bf16.msra.mxu0 %v3219
    %3403 = vmatpush.bf16.msra.mxu0 %v3216
    %3404 = vmatpush.bf16.msra.mxu0 %v3213
    %3405 = vmatpush.bf16.msra.mxu0 %v3210
    %3406 = vmatpush.bf16.msra.mxu0 %v3207
    %3407 = vmatpush.bf16.msra.mxu0 %v3204
    %3408 = vmatpush.bf16.msra.mxu0 %v3201
    %3409 = vmatmul.bf16.gmra.mxu0 %v2536
    %v3410 = vpop.f32.mrf.mxu0
    %v3411 = vadd.f32 %v3397, %v3410
    %v3412 = vpop.f32.mrf.mxu0
    %v3413 = vadd.f32 %v3399, %v3412
    %3414 = vdwg.mxu0
    %3415 = vmatpush.bf16.msra.mxu0 %v3127
    %3416 = vmatpush.bf16.msra.mxu0 %v3124
    %3417 = vmatpush.bf16.msra.mxu0 %v3121
    %3418 = vmatpush.bf16.msra.mxu0 %v3118
    %3419 = vmatpush.bf16.msra.mxu0 %v3115
    %3420 = vmatpush.bf16.msra.mxu0 %v3112
    %3421 = vmatpush.bf16.msra.mxu0 %v3109
    %3422 = vmatpush.bf16.msra.mxu0 %v3106
    %3423 = vmatmul.bf16.gmra.mxu0 %v2532
    %v3424 = vpop.f32.mrf.mxu0
    %v3425 = vadd.f32 %v2700, %v3424
    %v3426 = vpop.f32.mrf.mxu0
    %v3427 = vadd.f32 %v2700, %v3426
    %3428 = vdwg.mxu0
    %3429 = vmatpush.bf16.msra.mxu0 %v3151
    %3430 = vmatpush.bf16.msra.mxu0 %v3148
    %3431 = vmatpush.bf16.msra.mxu0 %v3145
    %3432 = vmatpush.bf16.msra.mxu0 %v3142
    %3433 = vmatpush.bf16.msra.mxu0 %v3139
    %3434 = vmatpush.bf16.msra.mxu0 %v3136
    %3435 = vmatpush.bf16.msra.mxu0 %v3133
    %3436 = vmatpush.bf16.msra.mxu0 %v3130
    %3437 = vmatmul.bf16.gmra.mxu0 %v2533
    %v3438 = vpop.f32.mrf.mxu0
    %v3439 = vadd.f32 %v3425, %v3438
    %v3440 = vpop.f32.mrf.mxu0
    %v3441 = vadd.f32 %v3427, %v3440
    %3442 = vdwg.mxu0
    %3443 = vmatpush.bf16.msra.mxu0 %v3175
    %3444 = vmatpush.bf16.msra.mxu0 %v3172
    %3445 = vmatpush.bf16.msra.mxu0 %v3169
    %3446 = vmatpush.bf16.msra.mxu0 %v3166
    %3447 = vmatpush.bf16.msra.mxu0 %v3163
    %3448 = vmatpush.bf16.msra.mxu0 %v3160
    %3449 = vmatpush.bf16.msra.mxu0 %v3157
    %3450 = vmatpush.bf16.msra.mxu0 %v3154
    %3451 = vmatmul.bf16.gmra.mxu0 %v2534
    %v3452 = vpop.f32.mrf.mxu0
    %v3453 = vadd.f32 %v3439, %v3452
    %v3454 = vpop.f32.mrf.mxu0
    %v3455 = vadd.f32 %v3441, %v3454
    %3456 = vdwg.mxu0
    %3457 = vmatpush.bf16.msra.mxu0 %v3199
    %3458 = vmatpush.bf16.msra.mxu0 %v3196
    %3459 = vmatpush.bf16.msra.mxu0 %v3193
    %3460 = vmatpush.bf16.msra.mxu0 %v3190
    %3461 = vmatpush.bf16.msra.mxu0 %v3187
    %3462 = vmatpush.bf16.msra.mxu0 %v3184
    %3463 = vmatpush.bf16.msra.mxu0 %v3181
    %3464 = vmatpush.bf16.msra.mxu0 %v3178
    %3465 = vmatmul.bf16.gmra.mxu0 %v2535
    %v3466 = vpop.f32.mrf.mxu0
    %v3467 = vadd.f32 %v3453, %v3466
    %v3468 = vpop.f32.mrf.mxu0
    %v3469 = vadd.f32 %v3455, %v3468
    %3470 = vdwg.mxu0
    %3471 = vmatpush.bf16.msra.mxu0 %v3223
    %3472 = vmatpush.bf16.msra.mxu0 %v3220
    %3473 = vmatpush.bf16.msra.mxu0 %v3217
    %3474 = vmatpush.bf16.msra.mxu0 %v3214
    %3475 = vmatpush.bf16.msra.mxu0 %v3211
    %3476 = vmatpush.bf16.msra.mxu0 %v3208
    %3477 = vmatpush.bf16.msra.mxu0 %v3205
    %3478 = vmatpush.bf16.msra.mxu0 %v3202
    %3479 = vmatmul.bf16.gmra.mxu0 %v2536
    %v3480 = vpop.f32.mrf.mxu0
    %v3481 = vadd.f32 %v3467, %v3480
    %v3482 = vpop.f32.mrf.mxu0
    %v3483 = vadd.f32 %v3469, %v3482
    %3484 = vdwg.mxu0
    %3485 = vmatpush.bf16.msra.mxu0 %v3128
    %3486 = vmatpush.bf16.msra.mxu0 %v3125
    %3487 = vmatpush.bf16.msra.mxu0 %v3122
    %3488 = vmatpush.bf16.msra.mxu0 %v3119
    %3489 = vmatpush.bf16.msra.mxu0 %v3116
    %3490 = vmatpush.bf16.msra.mxu0 %v3113
    %3491 = vmatpush.bf16.msra.mxu0 %v3110
    %3492 = vmatpush.bf16.msra.mxu0 %v3107
    %3493 = vmatmul.bf16.gmra.mxu0 %v2532
    %v3494 = vpop.f32.mrf.mxu0
    %v3495 = vadd.f32 %v2701, %v3494
    %v3496 = vpop.f32.mrf.mxu0
    %v3497 = vadd.f32 %v2701, %v3496
    %3498 = vdwg.mxu0
    %3499 = vmatpush.bf16.msra.mxu0 %v3152
    %3500 = vmatpush.bf16.msra.mxu0 %v3149
    %3501 = vmatpush.bf16.msra.mxu0 %v3146
    %3502 = vmatpush.bf16.msra.mxu0 %v3143
    %3503 = vmatpush.bf16.msra.mxu0 %v3140
    %3504 = vmatpush.bf16.msra.mxu0 %v3137
    %3505 = vmatpush.bf16.msra.mxu0 %v3134
    %3506 = vmatpush.bf16.msra.mxu0 %v3131
    %3507 = vmatmul.bf16.gmra.mxu0 %v2533
    %v3508 = vpop.f32.mrf.mxu0
    %v3509 = vadd.f32 %v3495, %v3508
    %v3510 = vpop.f32.mrf.mxu0
    %v3511 = vadd.f32 %v3497, %v3510
    %3512 = vdwg.mxu0
    %3513 = vmatpush.bf16.msra.mxu0 %v3176
    %3514 = vmatpush.bf16.msra.mxu0 %v3173
    %3515 = vmatpush.bf16.msra.mxu0 %v3170
    %3516 = vmatpush.bf16.msra.mxu0 %v3167
    %3517 = vmatpush.bf16.msra.mxu0 %v3164
    %3518 = vmatpush.bf16.msra.mxu0 %v3161
    %3519 = vmatpush.bf16.msra.mxu0 %v3158
    %3520 = vmatpush.bf16.msra.mxu0 %v3155
    %3521 = vmatmul.bf16.gmra.mxu0 %v2534
    %v3522 = vpop.f32.mrf.mxu0
    %v3523 = vadd.f32 %v3509, %v3522
    %v3524 = vpop.f32.mrf.mxu0
    %v3525 = vadd.f32 %v3511, %v3524
    %3526 = vdwg.mxu0
    %3527 = vmatpush.bf16.msra.mxu0 %v3200
    %3528 = vmatpush.bf16.msra.mxu0 %v3197
    %3529 = vmatpush.bf16.msra.mxu0 %v3194
    %3530 = vmatpush.bf16.msra.mxu0 %v3191
    %3531 = vmatpush.bf16.msra.mxu0 %v3188
    %3532 = vmatpush.bf16.msra.mxu0 %v3185
    %3533 = vmatpush.bf16.msra.mxu0 %v3182
    %3534 = vmatpush.bf16.msra.mxu0 %v3179
    %3535 = vmatmul.bf16.gmra.mxu0 %v2535
    %v3536 = vpop.f32.mrf.mxu0
    %v3537 = vadd.f32 %v3523, %v3536
    %v3538 = vpop.f32.mrf.mxu0
    %v3539 = vadd.f32 %v3525, %v3538
    %3540 = vdwg.mxu0
    %3541 = vmatpush.bf16.msra.mxu0 %v3224
    %3542 = vmatpush.bf16.msra.mxu0 %v3221
    %3543 = vmatpush.bf16.msra.mxu0 %v3218
    %3544 = vmatpush.bf16.msra.mxu0 %v3215
    %3545 = vmatpush.bf16.msra.mxu0 %v3212
    %3546 = vmatpush.bf16.msra.mxu0 %v3209
    %3547 = vmatpush.bf16.msra.mxu0 %v3206
    %3548 = vmatpush.bf16.msra.mxu0 %v3203
    %3549 = vmatmul.bf16.gmra.mxu0 %v2536
    %v3550 = vpop.f32.mrf.mxu0
    %v3551 = vadd.f32 %v3537, %v3550
    %v3552 = vpop.f32.mrf.mxu0
    %v3553 = vadd.f32 %v3539, %v3552
    %3554 = vdwg.mxu0
    %v3555 = vmax.f32 %v3411, 0.0
    %v3556 = vmax.f32 %v3481, 0.0
    %v3557 = vmax.f32 %v3551, 0.0
    %v3558 = vmax.f32 %v3413, 0.0
    %v3559 = vmax.f32 %v3483, 0.0
    %v3560 = vmax.f32 %v3553, 0.0
    %v3561 = vpack.c.bf16 %v3558, %v3555
    %v3562 = vpack.c.bf16 %v3559, %v3556
    %v3563 = vpack.c.bf16 %v3560, %v3557
    %v3564 = vld [vmem:[#allocation9] sm:$0xff]
    %v3565 = vld [vmem:[#allocation9 + $0x8] sm:$0xff]
    %v3566 = vld [vmem:[#allocation9 + $0x10] sm:$0xff]
    %v3567 = vld [vmem:[#allocation9 + $0x18] sm:$0xff]
    %v3568 = vld [vmem:[#allocation9 + $0x20] sm:$0xff]
    %v3569 = vld [vmem:[#allocation9 + $0x28] sm:$0xff]
    %v3570 = vld [vmem:[#allocation9 + $0x30] sm:$0xff]
    %v3571 = vld [vmem:[#allocation9 + $0x38] sm:$0xff]
    %v3572 = vld [vmem:[#allocation9 + $0x40] sm:$0xff]
    %v3573 = vld [vmem:[#allocation9 + $0x48] sm:$0xff]
    %v3574 = vld [vmem:[#allocation9 + $0x50] sm:$0xff]
    %v3575 = vld [vmem:[#allocation9 + $0x58] sm:$0xff]
    %v3576 = vld [vmem:[#allocation9 + $0x60] sm:$0xff]
    %v3577 = vld [vmem:[#allocation9 + $0x68] sm:$0xff]
    %v3578 = vld [vmem:[#allocation9 + $0x70] sm:$0xff]
    %v3579 = vld [vmem:[#allocation9 + $0x78] sm:$0xff]
    %v3580 = vld [vmem:[#allocation9 + $0x80] sm:$0xff]
    %v3581 = vld [vmem:[#allocation9 + $0x88] sm:$0xff]
    %v3582 = vld [vmem:[#allocation9 + $0x90] sm:$0xff]
    %v3583 = vld [vmem:[#allocation9 + $0x98] sm:$0xff]
    %v3584 = vld [vmem:[#allocation9 + $0xa0] sm:$0xff]
    %v3585 = vld [vmem:[#allocation9 + $0xa8] sm:$0xff]
    %v3586 = vld [vmem:[#allocation9 + $0xb0] sm:$0xff]
    %v3587 = vld [vmem:[#allocation9 + $0xb8] sm:$0xff]
    %v3588 = vld [vmem:[#allocation9 + $0xc0] sm:$0xff]
    %v3589 = vld [vmem:[#allocation9 + $0xc8] sm:$0xff]
    %v3590 = vld [vmem:[#allocation9 + $0xd0] sm:$0xff]
    %v3591 = vld [vmem:[#allocation9 + $0xd8] sm:$0xff]
    %v3592 = vld [vmem:[#allocation9 + $0xe0] sm:$0xff]
    %v3593 = vld [vmem:[#allocation9 + $0xe8] sm:$0xff]
    %v3594 = vld [vmem:[#allocation9 + $0xf0] sm:$0xff]
    %v3595 = vld [vmem:[#allocation9 + $0xf8] sm:$0xff]
    %v3596 = vld [vmem:[#allocation9 + $0x100] sm:$0xff]
    %v3597 = vld [vmem:[#allocation9 + $0x108] sm:$0xff]
    %v3598 = vld [vmem:[#allocation9 + $0x110] sm:$0xff]
    %v3599 = vld [vmem:[#allocation9 + $0x118] sm:$0xff]
    %v3600 = vld [vmem:[#allocation9 + $0x120] sm:$0xff]
    %v3601 = vld [vmem:[#allocation9 + $0x128] sm:$0xff]
    %v3602 = vld [vmem:[#allocation9 + $0x130] sm:$0xff]
    %v3603 = vld [vmem:[#allocation9 + $0x138] sm:$0xff]
    %v3604 = vld [vmem:[#allocation9 + $0x140] sm:$0xff]
    %v3605 = vld [vmem:[#allocation9 + $0x148] sm:$0xff]
    %v3606 = vld [vmem:[#allocation9 + $0x150] sm:$0xff]
    %v3607 = vld [vmem:[#allocation9 + $0x158] sm:$0xff]
    %v3608 = vld [vmem:[#allocation9 + $0x160] sm:$0xff]
    %v3609 = vld [vmem:[#allocation9 + $0x168] sm:$0xff]
    %v3610 = vld [vmem:[#allocation9 + $0x170] sm:$0xff]
    %v3611 = vld [vmem:[#allocation9 + $0x178] sm:$0xff]
    %v3612 = vld [vmem:[#allocation10] sm:$0x3]
    %v3614 = vperm.slane %v3612, 0
    %v3615 = vperm.slane %v3612, 1
    %v3666 = vunpack.c.l.b16 %v3564
    %v3667 = vunpack.c.h.b16 %v3564
    %v3668 = vunpack.c.l.b16 %v3565
    %v3669 = vunpack.c.h.b16 %v3565
    %v3670 = vunpack.c.l.b16 %v3566
    %v3671 = vunpack.c.h.b16 %v3566
    %v3672 = vunpack.c.l.b16 %v3567
    %v3673 = vunpack.c.h.b16 %v3567
    %v3674 = vunpack.c.l.b16 %v3568
    %v3675 = vunpack.c.h.b16 %v3568
    %v3676 = vunpack.c.l.b16 %v3569
    %v3677 = vunpack.c.h.b16 %v3569
    %v3678 = vunpack.c.l.b16 %v3570
    %v3679 = vunpack.c.h.b16 %v3570
    %v3680 = vunpack.c.l.b16 %v3571
    %v3681 = vunpack.c.h.b16 %v3571
    %v3682 = vunpack.c.l.b16 %v3572
    %v3683 = vunpack.c.h.b16 %v3572
    %v3684 = vunpack.c.l.b16 %v3573
    %v3685 = vunpack.c.h.b16 %v3573
    %v3686 = vunpack.c.l.b16 %v3574
    %v3687 = vunpack.c.h.b16 %v3574
    %v3688 = vunpack.c.l.b16 %v3575
    %v3689 = vunpack.c.h.b16 %v3575
    %v3690 = vunpack.c.l.b16 %v3576
    %v3691 = vunpack.c.h.b16 %v3576
    %v3692 = vunpack.c.l.b16 %v3577
    %v3693 = vunpack.c.h.b16 %v3577
    %v3694 = vunpack.c.l.b16 %v3578
    %v3695 = vunpack.c.h.b16 %v3578
    %v3696 = vunpack.c.l.b16 %v3579
    %v3697 = vunpack.c.h.b16 %v3579
    %v3698 = vunpack.c.l.b16 %v3580
    %v3699 = vunpack.c.h.b16 %v3580
    %v3700 = vunpack.c.l.b16 %v3581
    %v3701 = vunpack.c.h.b16 %v3581
    %v3702 = vunpack.c.l.b16 %v3582
    %v3703 = vunpack.c.h.b16 %v3582
    %v3704 = vunpack.c.l.b16 %v3583
    %v3705 = vunpack.c.h.b16 %v3583
    %v3706 = vunpack.c.l.b16 %v3584
    %v3707 = vunpack.c.h.b16 %v3584
    %v3708 = vunpack.c.l.b16 %v3585
    %v3709 = vunpack.c.h.b16 %v3585
    %v3710 = vunpack.c.l.b16 %v3586
    %v3711 = vunpack.c.h.b16 %v3586
    %v3712 = vunpack.c.l.b16 %v3587
    %v3713 = vunpack.c.h.b16 %v3587
    %v3714 = vunpack.c.l.b16 %v3588
    %v3715 = vunpack.c.h.b16 %v3588
    %v3716 = vunpack.c.l.b16 %v3589
    %v3717 = vunpack.c.h.b16 %v3589
    %v3718 = vunpack.c.l.b16 %v3590
    %v3719 = vunpack.c.h.b16 %v3590
    %v3720 = vunpack.c.l.b16 %v3591
    %v3721 = vunpack.c.h.b16 %v3591
    %v3722 = vunpack.c.l.b16 %v3592
    %v3723 = vunpack.c.h.b16 %v3592
    %v3724 = vunpack.c.l.b16 %v3593
    %v3725 = vunpack.c.h.b16 %v3593
    %v3726 = vunpack.c.l.b16 %v3594
    %v3727 = vunpack.c.h.b16 %v3594
    %v3728 = vunpack.c.l.b16 %v3595
    %v3729 = vunpack.c.h.b16 %v3595
    %v3730 = vunpack.c.l.b16 %v3596
    %v3731 = vunpack.c.h.b16 %v3596
    %v3732 = vunpack.c.l.b16 %v3597
    %v3733 = vunpack.c.h.b16 %v3597
    %v3734 = vunpack.c.l.b16 %v3598
    %v3735 = vunpack.c.h.b16 %v3598
    %v3736 = vunpack.c.l.b16 %v3599
    %v3737 = vunpack.c.h.b16 %v3599
    %v3738 = vunpack.c.l.b16 %v3600
    %v3739 = vunpack.c.h.b16 %v3600
    %v3740 = vunpack.c.l.b16 %v3601
    %v3741 = vunpack.c.h.b16 %v3601
    %v3742 = vunpack.c.l.b16 %v3602
    %v3743 = vunpack.c.h.b16 %v3602
    %v3744 = vunpack.c.l.b16 %v3603
    %v3745 = vunpack.c.h.b16 %v3603
    %v3746 = vunpack.c.l.b16 %v3604
    %v3747 = vunpack.c.h.b16 %v3604
    %v3748 = vunpack.c.l.b16 %v3605
    %v3749 = vunpack.c.h.b16 %v3605
    %v3750 = vunpack.c.l.b16 %v3606
    %v3751 = vunpack.c.h.b16 %v3606
    %v3752 = vunpack.c.l.b16 %v3607
    %v3753 = vunpack.c.h.b16 %v3607
    %v3754 = vunpack.c.l.b16 %v3608
    %v3755 = vunpack.c.h.b16 %v3608
    %v3756 = vunpack.c.l.b16 %v3609
    %v3757 = vunpack.c.h.b16 %v3609
    %v3758 = vunpack.c.l.b16 %v3610
    %v3759 = vunpack.c.h.b16 %v3610
    %v3760 = vunpack.c.l.b16 %v3611
    %v3761 = vunpack.c.h.b16 %v3611
    %v3762 = vpack.c.b16 %v3668, %v3666
    %v3763 = vpack.c.b16 %v3669, %v3667
    %v3764 = vpack.c.b16 %v3672, %v3670
    %v3765 = vpack.c.b16 %v3673, %v3671
    %v3766 = vpack.c.b16 %v3676, %v3674
    %v3767 = vpack.c.b16 %v3677, %v3675
    %v3768 = vpack.c.b16 %v3680, %v3678
    %v3769 = vpack.c.b16 %v3681, %v3679
    %v3770 = vpack.c.b16 %v3684, %v3682
    %v3771 = vpack.c.b16 %v3685, %v3683
    %v3772 = vpack.c.b16 %v3688, %v3686
    %v3773 = vpack.c.b16 %v3689, %v3687
    %v3774 = vpack.c.b16 %v3692, %v3690
    %v3775 = vpack.c.b16 %v3693, %v3691
    %v3776 = vpack.c.b16 %v3696, %v3694
    %v3777 = vpack.c.b16 %v3697, %v3695
    %v3778 = vpack.c.b16 %v3700, %v3698
    %v3779 = vpack.c.b16 %v3701, %v3699
    %v3780 = vpack.c.b16 %v3704, %v3702
    %v3781 = vpack.c.b16 %v3705, %v3703
    %v3782 = vpack.c.b16 %v3708, %v3706
    %v3783 = vpack.c.b16 %v3709, %v3707
    %v3784 = vpack.c.b16 %v3712, %v3710
    %v3785 = vpack.c.b16 %v3713, %v3711
    %v3786 = vpack.c.b16 %v3716, %v3714
    %v3787 = vpack.c.b16 %v3717, %v3715
    %v3788 = vpack.c.b16 %v3720, %v3718
    %v3789 = vpack.c.b16 %v3721, %v3719
    %v3790 = vpack.c.b16 %v3724, %v3722
    %v3791 = vpack.c.b16 %v3725, %v3723
    %v3792 = vpack.c.b16 %v3728, %v3726
    %v3793 = vpack.c.b16 %v3729, %v3727
    %v3794 = vpack.c.b16 %v3732, %v3730
    %v3795 = vpack.c.b16 %v3733, %v3731
    %v3796 = vpack.c.b16 %v3736, %v3734
    %v3797 = vpack.c.b16 %v3737, %v3735
    %v3798 = vpack.c.b16 %v3740, %v3738
    %v3799 = vpack.c.b16 %v3741, %v3739
    %v3800 = vpack.c.b16 %v3744, %v3742
    %v3801 = vpack.c.b16 %v3745, %v3743
    %v3802 = vpack.c.b16 %v3748, %v3746
    %v3803 = vpack.c.b16 %v3749, %v3747
    %v3804 = vpack.c.b16 %v3752, %v3750
    %v3805 = vpack.c.b16 %v3753, %v3751
    %v3806 = vpack.c.b16 %v3756, %v3754
    %v3807 = vpack.c.b16 %v3757, %v3755
    %v3808 = vpack.c.b16 %v3760, %v3758
    %v3809 = vpack.c.b16 %v3761, %v3759
    %3858 = vmatpush.bf16.msra.mxu0 %v3776
    %3859 = vmatpush.bf16.msra.mxu0 %v3774
    %3860 = vmatpush.bf16.msra.mxu0 %v3772
    %3861 = vmatpush.bf16.msra.mxu0 %v3770
    %3862 = vmatpush.bf16.msra.mxu0 %v3768
    %3863 = vmatpush.bf16.msra.mxu0 %v3766
    %3864 = vmatpush.bf16.msra.mxu0 %v3764
    %3865 = vmatpush.bf16.msra.mxu0 %v3762
    %3866 = vmatmul.bf16.gmra.mxu0 %v3561
    %v3867 = vpop.f32.mrf.mxu0
    %v3868 = vadd.f32 %v3614, %v3867
    %v3869 = vpop.f32.mrf.mxu0
    %v3870 = vadd.f32 %v3614, %v3869
    %3871 = vdwg.mxu0
    %3872 = vmatpush.bf16.msra.mxu0 %v3792
    %3873 = vmatpush.bf16.msra.mxu0 %v3790
    %3874 = vmatpush.bf16.msra.mxu0 %v3788
    %3875 = vmatpush.bf16.msra.mxu0 %v3786
    %3876 = vmatpush.bf16.msra.mxu0 %v3784
    %3877 = vmatpush.bf16.msra.mxu0 %v3782
    %3878 = vmatpush.bf16.msra.mxu0 %v3780
    %3879 = vmatpush.bf16.msra.mxu0 %v3778
    %3880 = vmatmul.bf16.gmra.mxu0 %v3562
    %v3881 = vpop.f32.mrf.mxu0
    %v3882 = vadd.f32 %v3868, %v3881
    %v3883 = vpop.f32.mrf.mxu0
    %v3884 = vadd.f32 %v3870, %v3883
    %3885 = vdwg.mxu0
    %3886 = vmatpush.bf16.msra.mxu0 %v3808
    %3887 = vmatpush.bf16.msra.mxu0 %v3806
    %3888 = vmatpush.bf16.msra.mxu0 %v3804
    %3889 = vmatpush.bf16.msra.mxu0 %v3802
    %3890 = vmatpush.bf16.msra.mxu0 %v3800
    %3891 = vmatpush.bf16.msra.mxu0 %v3798
    %3892 = vmatpush.bf16.msra.mxu0 %v3796
    %3893 = vmatpush.bf16.msra.mxu0 %v3794
    %3894 = vmatmul.bf16.gmra.mxu0 %v3563
    %v3895 = vpop.f32.mrf.mxu0
    %v3896 = vadd.f32 %v3882, %v3895
    %v3897 = vpop.f32.mrf.mxu0
    %v3898 = vadd.f32 %v3884, %v3897
    %3899 = vdwg.mxu0
    %3900 = vmatpush.bf16.msra.mxu0 %v3777
    %3901 = vmatpush.bf16.msra.mxu0 %v3775
    %3902 = vmatpush.bf16.msra.mxu0 %v3773
    %3903 = vmatpush.bf16.msra.mxu0 %v3771
    %3904 = vmatpush.bf16.msra.mxu0 %v3769
    %3905 = vmatpush.bf16.msra.mxu0 %v3767
    %3906 = vmatpush.bf16.msra.mxu0 %v3765
    %3907 = vmatpush.bf16.msra.mxu0 %v3763
    %3908 = vmatmul.bf16.gmra.mxu0 %v3561
    %v3909 = vpop.f32.mrf.mxu0
    %v3910 = vadd.f32 %v3615, %v3909
    %v3911 = vpop.f32.mrf.mxu0
    %v3912 = vadd.f32 %v3615, %v3911
    %3913 = vdwg.mxu0
    %3914 = vmatpush.bf16.msra.mxu0 %v3793
    %3915 = vmatpush.bf16.msra.mxu0 %v3791
    %3916 = vmatpush.bf16.msra.mxu0 %v3789
    %3917 = vmatpush.bf16.msra.mxu0 %v3787
    %3918 = vmatpush.bf16.msra.mxu0 %v3785
    %3919 = vmatpush.bf16.msra.mxu0 %v3783
    %3920 = vmatpush.bf16.msra.mxu0 %v3781
    %3921 = vmatpush.bf16.msra.mxu0 %v3779
    %3922 = vmatmul.bf16.gmra.mxu0 %v3562
    %v3923 = vpop.f32.mrf.mxu0
    %v3924 = vadd.f32 %v3910, %v3923
    %v3925 = vpop.f32.mrf.mxu0
    %v3926 = vadd.f32 %v3912, %v3925
    %3927 = vdwg.mxu0
    %3928 = vmatpush.bf16.msra.mxu0 %v3809
    %3929 = vmatpush.bf16.msra.mxu0 %v3807
    %3930 = vmatpush.bf16.msra.mxu0 %v3805
    %3931 = vmatpush.bf16.msra.mxu0 %v3803
    %3932 = vmatpush.bf16.msra.mxu0 %v3801
    %3933 = vmatpush.bf16.msra.mxu0 %v3799
    %3934 = vmatpush.bf16.msra.mxu0 %v3797
    %3935 = vmatpush.bf16.msra.mxu0 %v3795
    %3936 = vmatmul.bf16.gmra.mxu0 %v3563
    %v3937 = vpop.f32.mrf.mxu0
    %v3938 = vadd.f32 %v3924, %v3937
    %v3939 = vpop.f32.mrf.mxu0
    %v3940 = vadd.f32 %v3926, %v3939
    %3941 = vdwg.mxu0
    %v3942 = vmax.f32 %v3896, 0.0
    %v3943 = vmax.f32 %v3938, 0.0
    %v3944 = vmax.f32 %v3898, 0.0
    %v3945 = vmax.f32 %v3940, 0.0
    %v3946 = vpack.c.bf16 %v3944, %v3942
    %v3947 = vpack.c.bf16 %v3945, %v3943
    %v3948 = vld [vmem:[#allocation12] sm:$0xf]
    %v3949 = vld [vmem:[#allocation12 + $0x4] sm:$0xf]
    %v3950 = vld [vmem:[#allocation12 + $0x8] sm:$0xf]
    %v3951 = vld [vmem:[#allocation12 + $0xc] sm:$0xf]
    %v3952 = vld [vmem:[#allocation12 + $0x10] sm:$0xf]
    %v3953 = vld [vmem:[#allocation12 + $0x14] sm:$0xf]
    %v3954 = vld [vmem:[#allocation12 + $0x18] sm:$0xf]
    %v3955 = vld [vmem:[#allocation12 + $0x1c] sm:$0xf]
    %v3956 = vld [vmem:[#allocation12 + $0x20] sm:$0xf]
    %v3957 = vld [vmem:[#allocation12 + $0x24] sm:$0xf]
    %v3958 = vld [vmem:[#allocation12 + $0x28] sm:$0xf]
    %v3959 = vld [vmem:[#allocation12 + $0x2c] sm:$0xf]
    %v3960 = vld [vmem:[#allocation12 + $0x30] sm:$0xf]
    %v3961 = vld [vmem:[#allocation12 + $0x34] sm:$0xf]
    %v3962 = vld [vmem:[#allocation12 + $0x38] sm:$0xf]
    %v3963 = vld [vmem:[#allocation12 + $0x3c] sm:$0xf]
    %v3964 = vld [vmem:[#allocation12 + $0x40] sm:$0xf]
    %v3965 = vld [vmem:[#allocation12 + $0x44] sm:$0xf]
    %v3966 = vld [vmem:[#allocation12 + $0x48] sm:$0xf]
    %v3967 = vld [vmem:[#allocation12 + $0x4c] sm:$0xf]
    %v3968 = vld [vmem:[#allocation12 + $0x50] sm:$0xf]
    %v3969 = vld [vmem:[#allocation12 + $0x54] sm:$0xf]
    %v3970 = vld [vmem:[#allocation12 + $0x58] sm:$0xf]
    %v3971 = vld [vmem:[#allocation12 + $0x5c] sm:$0xf]
    %v3972 = vld [vmem:[#allocation12 + $0x60] sm:$0xf]
    %v3973 = vld [vmem:[#allocation12 + $0x64] sm:$0xf]
    %v3974 = vld [vmem:[#allocation12 + $0x68] sm:$0xf]
    %v3975 = vld [vmem:[#allocation12 + $0x6c] sm:$0xf]
    %v3976 = vld [vmem:[#allocation12 + $0x70] sm:$0xf]
    %v3977 = vld [vmem:[#allocation12 + $0x74] sm:$0xf]
    %v3978 = vld [vmem:[#allocation12 + $0x78] sm:$0xf]
    %v3979 = vld [vmem:[#allocation12 + $0x7c] sm:$0xf]
    %v3980 = vld [vmem:[#allocation13] sm:$0x1]
    %v3982 = vperm.slane %v3980, 0
    %v4016 = vunpack.c.l.b16 %v3948
    %v4017 = vunpack.c.l.b16 %v3949
    %v4018 = vunpack.c.l.b16 %v3950
    %v4019 = vunpack.c.l.b16 %v3951
    %v4020 = vunpack.c.l.b16 %v3952
    %v4021 = vunpack.c.l.b16 %v3953
    %v4022 = vunpack.c.l.b16 %v3954
    %v4023 = vunpack.c.l.b16 %v3955
    %v4024 = vunpack.c.l.b16 %v3956
    %v4025 = vunpack.c.l.b16 %v3957
    %v4026 = vunpack.c.l.b16 %v3958
    %v4027 = vunpack.c.l.b16 %v3959
    %v4028 = vunpack.c.l.b16 %v3960
    %v4029 = vunpack.c.l.b16 %v3961
    %v4030 = vunpack.c.l.b16 %v3962
    %v4031 = vunpack.c.l.b16 %v3963
    %v4032 = vunpack.c.l.b16 %v3964
    %v4033 = vunpack.c.l.b16 %v3965
    %v4034 = vunpack.c.l.b16 %v3966
    %v4035 = vunpack.c.l.b16 %v3967
    %v4036 = vunpack.c.l.b16 %v3968
    %v4037 = vunpack.c.l.b16 %v3969
    %v4038 = vunpack.c.l.b16 %v3970
    %v4039 = vunpack.c.l.b16 %v3971
    %v4040 = vunpack.c.l.b16 %v3972
    %v4041 = vunpack.c.l.b16 %v3973
    %v4042 = vunpack.c.l.b16 %v3974
    %v4043 = vunpack.c.l.b16 %v3975
    %v4044 = vunpack.c.l.b16 %v3976
    %v4045 = vunpack.c.l.b16 %v3977
    %v4046 = vunpack.c.l.b16 %v3978
    %v4047 = vunpack.c.l.b16 %v3979
    %v4048 = vpack.c.b16 %v4017, %v4016
    %v4049 = vpack.c.b16 %v4019, %v4018
    %v4050 = vpack.c.b16 %v4021, %v4020
    %v4051 = vpack.c.b16 %v4023, %v4022
    %v4052 = vpack.c.b16 %v4025, %v4024
    %v4053 = vpack.c.b16 %v4027, %v4026
    %v4054 = vpack.c.b16 %v4029, %v4028
    %v4055 = vpack.c.b16 %v4031, %v4030
    %v4056 = vpack.c.b16 %v4033, %v4032
    %v4057 = vpack.c.b16 %v4035, %v4034
    %v4058 = vpack.c.b16 %v4037, %v4036
    %v4059 = vpack.c.b16 %v4039, %v4038
    %v4060 = vpack.c.b16 %v4041, %v4040
    %v4061 = vpack.c.b16 %v4043, %v4042
    %v4062 = vpack.c.b16 %v4045, %v4044
    %v4063 = vpack.c.b16 %v4047, %v4046
    %4080 = vmatpush.bf16.msra.mxu0 %v4055
    %4081 = vmatpush.bf16.msra.mxu0 %v4054
    %4082 = vmatpush.bf16.msra.mxu0 %v4053
    %4083 = vmatpush.bf16.msra.mxu0 %v4052
    %4084 = vmatpush.bf16.msra.mxu0 %v4051
    %4085 = vmatpush.bf16.msra.mxu0 %v4050
    %4086 = vmatpush.bf16.msra.mxu0 %v4049
    %4087 = vmatpush.bf16.msra.mxu0 %v4048
    %4088 = vmatmul.bf16.gmra.mxu0 %v3946
    %v4089 = vpop.f32.mrf.mxu0
    %v4090 = vadd.f32 %v3982, %v4089
    %v4091 = vpop.f32.mrf.mxu0
    %v4092 = vadd.f32 %v3982, %v4091
    %4093 = vdwg.mxu0
    %4094 = vmatpush.bf16.msra.mxu0 %v4063
    %4095 = vmatpush.bf16.msra.mxu0 %v4062
    %4096 = vmatpush.bf16.msra.mxu0 %v4061
    %4097 = vmatpush.bf16.msra.mxu0 %v4060
    %4098 = vmatpush.bf16.msra.mxu0 %v4059
    %4099 = vmatpush.bf16.msra.mxu0 %v4058
    %4100 = vmatpush.bf16.msra.mxu0 %v4057
    %4101 = vmatpush.bf16.msra.mxu0 %v4056
    %4102 = vmatmul.bf16.gmra.mxu0 %v3947
    %v4103 = vpop.f32.mrf.mxu0
    %v4104 = vadd.f32 %v4090, %v4103
    %v4105 = vpop.f32.mrf.mxu0
    %v4106 = vadd.f32 %v4092, %v4105
    %4107 = vdwg.mxu0
    %v4108 = vmax.f32 %v4104, 0.0
    %v4109 = vmax.f32 %v4106, 0.0
    %v4110 = vpack.c.bf16 %v4109, %v4108
    %v4111 = vld [vmem:[#allocation15] sm:$0xf]
    %v4112 = vld [vmem:[#allocation15 + $0x4] sm:$0xf]
    %v4113 = vld [vmem:[#allocation15 + $0x8] sm:$0xf]
    %v4114 = vld [vmem:[#allocation15 + $0xc] sm:$0xf]
    %v4115 = vld [vmem:[#allocation15 + $0x10] sm:$0xf]
    %v4116 = vld [vmem:[#allocation15 + $0x14] sm:$0xf]
    %v4117 = vld [vmem:[#allocation15 + $0x18] sm:$0xf]
    %v4118 = vld [vmem:[#allocation15 + $0x1c] sm:$0xf]
    %v4119 = vld [vmem:[#allocation15 + $0x20] sm:$0xf]
    %v4120 = vld [vmem:[#allocation15 + $0x24] sm:$0xf]
    %v4121 = vld [vmem:[#allocation15 + $0x28] sm:$0xf]
    %v4122 = vld [vmem:[#allocation15 + $0x2c] sm:$0xf]
    %v4123 = vld [vmem:[#allocation15 + $0x30] sm:$0xf]
    %v4124 = vld [vmem:[#allocation15 + $0x34] sm:$0xf]
    %v4125 = vld [vmem:[#allocation15 + $0x38] sm:$0xf]
    %v4126 = vld [vmem:[#allocation15 + $0x3c] sm:$0xf]
    %v4127 = vld [vmem:[#allocation16] sm:$0x1]
    %v4129 = vperm.slane %v4127, 0
    %v4147 = vunpack.c.l.b16 %v4111
    %v4148 = vunpack.c.l.b16 %v4112
    %v4149 = vunpack.c.l.b16 %v4113
    %v4150 = vunpack.c.l.b16 %v4114
    %v4151 = vunpack.c.l.b16 %v4115
    %v4152 = vunpack.c.l.b16 %v4116
    %v4153 = vunpack.c.l.b16 %v4117
    %v4154 = vunpack.c.l.b16 %v4118
    %v4155 = vunpack.c.l.b16 %v4119
    %v4156 = vunpack.c.l.b16 %v4120
    %v4157 = vunpack.c.l.b16 %v4121
    %v4158 = vunpack.c.l.b16 %v4122
    %v4159 = vunpack.c.l.b16 %v4123
    %v4160 = vunpack.c.l.b16 %v4124
    %v4161 = vunpack.c.l.b16 %v4125
    %v4162 = vunpack.c.l.b16 %v4126
    %v4163 = vpack.c.b16 %v4148, %v4147
    %v4164 = vpack.c.b16 %v4150, %v4149
    %v4165 = vpack.c.b16 %v4152, %v4151
    %v4166 = vpack.c.b16 %v4154, %v4153
    %v4167 = vpack.c.b16 %v4156, %v4155
    %v4168 = vpack.c.b16 %v4158, %v4157
    %v4169 = vpack.c.b16 %v4160, %v4159
    %v4170 = vpack.c.b16 %v4162, %v4161
    %4179 = vmatpush.bf16.msra.mxu0 %v4170
    %4180 = vmatpush.bf16.msra.mxu0 %v4169
    %4181 = vmatpush.bf16.msra.mxu0 %v4168
    %4182 = vmatpush.bf16.msra.mxu0 %v4167
    %4183 = vmatpush.bf16.msra.mxu0 %v4166
    %4184 = vmatpush.bf16.msra.mxu0 %v4165
    %4185 = vmatpush.bf16.msra.mxu0 %v4164
    %4186 = vmatpush.bf16.msra.mxu0 %v4163
    %4187 = vmatmul.bf16.gmra.mxu0 %v4110
    %v4188 = vpop.f32.mrf.mxu0
    %v4189 = vadd.f32 %v4129, %v4188
    %v4190 = vpop.f32.mrf.mxu0
    %v4191 = vadd.f32 %v4129, %v4190
    %4192 = vdwg.mxu0
    %v4193 = vpack.c.bf16 %v4189, %v4189
    %v4194 = vpack.c.bf16 %v4191, %v4191
    %4195 = vst [vmem:[%s11] sm:$0xf] %v4193
    %4196 = vst [vmem:[%s11 + $0x4] sm:$0xf] %v4194
    // Predicated region
    $region86: #{_forward.1} parent=1 // pred_check
      _
    $region87: #{_forward.1} parent=1 // pred_check_branch
      %4198 = sbr.rel (0) target = $region89
    $region88: #{_forward.1} parent=1 // pred_region
      _
    $region89: #{_forward.1} parent=1 // pred_fallthru
      _
    // Predicated region
    $region90: #{_forward.1} parent=1 // pred_check
      _
    $region91: #{_forward.1} parent=1 // pred_check_branch
      %4200 = sbr.rel (0) target = $region93
    $region92: #{_forward.1} parent=1 // pred_region
      _
    $region93: #{_forward.1} parent=1 // pred_fallthru
      _
    %4201 = vsyncpa [#allocation3], 1
    %4202 = vsyncpa [#allocation5], 1
    %4203 = vsyncpa [#allocation8], 1
    %4204 = vsyncpa [#allocation11], 1
    %4205 = vsyncpa [#allocation14], 1
    %4206 = vsyncpa [#allocation17], 1

</llo_original>
